<compile_context>
chip_gen: v7x
topology: tpu7x:2x2x1
jax: 0.10.0
libtpu: 0.0.40
codegen_flags: <defaults>
</compile_context>

<pallas_src>
import functools
import math

import jax
import jax.numpy as jnp
from jax.experimental import pallas as pl
from jax.experimental.pallas import tpu as pltpu

# ----------------------------- config (small) ------------------------------
N_IMG = 2          # batch
C_IN = 3           # input channels (RGB)
H = W = 16         # spatial
C_FEAT = 32        # backbone out_channels
NUM_ANCHORS = 3    # anchors per location
ANCHOR_SIZES = (2.0, 4.0, 8.0)
NUM_PROPOSALS = 8  # proposals kept per image (post "NMS"-less top-k)
R_DIM = 64         # ROI box-head representation size
NUM_CLASSES = 5    # including background

BBOX_XFORM_CLIP = math.log(1000.0 / 16.0)  # torchvision-style dw/dh clamp
HEAD_NP = 128      # lane-dense padded width for small head outputs
TM = 256           # M tile for the big GEMMs (parallel grid axis)


def _round_up(x, m):
    return (x + m - 1) // m * m


# ----------------------- fused matmul + bias (+ReLU) ------------------------
def _linear_kernel(x_ref, w_ref, b_ref, o_ref, *, relu):
    y = jnp.dot(x_ref[...], w_ref[...], preferred_element_type=jnp.float32)
    y = y + b_ref[...]
    if relu:
        y = jnp.maximum(y, 0.0)
    o_ref[...] = y


def pallas_linear(x, w, b, relu=False, tm=TM):
    """y = act(x @ w + b) with bf16 operands, f32 accumulate.

    x: (M, Kx) f32/bf16; w: (Kw, N) bf16 pre-padded (Kw >= Kx); b: (1, N) f32.
    Whole-K single block; M is tiled with a 'parallel' grid axis when possible.
    """
    M, Kx = x.shape
    Kw, N = w.shape

    Mp = max(_round_up(M, 8), 8)
    x = x.astype(jnp.bfloat16)
    if Mp != M or Kw != Kx:
        x = jnp.pad(x, ((0, Mp - M), (0, Kw - Kx)))

    bm = tm if (Mp % tm == 0 and Mp > tm) else Mp
    grid = (Mp // bm,)
    kernel = functools.partial(_linear_kernel, relu=relu)

    out = pl.pallas_call(
        kernel,
        out_shape=jax.ShapeDtypeStruct((Mp, N), jnp.float32),
        grid_spec=pltpu.PrefetchScalarGridSpec(
            num_scalar_prefetch=0,
            grid=grid,
            in_specs=[
                pl.BlockSpec((bm, Kw), lambda i: (i, 0)),
                pl.BlockSpec((Kw, N), lambda i: (0, 0)),
                pl.BlockSpec((1, N), lambda i: (0, 0)),
            ],
            out_specs=pl.BlockSpec((bm, N), lambda i: (i, 0)),
        ),
        compiler_params=pltpu.CompilerParams(
            dimension_semantics=("parallel",)),
    )(x, w, b)
    return out[:M]


# ------------------- fused RPN head (3x3 conv + 1x1 heads) ------------------
def _rpn_fused_kernel(cols_ref, wr_ref, br_ref, wh_ref, bh_ref, o_ref):
    t = jnp.dot(cols_ref[...], wr_ref[...], preferred_element_type=jnp.float32)
    t = jnp.maximum(t + br_ref[...], 0.0)
    o = jnp.dot(t.astype(jnp.bfloat16), wh_ref[...],
                preferred_element_type=jnp.float32)
    o_ref[...] = o + bh_ref[...]


def pallas_rpn_head(cols, wr, br, wh, bh, tm=TM):
    """out = relu(cols @ wr + br) @ wh + bh  (objectness+deltas concatenated)."""
    M, Kx = cols.shape
    Kw, C = wr.shape
    N = wh.shape[1]

    Mp = max(_round_up(M, 8), 8)
    cols = cols.astype(jnp.bfloat16)
    if Mp != M or Kw != Kx:
        cols = jnp.pad(cols, ((0, Mp - M), (0, Kw - Kx)))

    bm = tm if (Mp % tm == 0 and Mp > tm) else Mp
    grid = (Mp // bm,)

    out = pl.pallas_call(
        _rpn_fused_kernel,
        out_shape=jax.ShapeDtypeStruct((Mp, N), jnp.float32),
        grid_spec=pltpu.PrefetchScalarGridSpec(
            num_scalar_prefetch=0,
            grid=grid,
            in_specs=[
                pl.BlockSpec((bm, Kw), lambda i: (i, 0)),
                pl.BlockSpec((Kw, C), lambda i: (0, 0)),
                pl.BlockSpec((1, C), lambda i: (0, 0)),
                pl.BlockSpec((C, N), lambda i: (0, 0)),
                pl.BlockSpec((1, N), lambda i: (0, 0)),
            ],
            out_specs=pl.BlockSpec((bm, N), lambda i: (i, 0)),
        ),
        compiler_params=pltpu.CompilerParams(
            dimension_semantics=("parallel",)),
    )(cols, wr, br, wh, bh)
    return out[:M]


# --------------------- fused ROI box head (fc1->fc2->preds) -----------------
def _box_head_kernel(x_ref, w1_ref, b1_ref, w2_ref, b2_ref, wh_ref, bh_ref,
                     o_ref):
    h = jnp.dot(x_ref[...], w1_ref[...], preferred_element_type=jnp.float32)
    h = jnp.maximum(h + b1_ref[...], 0.0)
    h = jnp.dot(h.astype(jnp.bfloat16), w2_ref[...],
                preferred_element_type=jnp.float32)
    h = jnp.maximum(h + b2_ref[...], 0.0)
    o = jnp.dot(h.astype(jnp.bfloat16), wh_ref[...],
                preferred_element_type=jnp.float32)
    o_ref[...] = o + bh_ref[...]


def pallas_box_head(x, prep):
    M, Kx = x.shape
    w1, b1 = prep["fc1_w"], prep["fc1_b"]
    w2, b2 = prep["fc2_w"], prep["fc2_b"]
    wh, bh = prep["pred_w"], prep["pred_b"]
    K = w1.shape[0]
    R = w1.shape[1]
    N = wh.shape[1]

    Mp = max(_round_up(M, 8), 8)
    x = x.astype(jnp.bfloat16)
    if Mp != M or K != Kx:
        x = jnp.pad(x, ((0, Mp - M), (0, K - Kx)))

    out = pl.pallas_call(
        _box_head_kernel,
        out_shape=jax.ShapeDtypeStruct((Mp, N), jnp.float32),
        grid=(1,),
        in_specs=[
            pl.BlockSpec((Mp, K), lambda i: (0, 0)),
            pl.BlockSpec((K, R), lambda i: (0, 0)),
            pl.BlockSpec((1, R), lambda i: (0, 0)),
            pl.BlockSpec((R, R), lambda i: (0, 0)),
            pl.BlockSpec((1, R), lambda i: (0, 0)),
            pl.BlockSpec((R, N), lambda i: (0, 0)),
            pl.BlockSpec((1, N), lambda i: (0, 0)),
        ],
        out_specs=pl.BlockSpec((Mp, N), lambda i: (0, 0)),
    )(x, w1, b1, w2, b2, wh, bh)
    return out[:M]


# ------------------------- Pallas box-decode kernel -------------------------
def _decode_kernel(in_ref, o_ref):
    # rows 0..3: anchor cx, cy, w, h ; rows 4..7: deltas dx, dy, dw, dh
    a_cx = in_ref[0:1, :]
    a_cy = in_ref[1:2, :]
    a_w = in_ref[2:3, :]
    a_h = in_ref[3:4, :]
    dx = in_ref[4:5, :]
    dy = in_ref[5:6, :]
    dw = jnp.minimum(in_ref[6:7, :], BBOX_XFORM_CLIP)
    dh = jnp.minimum(in_ref[7:8, :], BBOX_XFORM_CLIP)

    cx = a_cx + dx * a_w
    cy = a_cy + dy * a_h
    w = a_w * jnp.exp(dw)
    h = a_h * jnp.exp(dh)

    clip_w = float(W - 1)
    clip_h = float(H - 1)
    x1 = jnp.clip(cx - 0.5 * w, 0.0, clip_w)
    y1 = jnp.clip(cy - 0.5 * h, 0.0, clip_h)
    x2 = jnp.clip(cx + 0.5 * w, 0.0, clip_w)
    y2 = jnp.clip(cy + 0.5 * h, 0.0, clip_h)
    z = jnp.zeros_like(x1)
    o_ref[...] = jnp.concatenate([x1, y1, x2, y2, z, z, z, z], axis=0)


def pallas_decode_boxes(anchors_cxcywh, deltas):
    """(P,4) anchors cxcywh + (P,4) deltas -> (P,4) clipped xyxy boxes."""
    P = anchors_cxcywh.shape[0]
    Pp = max(_round_up(P, 128), 128)
    packed = jnp.zeros((8, Pp), jnp.float32)
    packed = packed.at[0:4, :P].set(anchors_cxcywh.T.astype(jnp.float32))
    packed = packed.at[4:8, :P].set(deltas.T.astype(jnp.float32))

    out = pl.pallas_call(
        _decode_kernel,
        out_shape=jax.ShapeDtypeStruct((8, Pp), jnp.float32),
        grid=(1,),
        in_specs=[pl.BlockSpec((8, Pp), lambda i: (0, 0))],
        out_specs=pl.BlockSpec((8, Pp), lambda i: (0, 0)),
    )(packed)
    return out[:4, :P].T


# ------------------------------- conv helpers -------------------------------
def _im2col_3x3_nhwc(x_nhwc):
    """NHWC im2col: (N,H,W,C) -> (N*H*W, 9*C), channel-fast, no transposes."""
    n, h, w, c = x_nhwc.shape
    xp = jnp.pad(x_nhwc, ((0, 0), (1, 1), (1, 1), (0, 0)))
    cols = jnp.concatenate(
        [xp[:, kh:kh + h, kw:kw + w, :] for kh in range(3) for kw in range(3)],
        axis=-1)                                   # (N, H, W, 9*C)
    return cols.reshape(n * h * w, 9 * c)


# -------------------------------- parameters --------------------------------
def init_params(key):
    ks = jax.random.split(key, 16)
    s = 0.05

    def nrm(k, shape):
        return jax.random.normal(k, shape, jnp.float32) * s

    params = {
        # backbone
        "b1_w": nrm(ks[0], (C_FEAT, C_IN, 3, 3)), "b1_b": jnp.zeros((C_FEAT,)),
        "b2_w": nrm(ks[1], (C_FEAT, C_FEAT, 3, 3)), "b2_b": jnp.zeros((C_FEAT,)),
        # rpn head
        "rpn_w": nrm(ks[2], (C_FEAT, C_FEAT, 3, 3)), "rpn_b": jnp.zeros((C_FEAT,)),
        "rpn_cls_w": nrm(ks[3], (C_FEAT, NUM_ANCHORS)),
        "rpn_cls_b": jnp.zeros((NUM_ANCHORS,)),
        "rpn_box_w": nrm(ks[4], (C_FEAT, 4 * NUM_ANCHORS)),
        "rpn_box_b": jnp.zeros((4 * NUM_ANCHORS,)),
        # roi box head
        "fc1_w": nrm(ks[5], (C_FEAT, R_DIM)), "fc1_b": jnp.zeros((R_DIM,)),
        "fc2_w": nrm(ks[6], (R_DIM, R_DIM)), "fc2_b": jnp.zeros((R_DIM,)),
        "cls_w": nrm(ks[7], (R_DIM, NUM_CLASSES)), "cls_b": jnp.zeros((NUM_CLASSES,)),
        "box_w": nrm(ks[8], (R_DIM, NUM_CLASSES * 4)),
        "box_b": jnp.zeros((NUM_CLASSES * 4,)),
    }
    return params


def prepare_params(params):
    """One-time GEMM-ready weight layout: im2col ordering, bf16, K pre-padded,
    small heads concatenated + padded to a lane-dense N=128."""
    def conv_wm(w_oihw):
        co, ci, kh, kw = w_oihw.shape
        wm = w_oihw.transpose(2, 3, 1, 0).reshape(kh * kw * ci, co)
        kp = _round_up(kh * kw * ci, 128)
        wm = jnp.pad(wm, ((0, kp - kh * kw * ci), (0, 0)))
        return wm.astype(jnp.bfloat16)

    def bias_row(b):
        return b.reshape(1, -1).astype(jnp.float32)

    prep = {
        "b1_wm": conv_wm(params["b1_w"]), "b1_b": bias_row(params["b1_b"]),
        "b2_wm": conv_wm(params["b2_w"]), "b2_b": bias_row(params["b2_b"]),
        "rpn_wm": conv_wm(params["rpn_w"]), "rpn_b": bias_row(params["rpn_b"]),
        "fc1_w": params["fc1_w"].astype(jnp.bfloat16),
        "fc1_b": bias_row(params["fc1_b"]),
        "fc2_w": params["fc2_w"].astype(jnp.bfloat16),
        "fc2_b": bias_row(params["fc2_b"]),
    }

    # fused RPN objectness(3) + box(12) heads -> (C_FEAT, 15) padded to 128
    rh_w = jnp.concatenate([params["rpn_cls_w"], params["rpn_box_w"]], axis=1)
    rh_b = jnp.concatenate([params["rpn_cls_b"], params["rpn_box_b"]], axis=0)
    prep["rpn_head_w"] = (jnp.zeros((C_FEAT, HEAD_NP), jnp.bfloat16)
                          .at[:, :5 * NUM_ANCHORS].set(rh_w.astype(jnp.bfloat16)))
    prep["rpn_head_b"] = (jnp.zeros((1, HEAD_NP), jnp.float32)
                          .at[0, :5 * NUM_ANCHORS].set(rh_b))

    # fused detector cls(5) + box(20) predictors -> (R_DIM, 25) padded to 128
    ph_w = jnp.concatenate([params["cls_w"], params["box_w"]], axis=1)
    ph_b = jnp.concatenate([params["cls_b"], params["box_b"]], axis=0)
    npred = NUM_CLASSES * 5
    prep["pred_w"] = (jnp.zeros((R_DIM, HEAD_NP), jnp.bfloat16)
                      .at[:, :npred].set(ph_w.astype(jnp.bfloat16)))
    prep["pred_b"] = (jnp.zeros((1, HEAD_NP), jnp.float32)
                      .at[0, :npred].set(ph_b))
    return prep


def make_anchors():
    """Anchors (H*W*A, 4) in (cx, cy, w, h); flatten order matches (y, x, a)."""
    ys = jnp.arange(H, dtype=jnp.float32) + 0.5
    xs = jnp.arange(W, dtype=jnp.float32) + 0.5
    sizes = jnp.asarray(ANCHOR_SIZES, jnp.float32)
    cy = jnp.repeat(ys, W * NUM_ANCHORS)
    cx = jnp.tile(jnp.repeat(xs, NUM_ANCHORS), (H,))
    wh = jnp.tile(sizes, (H * W,))
    return jnp.stack([cx, cy, wh, wh], axis=1)


# ------------------------------ forward (eval) -------------------------------
def generalized_rcnn_forward(images_nchw, prep, anchors_flat):
    n = images_nchw.shape[0]
    x = jnp.transpose(images_nchw, (0, 2, 3, 1)).astype(jnp.float32)  # NHWC once

    # ---- backbone (2x 3x3 conv + ReLU as im2col GEMMs) ----
    f = pallas_linear(_im2col_3x3_nhwc(x), prep["b1_wm"], prep["b1_b"], relu=True)
    f = f.reshape(n, H, W, C_FEAT)
    f = pallas_linear(_im2col_3x3_nhwc(f), prep["b2_wm"], prep["b2_b"], relu=True)
    f = f.reshape(n, H, W, C_FEAT)

    # ---- RPN: fused 3x3 conv + objectness/box 1x1 heads (one kernel) ----
    rpn = pallas_rpn_head(_im2col_3x3_nhwc(f), prep["rpn_wm"], prep["rpn_b"],
                          prep["rpn_head_w"], prep["rpn_head_b"])   # (N*H*W, 128)
    rpn = rpn[:, :5 * NUM_ANCHORS].reshape(n, H * W, 5 * NUM_ANCHORS)
    obj_flat = rpn[..., :NUM_ANCHORS].reshape(n, H * W * NUM_ANCHORS)
    deltas_flat = rpn[..., NUM_ANCHORS:].reshape(n, H * W * NUM_ANCHORS, 4)

    # TODO(synk): per-level NMS has no clean Pallas equivalent; proposal
    # selection is plain top-k objectness (JAX glue).
    _, top_idx = jax.lax.top_k(obj_flat, NUM_PROPOSALS)            # (N, P)
    anc_sel = jnp.take(anchors_flat, top_idx, axis=0)              # (N, P, 4)
    dlt_sel = jnp.take_along_axis(deltas_flat, top_idx[..., None], axis=1)

    proposals = pallas_decode_boxes(
        anc_sel.reshape(-1, 4), dlt_sel.reshape(-1, 4)
    ).reshape(n, NUM_PROPOSALS, 4)                                 # clipped xyxy

    # ---- ROI heads ----
    # TODO(synk): ROIAlign bilinear sampling replaced by center-point feature
    # sampling (data-dependent gather stays in JAX glue).
    cx = jnp.clip((proposals[..., 0] + proposals[..., 2]) * 0.5, 0.0, W - 1)
    cy = jnp.clip((proposals[..., 1] + proposals[..., 3]) * 0.5, 0.0, H - 1)
    ix = jnp.round(cx).astype(jnp.int32)
    iy = jnp.round(cy).astype(jnp.int32)
    flat_idx = iy * W + ix                                         # (N, P)
    pooled = jnp.take_along_axis(
        f.reshape(n, H * W, C_FEAT), flat_idx[..., None], axis=1)  # (N, P, C)
    xr = pooled.reshape(n * NUM_PROPOSALS, C_FEAT)

    # fused fc1 -> fc2 -> cls/box predictors (one kernel)
    preds = pallas_box_head(xr, prep)                              # (N*P, 128)
    cls_logits = preds[:, :NUM_CLASSES]
    box_regs = preds[:, NUM_CLASSES:NUM_CLASSES + NUM_CLASSES * 4]

    probs = jax.nn.softmax(cls_logits, axis=-1)
    labels = jnp.argmax(probs[:, 1:], axis=-1) + 1                 # skip background
    scores = jnp.take_along_axis(probs, labels[:, None], axis=1)[:, 0]

    box_regs = box_regs.reshape(-1, NUM_CLASSES, 4)
    cls_deltas = jnp.take_along_axis(
        box_regs, labels[:, None, None], axis=1)[:, 0, :]          # (N*P, 4)

    p = proposals.reshape(-1, 4)
    pw = jnp.maximum(p[:, 2] - p[:, 0], 1e-6)
    ph = jnp.maximum(p[:, 3] - p[:, 1], 1e-6)
    pcx = (p[:, 0] + p[:, 2]) * 0.5
    pcy = (p[:, 1] + p[:, 3]) * 0.5
    prop_cxcywh = jnp.stack([pcx, pcy, pw, ph], axis=1)

    final_boxes = pallas_decode_boxes(prop_cxcywh, cls_deltas).reshape(
        n, NUM_PROPOSALS, 4)

    # TODO(synk): training-mode loss dict (RPN + detector losses, target
    # matching) is not implemented; this is the inference result path.
    return {
        "boxes": final_boxes,                        # (N, P, 4) xyxy, clipped
        "scores": scores.reshape(n, NUM_PROPOSALS),  # (N, P)
        "labels": labels.reshape(n, NUM_PROPOSALS),  # (N, P)
    }


# ----------------------------------- main ------------------------------------
if __name__ == "__main__":
    key = jax.random.PRNGKey(0)
    k_img, k_par = jax.random.split(key)

    images = jax.random.normal(k_img, (N_IMG, C_IN, H, W), jnp.float32)  # NCHW
    params = init_params(k_par)
    prep = prepare_params(params)
    anchors_flat = make_anchors()

    fwd = jax.jit(generalized_rcnn_forward)
    result = fwd(images, prep, anchors_flat)
    jax.block_until_ready(result["boxes"])
    jax.block_until_ready(result["scores"])
    jax.block_until_ready(result["labels"])

    assert result["boxes"].shape == (N_IMG, NUM_PROPOSALS, 4)
    assert result["scores"].shape == (N_IMG, NUM_PROPOSALS)
    assert result["labels"].shape == (N_IMG, NUM_PROPOSALS)
    print("KERNEL_OK")
</pallas_src>

<mosaic_0001>
module attributes {stable_mosaic.version = 11 : i64} {
  func.func @_linear_kernel(%arg0: i32, %arg1: memref<256x128xbf16, #tpu.memory_space<vmem>>, %arg2: memref<128x32xbf16, #tpu.memory_space<vmem>>, %arg3: memref<1x32xf32, #tpu.memory_space<vmem>>, %arg4: memref<256x32xf32, #tpu.memory_space<vmem>>) attributes {dimension_semantics = [#tpu.dimension_semantics<parallel>], iteration_bounds = array<i64: 2>, scalar_prefetch = 0 : i64, scratch_operands = 0 : i64, tpu.core_type = #tpu.core_type<tc>, window_params = [{transform_indices = @transform_0, window_bounds = array<i64: 256, 128>}, {pipeline_mode = #tpu.pipeline_mode<synchronous>, transform_indices = @transform_1, window_bounds = array<i64: 128, 32>}, {pipeline_mode = #tpu.pipeline_mode<synchronous>, transform_indices = @transform_2, window_bounds = array<i64: 1, 32>}, {transform_indices = @transform_3, window_bounds = array<i64: 256, 32>}]} {
    %c0 = arith.constant 0 : index
    %c0_0 = arith.constant 0 : index
    %0 = vector.load %arg1[%c0, %c0_0] : memref<256x128xbf16, #tpu.memory_space<vmem>>, vector<256x128xbf16>
    %c0_1 = arith.constant 0 : index
    %c0_2 = arith.constant 0 : index
    %1 = vector.load %arg2[%c0_1, %c0_2] : memref<128x32xbf16, #tpu.memory_space<vmem>>, vector<128x32xbf16>
    %cst = arith.constant dense<0.000000e+00> : vector<256x32xf32>
    %2 = tpu.matmul %0, %1, %cst {dimension_numbers = #tpu.dot_dimension_numbers<[1], [0], [0], [1], [0, 0, 1, 1], [], []>} : vector<256x128xbf16>, vector<128x32xbf16>, vector<256x32xf32> -> vector<256x32xf32>
    %c0_3 = arith.constant 0 : index
    %c0_4 = arith.constant 0 : index
    %3 = vector.load %arg3[%c0_3, %c0_4] : memref<1x32xf32, #tpu.memory_space<vmem>>, vector<1x32xf32>
    %4 = vector.broadcast %3 : vector<1x32xf32> to vector<256x32xf32>
    %5 = arith.addf %2, %4 : vector<256x32xf32>
    %cst_5 = arith.constant 0.000000e+00 : f32
    %6 = vector.broadcast %cst_5 : f32 to vector<256x32xf32>
    %7 = arith.maximumf %5, %6 : vector<256x32xf32>
    %c0_6 = arith.constant 0 : index
    %c0_7 = arith.constant 0 : index
    %8 = vector.load %arg4[%c0_6, %c0_7] : memref<256x32xf32, #tpu.memory_space<vmem>>, vector<256x32xf32>
    tpu.vector_store %arg4[%c0_6, %c0_7], %7 {strides = array<i32>} : memref<256x32xf32, #tpu.memory_space<vmem>>, vector<256x32xf32>,
    return
  }
  func.func @transform_0(%arg0: i32) -> (i32, i32) {
    %c0_i32 = arith.constant 0 : i32
    %c0_i32_0 = arith.constant 0 : i32
    return %arg0, %c0_i32 : i32, i32
  }
  func.func @transform_1(%arg0: i32) -> (i32, i32) {
    %c0_i32 = arith.constant 0 : i32
    %c0_i32_0 = arith.constant 0 : i32
    %c0_i32_1 = arith.constant 0 : i32
    return %c0_i32, %c0_i32_0 : i32, i32
  }
  func.func @transform_2(%arg0: i32) -> (i32, i32) {
    %c0_i32 = arith.constant 0 : i32
    %c0_i32_0 = arith.constant 0 : i32
    %c0_i32_1 = arith.constant 0 : i32
    return %c0_i32, %c0_i32_0 : i32, i32
  }
  func.func @transform_3(%arg0: i32) -> (i32, i32) {
    %c0_i32 = arith.constant 0 : i32
    %c0_i32_0 = arith.constant 0 : i32
    return %arg0, %c0_i32 : i32, i32
  }
}

module attributes {stable_mosaic.version = 11 : i64} {
  func.func @_rpn_fused_kernel(%arg0: i32, %arg1: memref<256x384xbf16, #tpu.memory_space<vmem>>, %arg2: memref<384x32xbf16, #tpu.memory_space<vmem>>, %arg3: memref<1x32xf32, #tpu.memory_space<vmem>>, %arg4: memref<32x128xbf16, #tpu.memory_space<vmem>>, %arg5: memref<1x128xf32, #tpu.memory_space<vmem>>, %arg6: memref<256x128xf32, #tpu.memory_space<vmem>>) attributes {dimension_semantics = [#tpu.dimension_semantics<parallel>], iteration_bounds = array<i64: 2>, scalar_prefetch = 0 : i64, scratch_operands = 0 : i64, tpu.core_type = #tpu.core_type<tc>, window_params = [{transform_indices = @transform_0, window_bounds = array<i64: 256, 384>}, {pipeline_mode = #tpu.pipeline_mode<synchronous>, transform_indices = @transform_1, window_bounds = array<i64: 384, 32>}, {pipeline_mode = #tpu.pipeline_mode<synchronous>, transform_indices = @transform_2, window_bounds = array<i64: 1, 32>}, {pipeline_mode = #tpu.pipeline_mode<synchronous>, transform_indices = @transform_3, window_bounds = array<i64: 32, 128>}, {pipeline_mode = #tpu.pipeline_mode<synchronous>, transform_indices = @transform_4, window_bounds = array<i64: 1, 128>}, {transform_indices = @transform_5, window_bounds = array<i64: 256, 128>}]} {
    %c0 = arith.constant 0 : index
    %c0_0 = arith.constant 0 : index
    %0 = vector.load %arg1[%c0, %c0_0] : memref<256x384xbf16, #tpu.memory_space<vmem>>, vector<256x384xbf16>
    %c0_1 = arith.constant 0 : index
    %c0_2 = arith.constant 0 : index
    %1 = vector.load %arg2[%c0_1, %c0_2] : memref<384x32xbf16, #tpu.memory_space<vmem>>, vector<384x32xbf16>
    %cst = arith.constant dense<0.000000e+00> : vector<256x32xf32>
    %2 = tpu.matmul %0, %1, %cst {dimension_numbers = #tpu.dot_dimension_numbers<[1], [0], [0], [1], [0, 0, 1, 1], [], []>} : vector<256x384xbf16>, vector<384x32xbf16>, vector<256x32xf32> -> vector<256x32xf32>
    %c0_3 = arith.constant 0 : index
    %c0_4 = arith.constant 0 : index
    %3 = vector.load %arg3[%c0_3, %c0_4] : memref<1x32xf32, #tpu.memory_space<vmem>>, vector<1x32xf32>
    %4 = vector.broadcast %3 : vector<1x32xf32> to vector<256x32xf32>
    %5 = arith.addf %2, %4 : vector<256x32xf32>
    %cst_5 = arith.constant 0.000000e+00 : f32
    %6 = vector.broadcast %cst_5 : f32 to vector<256x32xf32>
    %7 = arith.maximumf %5, %6 : vector<256x32xf32>
    %8 = arith.truncf %7 : vector<256x32xf32> to vector<256x32xbf16>
    %c0_6 = arith.constant 0 : index
    %c0_7 = arith.constant 0 : index
    %9 = vector.load %arg4[%c0_6, %c0_7] : memref<32x128xbf16, #tpu.memory_space<vmem>>, vector<32x128xbf16>
    %cst_8 = arith.constant dense<0.000000e+00> : vector<256x128xf32>
    %10 = tpu.matmul %8, %9, %cst_8 {dimension_numbers = #tpu.dot_dimension_numbers<[1], [0], [0], [1], [0, 0, 1, 1], [], []>} : vector<256x32xbf16>, vector<32x128xbf16>, vector<256x128xf32> -> vector<256x128xf32>
    %c0_9 = arith.constant 0 : index
    %c0_10 = arith.constant 0 : index
    %11 = vector.load %arg5[%c0_9, %c0_10] : memref<1x128xf32, #tpu.memory_space<vmem>>, vector<1x128xf32>
    %12 = vector.broadcast %11 : vector<1x128xf32> to vector<256x128xf32>
    %13 = arith.addf %10, %12 : vector<256x128xf32>
    %c0_11 = arith.constant 0 : index
    %c0_12 = arith.constant 0 : index
    %14 = vector.load %arg6[%c0_11, %c0_12] : memref<256x128xf32, #tpu.memory_space<vmem>>, vector<256x128xf32>
    tpu.vector_store %arg6[%c0_11, %c0_12], %13 {strides = array<i32>} : memref<256x128xf32, #tpu.memory_space<vmem>>, vector<256x128xf32>,
    return
  }
  func.func @transform_0(%arg0: i32) -> (i32, i32) {
    %c0_i32 = arith.constant 0 : i32
    %c0_i32_0 = arith.constant 0 : i32
    return %arg0, %c0_i32 : i32, i32
  }
  func.func @transform_1(%arg0: i32) -> (i32, i32) {
    %c0_i32 = arith.constant 0 : i32
    %c0_i32_0 = arith.constant 0 : i32
    %c0_i32_1 = arith.constant 0 : i32
    return %c0_i32, %c0_i32_0 : i32, i32
  }
  func.func @transform_2(%arg0: i32) -> (i32, i32) {
    %c0_i32 = arith.constant 0 : i32
    %c0_i32_0 = arith.constant 0 : i32
    %c0_i32_1 = arith.constant 0 : i32
    return %c0_i32, %c0_i32_0 : i32, i32
  }
  func.func @transform_3(%arg0: i32) -> (i32, i32) {
    %c0_i32 = arith.constant 0 : i32
    %c0_i32_0 = arith.constant 0 : i32
    %c0_i32_1 = arith.constant 0 : i32
    return %c0_i32, %c0_i32_0 : i32, i32
  }
  func.func @transform_4(%arg0: i32) -> (i32, i32) {
    %c0_i32 = arith.constant 0 : i32
    %c0_i32_0 = arith.constant 0 : i32
    %c0_i32_1 = arith.constant 0 : i32
    return %c0_i32, %c0_i32_0 : i32, i32
  }
  func.func @transform_5(%arg0: i32) -> (i32, i32) {
    %c0_i32 = arith.constant 0 : i32
    %c0_i32_0 = arith.constant 0 : i32
    return %arg0, %c0_i32 : i32, i32
  }
}

module attributes {stable_mosaic.version = 11 : i64} {
  func.func @_linear_kernel(%arg0: i32, %arg1: memref<256x384xbf16, #tpu.memory_space<vmem>>, %arg2: memref<384x32xbf16, #tpu.memory_space<vmem>>, %arg3: memref<1x32xf32, #tpu.memory_space<vmem>>, %arg4: memref<256x32xf32, #tpu.memory_space<vmem>>) attributes {dimension_semantics = [#tpu.dimension_semantics<parallel>], iteration_bounds = array<i64: 2>, scalar_prefetch = 0 : i64, scratch_operands = 0 : i64, tpu.core_type = #tpu.core_type<tc>, window_params = [{transform_indices = @transform_0, window_bounds = array<i64: 256, 384>}, {pipeline_mode = #tpu.pipeline_mode<synchronous>, transform_indices = @transform_1, window_bounds = array<i64: 384, 32>}, {pipeline_mode = #tpu.pipeline_mode<synchronous>, transform_indices = @transform_2, window_bounds = array<i64: 1, 32>}, {transform_indices = @transform_3, window_bounds = array<i64: 256, 32>}]} {
    %c0 = arith.constant 0 : index
    %c0_0 = arith.constant 0 : index
    %0 = vector.load %arg1[%c0, %c0_0] : memref<256x384xbf16, #tpu.memory_space<vmem>>, vector<256x384xbf16>
    %c0_1 = arith.constant 0 : index
    %c0_2 = arith.constant 0 : index
    %1 = vector.load %arg2[%c0_1, %c0_2] : memref<384x32xbf16, #tpu.memory_space<vmem>>, vector<384x32xbf16>
    %cst = arith.constant dense<0.000000e+00> : vector<256x32xf32>
    %2 = tpu.matmul %0, %1, %cst {dimension_numbers = #tpu.dot_dimension_numbers<[1], [0], [0], [1], [0, 0, 1, 1], [], []>} : vector<256x384xbf16>, vector<384x32xbf16>, vector<256x32xf32> -> vector<256x32xf32>
    %c0_3 = arith.constant 0 : index
    %c0_4 = arith.constant 0 : index
    %3 = vector.load %arg3[%c0_3, %c0_4] : memref<1x32xf32, #tpu.memory_space<vmem>>, vector<1x32xf32>
    %4 = vector.broadcast %3 : vector<1x32xf32> to vector<256x32xf32>
    %5 = arith.addf %2, %4 : vector<256x32xf32>
    %cst_5 = arith.constant 0.000000e+00 : f32
    %6 = vector.broadcast %cst_5 : f32 to vector<256x32xf32>
    %7 = arith.maximumf %5, %6 : vector<256x32xf32>
    %c0_6 = arith.constant 0 : index
    %c0_7 = arith.constant 0 : index
    %8 = vector.load %arg4[%c0_6, %c0_7] : memref<256x32xf32, #tpu.memory_space<vmem>>, vector<256x32xf32>
    tpu.vector_store %arg4[%c0_6, %c0_7], %7 {strides = array<i32>} : memref<256x32xf32, #tpu.memory_space<vmem>>, vector<256x32xf32>,
    return
  }
  func.func @transform_0(%arg0: i32) -> (i32, i32) {
    %c0_i32 = arith.constant 0 : i32
    %c0_i32_0 = arith.constant 0 : i32
    return %arg0, %c0_i32 : i32, i32
  }
  func.func @transform_1(%arg0: i32) -> (i32, i32) {
    %c0_i32 = arith.constant 0 : i32
    %c0_i32_0 = arith.constant 0 : i32
    %c0_i32_1 = arith.constant 0 : i32
    return %c0_i32, %c0_i32_0 : i32, i32
  }
  func.func @transform_2(%arg0: i32) -> (i32, i32) {
    %c0_i32 = arith.constant 0 : i32
    %c0_i32_0 = arith.constant 0 : i32
    %c0_i32_1 = arith.constant 0 : i32
    return %c0_i32, %c0_i32_0 : i32, i32
  }
  func.func @transform_3(%arg0: i32) -> (i32, i32) {
    %c0_i32 = arith.constant 0 : i32
    %c0_i32_0 = arith.constant 0 : i32
    return %arg0, %c0_i32 : i32, i32
  }
}

module attributes {stable_mosaic.version = 11 : i64} {
  func.func @_decode_kernel(%arg0: i32, %arg1: memref<8x128xf32, #tpu.memory_space<vmem>>, %arg2: memref<8x128xf32, #tpu.memory_space<vmem>>) attributes {dimension_semantics = [#tpu.dimension_semantics<arbitrary>], iteration_bounds = array<i64: 1>, scalar_prefetch = 0 : i64, scratch_operands = 0 : i64, tpu.core_type = #tpu.core_type<tc>, window_params = [{pipeline_mode = #tpu.pipeline_mode<synchronous>, transform_indices = @transform_0, window_bounds = array<i64: 8, 128>}, {pipeline_mode = #tpu.pipeline_mode<synchronous>, transform_indices = @transform_1, window_bounds = array<i64: 8, 128>}]} {
    %c0 = arith.constant 0 : index
    %c0_0 = arith.constant 0 : index
    %0 = vector.load %arg1[%c0, %c0_0] : memref<8x128xf32, #tpu.memory_space<vmem>>, vector<1x128xf32>
    %c1 = arith.constant 1 : index
    %c0_1 = arith.constant 0 : index
    %1 = vector.load %arg1[%c1, %c0_1] : memref<8x128xf32, #tpu.memory_space<vmem>>, vector<1x128xf32>
    %c2 = arith.constant 2 : index
    %c0_2 = arith.constant 0 : index
    %2 = vector.load %arg1[%c2, %c0_2] : memref<8x128xf32, #tpu.memory_space<vmem>>, vector<1x128xf32>
    %c3 = arith.constant 3 : index
    %c0_3 = arith.constant 0 : index
    %3 = vector.load %arg1[%c3, %c0_3] : memref<8x128xf32, #tpu.memory_space<vmem>>, vector<1x128xf32>
    %c4 = arith.constant 4 : index
    %c0_4 = arith.constant 0 : index
    %4 = vector.load %arg1[%c4, %c0_4] : memref<8x128xf32, #tpu.memory_space<vmem>>, vector<1x128xf32>
    %c5 = arith.constant 5 : index
    %c0_5 = arith.constant 0 : index
    %5 = vector.load %arg1[%c5, %c0_5] : memref<8x128xf32, #tpu.memory_space<vmem>>, vector<1x128xf32>
    %c6 = arith.constant 6 : index
    %c0_6 = arith.constant 0 : index
    %6 = vector.load %arg1[%c6, %c0_6] : memref<8x128xf32, #tpu.memory_space<vmem>>, vector<1x128xf32>
    %cst = arith.constant 4.13516665 : f32
    %7 = vector.broadcast %cst : f32 to vector<1x128xf32>
    %8 = arith.minimumf %6, %7 : vector<1x128xf32>
    %c7 = arith.constant 7 : index
    %c0_7 = arith.constant 0 : index
    %9 = vector.load %arg1[%c7, %c0_7] : memref<8x128xf32, #tpu.memory_space<vmem>>, vector<1x128xf32>
    %cst_8 = arith.constant 4.13516665 : f32
    %10 = vector.broadcast %cst_8 : f32 to vector<1x128xf32>
    %11 = arith.minimumf %9, %10 : vector<1x128xf32>
    %12 = arith.mulf %4, %2 : vector<1x128xf32>
    %13 = arith.addf %0, %12 : vector<1x128xf32>
    %14 = arith.mulf %5, %3 : vector<1x128xf32>
    %15 = arith.addf %1, %14 : vector<1x128xf32>
    %16 = math.exp %8 : vector<1x128xf32>
    %17 = arith.mulf %2, %16 : vector<1x128xf32>
    %18 = math.exp %11 : vector<1x128xf32>
    %19 = arith.mulf %3, %18 : vector<1x128xf32>
    %cst_9 = arith.constant 5.000000e-01 : f32
    %20 = vector.broadcast %cst_9 : f32 to vector<1x128xf32>
    %21 = arith.mulf %20, %17 : vector<1x128xf32>
    %22 = arith.subf %13, %21 : vector<1x128xf32>
    %cst_10 = arith.constant 0.000000e+00 : f32
    %cst_11 = arith.constant 1.500000e+01 : f32
    %23 = vector.broadcast %cst_10 : f32 to vector<1x128xf32>
    %24 = arith.maximumf %23, %22 : vector<1x128xf32>
    %25 = vector.broadcast %cst_11 : f32 to vector<1x128xf32>
    %26 = arith.minimumf %25, %24 : vector<1x128xf32>
    %cst_12 = arith.constant 5.000000e-01 : f32
    %27 = vector.broadcast %cst_12 : f32 to vector<1x128xf32>
    %28 = arith.mulf %27, %19 : vector<1x128xf32>
    %29 = arith.subf %15, %28 : vector<1x128xf32>
    %cst_13 = arith.constant 0.000000e+00 : f32
    %cst_14 = arith.constant 1.500000e+01 : f32
    %30 = vector.broadcast %cst_13 : f32 to vector<1x128xf32>
    %31 = arith.maximumf %30, %29 : vector<1x128xf32>
    %32 = vector.broadcast %cst_14 : f32 to vector<1x128xf32>
    %33 = arith.minimumf %32, %31 : vector<1x128xf32>
    %cst_15 = arith.constant 5.000000e-01 : f32
    %34 = vector.broadcast %cst_15 : f32 to vector<1x128xf32>
    %35 = arith.mulf %34, %17 : vector<1x128xf32>
    %36 = arith.addf %13, %35 : vector<1x128xf32>
    %cst_16 = arith.constant 0.000000e+00 : f32
    %cst_17 = arith.constant 1.500000e+01 : f32
    %37 = vector.broadcast %cst_16 : f32 to vector<1x128xf32>
    %38 = arith.maximumf %37, %36 : vector<1x128xf32>
    %39 = vector.broadcast %cst_17 : f32 to vector<1x128xf32>
    %40 = arith.minimumf %39, %38 : vector<1x128xf32>
    %cst_18 = arith.constant 5.000000e-01 : f32
    %41 = vector.broadcast %cst_18 : f32 to vector<1x128xf32>
    %42 = arith.mulf %41, %19 : vector<1x128xf32>
    %43 = arith.addf %15, %42 : vector<1x128xf32>
    %cst_19 = arith.constant 0.000000e+00 : f32
    %cst_20 = arith.constant 1.500000e+01 : f32
    %44 = vector.broadcast %cst_19 : f32 to vector<1x128xf32>
    %45 = arith.maximumf %44, %43 : vector<1x128xf32>
    %46 = vector.broadcast %cst_20 : f32 to vector<1x128xf32>
    %47 = arith.minimumf %46, %45 : vector<1x128xf32>
    %cst_21 = arith.constant 0.000000e+00 : f32
    %48 = vector.broadcast %cst_21 : f32 to vector<1x128xf32>
    %49 = tpu.concatenate %26, %33, %40, %47, %48, %48, %48, %48 in 0 : vector<1x128xf32>, vector<1x128xf32>, vector<1x128xf32>, vector<1x128xf32>, vector<1x128xf32>, vector<1x128xf32>, vector<1x128xf32>, vector<1x128xf32> -> vector<8x128xf32>
    %c0_22 = arith.constant 0 : index
    %c0_23 = arith.constant 0 : index
    %50 = vector.load %arg2[%c0_22, %c0_23] : memref<8x128xf32, #tpu.memory_space<vmem>>, vector<8x128xf32>
    tpu.vector_store %arg2[%c0_22, %c0_23], %49 {strides = array<i32>} : memref<8x128xf32, #tpu.memory_space<vmem>>, vector<8x128xf32>,
    return
  }
  func.func @transform_0(%arg0: i32) -> (i32, i32) {
    %c0_i32 = arith.constant 0 : i32
    %c0_i32_0 = arith.constant 0 : i32
    %c0_i32_1 = arith.constant 0 : i32
    return %c0_i32, %c0_i32_0 : i32, i32
  }
  func.func @transform_1(%arg0: i32) -> (i32, i32) {
    %c0_i32 = arith.constant 0 : i32
    %c0_i32_0 = arith.constant 0 : i32
    %c0_i32_1 = arith.constant 0 : i32
    return %c0_i32, %c0_i32_0 : i32, i32
  }
}

module attributes {stable_mosaic.version = 11 : i64} {
  func.func @_box_head_kernel(%arg0: i32, %arg1: memref<16x32xbf16, #tpu.memory_space<vmem>>, %arg2: memref<32x64xbf16, #tpu.memory_space<vmem>>, %arg3: memref<1x64xf32, #tpu.memory_space<vmem>>, %arg4: memref<64x64xbf16, #tpu.memory_space<vmem>>, %arg5: memref<1x64xf32, #tpu.memory_space<vmem>>, %arg6: memref<64x128xbf16, #tpu.memory_space<vmem>>, %arg7: memref<1x128xf32, #tpu.memory_space<vmem>>, %arg8: memref<16x128xf32, #tpu.memory_space<vmem>>) attributes {dimension_semantics = [#tpu.dimension_semantics<arbitrary>], iteration_bounds = array<i64: 1>, scalar_prefetch = 0 : i64, scratch_operands = 0 : i64, tpu.core_type = #tpu.core_type<tc>, window_params = [{pipeline_mode = #tpu.pipeline_mode<synchronous>, transform_indices = @transform_0, window_bounds = array<i64: 16, 32>}, {pipeline_mode = #tpu.pipeline_mode<synchronous>, transform_indices = @transform_1, window_bounds = array<i64: 32, 64>}, {pipeline_mode = #tpu.pipeline_mode<synchronous>, transform_indices = @transform_2, window_bounds = array<i64: 1, 64>}, {pipeline_mode = #tpu.pipeline_mode<synchronous>, transform_indices = @transform_3, window_bounds = array<i64: 64, 64>}, {pipeline_mode = #tpu.pipeline_mode<synchronous>, transform_indices = @transform_4, window_bounds = array<i64: 1, 64>}, {pipeline_mode = #tpu.pipeline_mode<synchronous>, transform_indices = @transform_5, window_bounds = array<i64: 64, 128>}, {pipeline_mode = #tpu.pipeline_mode<synchronous>, transform_indices = @transform_6, window_bounds = array<i64: 1, 128>}, {pipeline_mode = #tpu.pipeline_mode<synchronous>, transform_indices = @transform_7, window_bounds = array<i64: 16, 128>}]} {
    %c0 = arith.constant 0 : index
    %c0_0 = arith.constant 0 : index
    %0 = vector.load %arg1[%c0, %c0_0] : memref<16x32xbf16, #tpu.memory_space<vmem>>, vector<16x32xbf16>
    %c0_1 = arith.constant 0 : index
    %c0_2 = arith.constant 0 : index
    %1 = vector.load %arg2[%c0_1, %c0_2] : memref<32x64xbf16, #tpu.memory_space<vmem>>, vector<32x64xbf16>
    %cst = arith.constant dense<0.000000e+00> : vector<16x64xf32>
    %2 = tpu.matmul %0, %1, %cst {dimension_numbers = #tpu.dot_dimension_numbers<[1], [0], [0], [1], [0, 0, 1, 1], [], []>} : vector<16x32xbf16>, vector<32x64xbf16>, vector<16x64xf32> -> vector<16x64xf32>
    %c0_3 = arith.constant 0 : index
    %c0_4 = arith.constant 0 : index
    %3 = vector.load %arg3[%c0_3, %c0_4] : memref<1x64xf32, #tpu.memory_space<vmem>>, vector<1x64xf32>
    %4 = vector.broadcast %3 : vector<1x64xf32> to vector<16x64xf32>
    %5 = arith.addf %2, %4 : vector<16x64xf32>
    %cst_5 = arith.constant 0.000000e+00 : f32
    %6 = vector.broadcast %cst_5 : f32 to vector<16x64xf32>
    %7 = arith.maximumf %5, %6 : vector<16x64xf32>
    %8 = arith.truncf %7 : vector<16x64xf32> to vector<16x64xbf16>
    %c0_6 = arith.constant 0 : index
    %c0_7 = arith.constant 0 : index
    %9 = vector.load %arg4[%c0_6, %c0_7] : memref<64x64xbf16, #tpu.memory_space<vmem>>, vector<64x64xbf16>
    %cst_8 = arith.constant dense<0.000000e+00> : vector<16x64xf32>
    %10 = tpu.matmul %8, %9, %cst_8 {dimension_numbers = #tpu.dot_dimension_numbers<[1], [0], [0], [1], [0, 0, 1, 1], [], []>} : vector<16x64xbf16>, vector<64x64xbf16>, vector<16x64xf32> -> vector<16x64xf32>
    %c0_9 = arith.constant 0 : index
    %c0_10 = arith.constant 0 : index
    %11 = vector.load %arg5[%c0_9, %c0_10] : memref<1x64xf32, #tpu.memory_space<vmem>>, vector<1x64xf32>
    %12 = vector.broadcast %11 : vector<1x64xf32> to vector<16x64xf32>
    %13 = arith.addf %10, %12 : vector<16x64xf32>
    %cst_11 = arith.constant 0.000000e+00 : f32
    %14 = vector.broadcast %cst_11 : f32 to vector<16x64xf32>
    %15 = arith.maximumf %13, %14 : vector<16x64xf32>
    %16 = arith.truncf %15 : vector<16x64xf32> to vector<16x64xbf16>
    %c0_12 = arith.constant 0 : index
    %c0_13 = arith.constant 0 : index
    %17 = vector.load %arg6[%c0_12, %c0_13] : memref<64x128xbf16, #tpu.memory_space<vmem>>, vector<64x128xbf16>
    %cst_14 = arith.constant dense<0.000000e+00> : vector<16x128xf32>
    %18 = tpu.matmul %16, %17, %cst_14 {dimension_numbers = #tpu.dot_dimension_numbers<[1], [0], [0], [1], [0, 0, 1, 1], [], []>} : vector<16x64xbf16>, vector<64x128xbf16>, vector<16x128xf32> -> vector<16x128xf32>
    %c0_15 = arith.constant 0 : index
    %c0_16 = arith.constant 0 : index
    %19 = vector.load %arg7[%c0_15, %c0_16] : memref<1x128xf32, #tpu.memory_space<vmem>>, vector<1x128xf32>
    %20 = vector.broadcast %19 : vector<1x128xf32> to vector<16x128xf32>
    %21 = arith.addf %18, %20 : vector<16x128xf32>
    %c0_17 = arith.constant 0 : index
    %c0_18 = arith.constant 0 : index
    %22 = vector.load %arg8[%c0_17, %c0_18] : memref<16x128xf32, #tpu.memory_space<vmem>>, vector<16x128xf32>
    tpu.vector_store %arg8[%c0_17, %c0_18], %21 {strides = array<i32>} : memref<16x128xf32, #tpu.memory_space<vmem>>, vector<16x128xf32>,
    return
  }
  func.func @transform_0(%arg0: i32) -> (i32, i32) {
    %c0_i32 = arith.constant 0 : i32
    %c0_i32_0 = arith.constant 0 : i32
    %c0_i32_1 = arith.constant 0 : i32
    return %c0_i32, %c0_i32_0 : i32, i32
  }
  func.func @transform_1(%arg0: i32) -> (i32, i32) {
    %c0_i32 = arith.constant 0 : i32
    %c0_i32_0 = arith.constant 0 : i32
    %c0_i32_1 = arith.constant 0 : i32
    return %c0_i32, %c0_i32_0 : i32, i32
  }
  func.func @transform_2(%arg0: i32) -> (i32, i32) {
    %c0_i32 = arith.constant 0 : i32
    %c0_i32_0 = arith.constant 0 : i32
    %c0_i32_1 = arith.constant 0 : i32
    return %c0_i32, %c0_i32_0 : i32, i32
  }
  func.func @transform_3(%arg0: i32) -> (i32, i32) {
    %c0_i32 = arith.constant 0 : i32
    %c0_i32_0 = arith.constant 0 : i32
    %c0_i32_1 = arith.constant 0 : i32
    return %c0_i32, %c0_i32_0 : i32, i32
  }
  func.func @transform_4(%arg0: i32) -> (i32, i32) {
    %c0_i32 = arith.constant 0 : i32
    %c0_i32_0 = arith.constant 0 : i32
    %c0_i32_1 = arith.constant 0 : i32
    return %c0_i32, %c0_i32_0 : i32, i32
  }
  func.func @transform_5(%arg0: i32) -> (i32, i32) {
    %c0_i32 = arith.constant 0 : i32
    %c0_i32_0 = arith.constant 0 : i32
    %c0_i32_1 = arith.constant 0 : i32
    return %c0_i32, %c0_i32_0 : i32, i32
  }
  func.func @transform_6(%arg0: i32) -> (i32, i32) {
    %c0_i32 = arith.constant 0 : i32
    %c0_i32_0 = arith.constant 0 : i32
    %c0_i32_1 = arith.constant 0 : i32
    return %c0_i32, %c0_i32_0 : i32, i32
  }
  func.func @transform_7(%arg0: i32) -> (i32, i32) {
    %c0_i32 = arith.constant 0 : i32
    %c0_i32_0 = arith.constant 0 : i32
    %c0_i32_1 = arith.constant 0 : i32
    return %c0_i32, %c0_i32_0 : i32, i32
  }
}

</mosaic_0001>

<llo_original>
// kernel: generalized_rcnn_forward.6
$region0: #{generalized_rcnn_forward.6}
  #allocation0 [shape = 'u32[]', space=smem, size = 0x4, offset = 0x4, fixed_abs, tag = 'smem constant byte address 0x4 - core index']
  #allocation1 [shape = 'u32[144,128]{1,0:T(1,128)}', space=vmem, size = 0x12000, scoped, tag = 'internal scratch']
  %s0 = inlined_call_operand.vmem [shape: bf16[512,128], index: 0, kind: input, shape index: {}]
  %s1 = inlined_call_operand.vmem [shape: bf16[128,32], index: 1, kind: input, shape index: {}]
  %s2 = inlined_call_operand.vmem [shape: f32[1,32], index: 2, kind: input, shape index: {}]
  %s3 = inlined_call_operand.vmem [shape: f32[512,32], index: 3, kind: output, shape index: {}]
  %s4 = sld [smem:[#allocation0]]
  $region45: #{generalized_rcnn_forward.6} parent=0
    _
  %s6 = ssub.s32 1, %s4
  %s7 = scalar_select 0, %s6, %s4
  loop: start=0, step=1, limit=4
  $region2: #{generalized_rcnn_forward.6} parent=0 // loop_pre_header
    _
  $region3: #{generalized_rcnn_forward.6} parent=0 // loop_header
    %s9 = sphi 0, %s13
    %p10 = scmp.ge.s32.totalorder %s9, 4
    %s19 = sphi 0, %s21
    %s22 = sphi 0, %s19
    %s23 = sphi 0, %s22
    %s39 = sphi 0, %s23
    %s43 = sphi 0, %s43
    %s45 = sphi 0, %s43
    %s46 = sphi 0, %s45
    %s60 = sphi 0, %s46
    %s64 = sphi 0, %s64
    %s66 = sphi 0, %s64
    %s67 = sphi 0, %s66
    %s81 = sphi 0, %s67
    %s87 = sphi 0, %s89
    %s90 = sphi 0, %s87
    %s91 = sphi 0, %s90
    %s107 = sphi 0, %s91
  $region4: #{generalized_rcnn_forward.6} parent=0 // loop_header_branch
    %12 = sbr.rel (%p10) target = $region8
  $region5: #{generalized_rcnn_forward.6} parent=0 // loop_body
    %s14 = ssub.s32 %s9, 1
    %s15 = ssub.s32 %s9, 2
    %s16 = sadd.s32 %s9, 1
    %s17 = ssub.s32 %s9, %s16
    %p18 = scmp.eq.s32.totalorder %s17, 0
    %s20 = sadd.s32 %s19, 1
    %s21 = scalar_select %p18, %s19, %s20
    %p24 = pneg %p18
    %p25 = scmp.eq.s32.totalorder %s9, 1
    %p26 = por %p24, %p25
    %p27 = scmp.ne.s32.totalorder %s19, %s22
    %p28 = scmp.eq.s32.totalorder %s9, 0
    %p29 = por %p27, %p28
    %p30 = scmp.ne.s32.totalorder %s19, %s22
    %p31 = scmp.eq.s32.totalorder %s14, 1
    %p32 = por %p30, %p31
    %p33 = scmp.ne.s32.totalorder %s22, %s23
    %p34 = scmp.eq.s32.totalorder %s14, 0
    %p35 = por %p33, %p34
    %p36 = scmp.ne.s32.totalorder %s22, %s23
    %p37 = scmp.eq.s32.totalorder %s15, 1
    %p38 = por %p36, %p37
    %p40 = scmp.ne.s32.totalorder %s23, %s39
    %p41 = scmp.eq.s32.totalorder %s15, 0
    %p42 = por %p40, %p41
    %s44 = sadd.s32 %s43, 1
    %p47 = scmp.eq.s32.totalorder %s9, 1
    %p48 = scmp.ne.s32.totalorder %s43, %s45
    %p49 = scmp.eq.s32.totalorder %s9, 0
    %p50 = por %p48, %p49
    %p51 = scmp.ne.s32.totalorder %s43, %s45
    %p52 = scmp.eq.s32.totalorder %s14, 1
    %p53 = por %p51, %p52
    %p54 = scmp.ne.s32.totalorder %s45, %s46
    %p55 = scmp.eq.s32.totalorder %s14, 0
    %p56 = por %p54, %p55
    %p57 = scmp.ne.s32.totalorder %s45, %s46
    %p58 = scmp.eq.s32.totalorder %s15, 1
    %p59 = por %p57, %p58
    %p61 = scmp.ne.s32.totalorder %s46, %s60
    %p62 = scmp.eq.s32.totalorder %s15, 0
    %p63 = por %p61, %p62
    %s65 = sadd.s32 %s64, 1
    %p68 = scmp.eq.s32.totalorder %s9, 1
    %p69 = scmp.ne.s32.totalorder %s64, %s66
    %p70 = scmp.eq.s32.totalorder %s9, 0
    %p71 = por %p69, %p70
    %p72 = scmp.ne.s32.totalorder %s64, %s66
    %p73 = scmp.eq.s32.totalorder %s14, 1
    %p74 = por %p72, %p73
    %p75 = scmp.ne.s32.totalorder %s66, %s67
    %p76 = scmp.eq.s32.totalorder %s14, 0
    %p77 = por %p75, %p76
    %p78 = scmp.ne.s32.totalorder %s66, %s67
    %p79 = scmp.eq.s32.totalorder %s15, 1
    %p80 = por %p78, %p79
    %p82 = scmp.ne.s32.totalorder %s67, %s81
    %p83 = scmp.eq.s32.totalorder %s15, 0
    %p84 = por %p82, %p83
    %s85 = ssub.s32 %s9, %s16
    %p86 = scmp.eq.s32.totalorder %s85, 0
    %s88 = sadd.s32 %s87, 1
    %s89 = scalar_select %p86, %s87, %s88
    %p92 = pneg %p86
    %p93 = scmp.eq.s32.totalorder %s9, 1
    %p94 = por %p92, %p93
    %p95 = scmp.ne.s32.totalorder %s87, %s90
    %p96 = scmp.eq.s32.totalorder %s9, 0
    %p97 = por %p95, %p96
    %p98 = scmp.ne.s32.totalorder %s87, %s90
    %p99 = scmp.eq.s32.totalorder %s14, 1
    %p100 = por %p98, %p99
    %p101 = scmp.ne.s32.totalorder %s90, %s91
    %p102 = scmp.eq.s32.totalorder %s14, 0
    %p103 = por %p101, %p102
    %p104 = scmp.ne.s32.totalorder %s90, %s91
    %p105 = scmp.eq.s32.totalorder %s15, 1
    %p106 = por %p104, %p105
    %p108 = scmp.ne.s32.totalorder %s91, %s107
    %p109 = scmp.eq.s32.totalorder %s15, 0
    %p110 = por %p108, %p109
    %p111 = scmp.le.s32.totalorder 1, %s9
    %p112 = scmp.lt.s32.totalorder %s9, 3
    %p113 = pnand %p111, %p112
    %p114 = pneg %p113
    // Predicated region
    $region9: #{generalized_rcnn_forward.6} parent=5 // pred_check
      _
    $region10: #{generalized_rcnn_forward.6} parent=5 // pred_check_branch
      %116 = sbr.rel (%p113) target = $region12
    $region11: #{generalized_rcnn_forward.6} parent=5 // pred_region
      %s117 = ssub.s32 %s9, 1
      // Predicated region
      $region13: #{generalized_rcnn_forward.6} parent=11 // pred_check
        %p118 = pneg %p56
      $region14: #{generalized_rcnn_forward.6} parent=11 // pred_check_branch
        %120 = sbr.rel (%p118) target = $region16
      $region15: #{generalized_rcnn_forward.6} parent=11 // pred_region
        _
      $region16: #{generalized_rcnn_forward.6} parent=11 // pred_fallthru
        _
      // Predicated region
      $region17: #{generalized_rcnn_forward.6} parent=11 // pred_check
        %p121 = pneg %p77
      $region18: #{generalized_rcnn_forward.6} parent=11 // pred_check_branch
        %123 = sbr.rel (%p121) target = $region20
      $region19: #{generalized_rcnn_forward.6} parent=11 // pred_region
        _
      $region20: #{generalized_rcnn_forward.6} parent=11 // pred_fallthru
        _
    $region12: #{generalized_rcnn_forward.6} parent=5 // pred_fallthru
      _
    %p124 = scmp.lt.s32.totalorder %s9, 2
    // Predicated region
    $region21: #{generalized_rcnn_forward.6} parent=5 // pred_check
      %p125 = pneg %p124
    $region22: #{generalized_rcnn_forward.6} parent=5 // pred_check_branch
      %127 = sbr.rel (%p125) target = $region24
    $region23: #{generalized_rcnn_forward.6} parent=5 // pred_region
      // Predicated region
      $region25: #{generalized_rcnn_forward.6} parent=23 // pred_check
        %p128 = pneg %p29
      $region26: #{generalized_rcnn_forward.6} parent=23 // pred_check_branch
        %130 = sbr.rel (%p128) target = $region28
      $region27: #{generalized_rcnn_forward.6} parent=23 // pred_region
        %s131 = smul.u32 32, %s9
        %p132 = scmp.lt.s32.totalorder %s131, 63
        %s133 = scalar_select %p132, %s131, 63
        %s134 = smul.addr %s133, 4
        %s135 = scalar_lea.vmem %s0, %s134
        %s136 = smul.u32 32, %s9
      $region28: #{generalized_rcnn_forward.6} parent=23 // pred_fallthru
        _
    $region24: #{generalized_rcnn_forward.6} parent=5 // pred_fallthru
      _
    %p137 = scmp.le.s32.totalorder 1, %s9
    %p138 = scmp.lt.s32.totalorder %s9, 3
    %p139 = pnand %p137, %p138
    %p140 = pneg %p139
    // Predicated region
    $region29: #{generalized_rcnn_forward.6} parent=5 // pred_check
      _
    $region30: #{generalized_rcnn_forward.6} parent=5 // pred_check_branch
      %142 = sbr.rel (%p139) target = $region32
    $region31: #{generalized_rcnn_forward.6} parent=5 // pred_region
      %s143 = ssub.s32 %s9, 1
      %s144 = smul.u32 32, %s14
      %p145 = scmp.lt.s32.totalorder %s144, 63
      %s146 = scalar_select %p145, %s144, 63
      %s147 = smul.addr %s146, 4
      %s148 = scalar_lea.vmem %s0, %s147
      %p149 = pneg %p35
      %p150 = pneg %p32
      %p151 = pneg %p56
      %p152 = pneg %p53
      %p153 = pneg %p77
      %p154 = pneg %p74
      %p155 = pneg %p103
      %p156 = pneg %p100
      %s157 = smul.u32 32, %s14
      %p158 = scmp.lt.s32.totalorder %s157, 63
      %s159 = scalar_select %p158, %s157, 63
      %s160 = smul.addr %s159, 8
      %s161 = scalar_lea.vmem %s3, %s160
      %s162 = smul.u32 32, %s14
      %p163 = scmp.lt.s32.totalorder %s162, 63
      %s164 = scalar_select %p163, %s162, 63
      %s165 = smul.addr %s164, 4
      %s166 = scalar_lea.vmem %s0, %s165
      %s167 = smul.u32 32, %s14
      %s168 = smul.u32 32, %s14
      %p169 = scmp.lt.s32.totalorder %s168, 63
      %s170 = scalar_select %p169, %s168, 63
      %s171 = smul.addr %s170, 8
      %s172 = scalar_lea.vmem %s3, %s171
      %s173 = smul.u32 32, %s14
      %v175 = vld [vmem:[%s166] sm:$0xf]
      %v176 = vld [vmem:[%s166 + $0x4] sm:$0xf]
      %v177 = vld [vmem:[%s166 + $0x8] sm:$0xf]
      %v178 = vld [vmem:[%s166 + $0xc] sm:$0xf]
      %v179 = vld [vmem:[%s166 + $0x10] sm:$0xf]
      %v180 = vld [vmem:[%s166 + $0x14] sm:$0xf]
      %v181 = vld [vmem:[%s166 + $0x18] sm:$0xf]
      %v182 = vld [vmem:[%s166 + $0x1c] sm:$0xf]
      %v183 = vld [vmem:[%s166 + $0x20] sm:$0xf]
      %v184 = vld [vmem:[%s166 + $0x24] sm:$0xf]
      %v185 = vld [vmem:[%s166 + $0x28] sm:$0xf]
      %v186 = vld [vmem:[%s166 + $0x2c] sm:$0xf]
      %v187 = vld [vmem:[%s166 + $0x30] sm:$0xf]
      %v188 = vld [vmem:[%s166 + $0x34] sm:$0xf]
      %v189 = vld [vmem:[%s166 + $0x38] sm:$0xf]
      %v190 = vld [vmem:[%s166 + $0x3c] sm:$0xf]
      %v191 = vld [vmem:[%s166 + $0x40] sm:$0xf]
      %v192 = vld [vmem:[%s166 + $0x44] sm:$0xf]
      %v193 = vld [vmem:[%s166 + $0x48] sm:$0xf]
      %v194 = vld [vmem:[%s166 + $0x4c] sm:$0xf]
      %v195 = vld [vmem:[%s166 + $0x50] sm:$0xf]
      %v196 = vld [vmem:[%s166 + $0x54] sm:$0xf]
      %v197 = vld [vmem:[%s166 + $0x58] sm:$0xf]
      %v198 = vld [vmem:[%s166 + $0x5c] sm:$0xf]
      %v199 = vld [vmem:[%s166 + $0x60] sm:$0xf]
      %v200 = vld [vmem:[%s166 + $0x64] sm:$0xf]
      %v201 = vld [vmem:[%s166 + $0x68] sm:$0xf]
      %v202 = vld [vmem:[%s166 + $0x6c] sm:$0xf]
      %v203 = vld [vmem:[%s166 + $0x70] sm:$0xf]
      %v204 = vld [vmem:[%s166 + $0x74] sm:$0xf]
      %v205 = vld [vmem:[%s166 + $0x78] sm:$0xf]
      %v206 = vld [vmem:[%s166 + $0x7c] sm:$0xf]
      %v207 = vld [vmem:[%s1] sm:$0xf]
      %v208 = vld [vmem:[%s1 + $0x4] sm:$0xf]
      %v209 = vld [vmem:[%s1 + $0x8] sm:$0xf]
      %v210 = vld [vmem:[%s1 + $0xc] sm:$0xf]
      %v211 = vld [vmem:[%s1 + $0x10] sm:$0xf]
      %v212 = vld [vmem:[%s1 + $0x14] sm:$0xf]
      %v213 = vld [vmem:[%s1 + $0x18] sm:$0xf]
      %v214 = vld [vmem:[%s1 + $0x1c] sm:$0xf]
      %v215 = vld [vmem:[%s1 + $0x20] sm:$0xf]
      %v216 = vld [vmem:[%s1 + $0x24] sm:$0xf]
      %v217 = vld [vmem:[%s1 + $0x28] sm:$0xf]
      %v218 = vld [vmem:[%s1 + $0x2c] sm:$0xf]
      %v219 = vld [vmem:[%s1 + $0x30] sm:$0xf]
      %v220 = vld [vmem:[%s1 + $0x34] sm:$0xf]
      %v221 = vld [vmem:[%s1 + $0x38] sm:$0xf]
      %v222 = vld [vmem:[%s1 + $0x3c] sm:$0xf]
      %v223 = vld [vmem:[%s2] sm:$0x1]
      %v225 = vlaneseq
      %v226 = vshrl.u32 %v225, 7
      %v227 = vsub.s32 0, %v226
      %v228 = vrot.slane %v223, %v227
      %v262 = vunpack.c.l.b16 %v175
      %v263 = vunpack.c.l.b16 %v176
      %v264 = vunpack.c.l.b16 %v177
      %v265 = vunpack.c.l.b16 %v178
      %v266 = vunpack.c.l.b16 %v179
      %v267 = vunpack.c.l.b16 %v180
      %v268 = vunpack.c.l.b16 %v181
      %v269 = vunpack.c.l.b16 %v182
      %v270 = vunpack.c.l.b16 %v183
      %v271 = vunpack.c.l.b16 %v184
      %v272 = vunpack.c.l.b16 %v185
      %v273 = vunpack.c.l.b16 %v186
      %v274 = vunpack.c.l.b16 %v187
      %v275 = vunpack.c.l.b16 %v188
      %v276 = vunpack.c.l.b16 %v189
      %v277 = vunpack.c.l.b16 %v190
      %v278 = vunpack.c.l.b16 %v191
      %v279 = vunpack.c.l.b16 %v192
      %v280 = vunpack.c.l.b16 %v193
      %v281 = vunpack.c.l.b16 %v194
      %v282 = vunpack.c.l.b16 %v195
      %v283 = vunpack.c.l.b16 %v196
      %v284 = vunpack.c.l.b16 %v197
      %v285 = vunpack.c.l.b16 %v198
      %v286 = vunpack.c.l.b16 %v199
      %v287 = vunpack.c.l.b16 %v200
      %v288 = vunpack.c.l.b16 %v201
      %v289 = vunpack.c.l.b16 %v202
      %v290 = vunpack.c.l.b16 %v203
      %v291 = vunpack.c.l.b16 %v204
      %v292 = vunpack.c.l.b16 %v205
      %v293 = vunpack.c.l.b16 %v206
      %v294 = vpack.c.b16 %v263, %v262
      %v295 = vpack.c.b16 %v265, %v264
      %v296 = vpack.c.b16 %v267, %v266
      %v297 = vpack.c.b16 %v269, %v268
      %v298 = vpack.c.b16 %v271, %v270
      %v299 = vpack.c.b16 %v273, %v272
      %v300 = vpack.c.b16 %v275, %v274
      %v301 = vpack.c.b16 %v277, %v276
      %v302 = vpack.c.b16 %v279, %v278
      %v303 = vpack.c.b16 %v281, %v280
      %v304 = vpack.c.b16 %v283, %v282
      %v305 = vpack.c.b16 %v285, %v284
      %v306 = vpack.c.b16 %v287, %v286
      %v307 = vpack.c.b16 %v289, %v288
      %v308 = vpack.c.b16 %v291, %v290
      %v309 = vpack.c.b16 %v293, %v292
      %v342 = vunpack.c.l.b16 %v207
      %v343 = vunpack.c.l.b16 %v208
      %v344 = vunpack.c.l.b16 %v209
      %v345 = vunpack.c.l.b16 %v210
      %v346 = vunpack.c.l.b16 %v211
      %v347 = vunpack.c.l.b16 %v212
      %v348 = vunpack.c.l.b16 %v213
      %v349 = vunpack.c.l.b16 %v214
      %v350 = vunpack.c.l.b16 %v215
      %v351 = vunpack.c.l.b16 %v216
      %v352 = vunpack.c.l.b16 %v217
      %v353 = vunpack.c.l.b16 %v218
      %v354 = vunpack.c.l.b16 %v219
      %v355 = vunpack.c.l.b16 %v220
      %v356 = vunpack.c.l.b16 %v221
      %v357 = vunpack.c.l.b16 %v222
      %v358 = vpack.c.b16 %v343, %v342
      %v359 = vpack.c.b16 %v345, %v344
      %v360 = vpack.c.b16 %v347, %v346
      %v361 = vpack.c.b16 %v349, %v348
      %v362 = vpack.c.b16 %v351, %v350
      %v363 = vpack.c.b16 %v353, %v352
      %v364 = vpack.c.b16 %v355, %v354
      %v365 = vpack.c.b16 %v357, %v356
      %374 = vmatprep.subr.bf16.mxu0 0
      %375 = vmatpush1.bf16.msra.mxu0 %v358
      %376 = vmatprep.subr.bf16.mxu0 0
      %377 = vmatpush1.bf16.msra.mxu0 %v359
      %378 = vmatprep.subr.bf16.mxu0 0
      %379 = vmatpush1.bf16.msra.mxu0 %v360
      %380 = vmatprep.subr.bf16.mxu0 0
      %381 = vmatpush1.bf16.msra.mxu0 %v361
      %382 = vmatprep.subr.bf16.mxu0 0
      %383 = vmatpush1.bf16.msra.mxu0 %v362
      %384 = vmatprep.subr.bf16.mxu0 0
      %385 = vmatpush1.bf16.msra.mxu0 %v363
      %386 = vmatprep.subr.bf16.mxu0 0
      %387 = vmatpush1.bf16.msra.mxu0 %v364
      %388 = vmatprep.subr.bf16.mxu0 0
      %389 = vmatpush1.bf16.msra.mxu0 %v365
      %390 = vmatprep.subr.bf16.mxu0 0
      %391 = vmatpush1.bf16.msra.mxu0 0
      %392 = vmatprep.subr.bf16.mxu0 0
      %393 = vmatpush1.bf16.msra.mxu0 0
      %394 = vmatprep.subr.bf16.mxu0 0
      %395 = vmatpush1.bf16.msra.mxu0 0
      %396 = vmatprep.subr.bf16.mxu0 0
      %397 = vmatpush1.bf16.msra.mxu0 0
      %398 = vmatprep.subr.bf16.mxu0 0
      %399 = vmatpush1.bf16.msra.mxu0 0
      %400 = vmatprep.subr.bf16.mxu0 0
      %401 = vmatpush1.bf16.msra.mxu0 0
      %402 = vmatprep.subr.bf16.mxu0 0
      %403 = vmatpush1.bf16.msra.mxu0 0
      %404 = vmatprep.subr.bf16.mxu0 0
      %405 = vmatpush1.bf16.msra.mxu0 0
      %406 = vmatprep.mubr.bf16.mxu0 0
      %407 = vmatmul.mubr.bf16.gmra.mrb[0].mxu0 %v294
      %v408 = vpop.f32.mrb[0].mxu0
      %v409 = vadd.f32 %v228, %v408
      %v410 = vpop.f32.mrb[0].mxu0
      %v411 = vpop.f32.mrb[0].mxu0
      %v412 = vadd.f32 %v228, %v411
      %v413 = vpop.f32.mrb[0].mxu0
      %414 = vmatprep.mubr.bf16.mxu0 0
      %415 = vmatmul.mubr.bf16.gmra.mrb[0].mxu0 %v295
      %v416 = vpop.f32.mrb[0].mxu0
      %v417 = vadd.f32 %v228, %v416
      %v418 = vpop.f32.mrb[0].mxu0
      %v419 = vpop.f32.mrb[0].mxu0
      %v420 = vadd.f32 %v228, %v419
      %v421 = vpop.f32.mrb[0].mxu0
      %422 = vmatprep.mubr.bf16.mxu0 0
      %423 = vmatmul.mubr.bf16.gmra.mrb[0].mxu0 %v296
      %v424 = vpop.f32.mrb[0].mxu0
      %v425 = vadd.f32 %v228, %v424
      %v426 = vpop.f32.mrb[0].mxu0
      %v427 = vpop.f32.mrb[0].mxu0
      %v428 = vadd.f32 %v228, %v427
      %v429 = vpop.f32.mrb[0].mxu0
      %430 = vmatprep.mubr.bf16.mxu0 0
      %431 = vmatmul.mubr.bf16.gmra.mrb[0].mxu0 %v297
      %v432 = vpop.f32.mrb[0].mxu0
      %v433 = vadd.f32 %v228, %v432
      %v434 = vpop.f32.mrb[0].mxu0
      %v435 = vpop.f32.mrb[0].mxu0
      %v436 = vadd.f32 %v228, %v435
      %v437 = vpop.f32.mrb[0].mxu0
      %438 = vmatprep.mubr.bf16.mxu0 0
      %439 = vmatmul.mubr.bf16.gmra.mrb[0].mxu0 %v298
      %v440 = vpop.f32.mrb[0].mxu0
      %v441 = vadd.f32 %v228, %v440
      %v442 = vpop.f32.mrb[0].mxu0
      %v443 = vpop.f32.mrb[0].mxu0
      %v444 = vadd.f32 %v228, %v443
      %v445 = vpop.f32.mrb[0].mxu0
      %446 = vmatprep.mubr.bf16.mxu0 0
      %447 = vmatmul.mubr.bf16.gmra.mrb[0].mxu0 %v299
      %v448 = vpop.f32.mrb[0].mxu0
      %v449 = vadd.f32 %v228, %v448
      %v450 = vpop.f32.mrb[0].mxu0
      %v451 = vpop.f32.mrb[0].mxu0
      %v452 = vadd.f32 %v228, %v451
      %v453 = vpop.f32.mrb[0].mxu0
      %454 = vmatprep.mubr.bf16.mxu0 0
      %455 = vmatmul.mubr.bf16.gmra.mrb[0].mxu0 %v300
      %v456 = vpop.f32.mrb[0].mxu0
      %v457 = vadd.f32 %v228, %v456
      %v458 = vpop.f32.mrb[0].mxu0
      %v459 = vpop.f32.mrb[0].mxu0
      %v460 = vadd.f32 %v228, %v459
      %v461 = vpop.f32.mrb[0].mxu0
      %462 = vmatprep.mubr.bf16.mxu0 0
      %463 = vmatmul.mubr.bf16.gmra.mrb[0].mxu0 %v301
      %v464 = vpop.f32.mrb[0].mxu0
      %v465 = vadd.f32 %v228, %v464
      %v466 = vpop.f32.mrb[0].mxu0
      %v467 = vpop.f32.mrb[0].mxu0
      %v468 = vadd.f32 %v228, %v467
      %v469 = vpop.f32.mrb[0].mxu0
      %470 = vmatprep.mubr.bf16.mxu0 0
      %471 = vmatmul.mubr.bf16.gmra.mrb[0].mxu0 %v302
      %v472 = vpop.f32.mrb[0].mxu0
      %v473 = vadd.f32 %v228, %v472
      %v474 = vpop.f32.mrb[0].mxu0
      %v475 = vpop.f32.mrb[0].mxu0
      %v476 = vadd.f32 %v228, %v475
      %v477 = vpop.f32.mrb[0].mxu0
      %478 = vmatprep.mubr.bf16.mxu0 0
      %479 = vmatmul.mubr.bf16.gmra.mrb[0].mxu0 %v303
      %v480 = vpop.f32.mrb[0].mxu0
      %v481 = vadd.f32 %v228, %v480
      %v482 = vpop.f32.mrb[0].mxu0
      %v483 = vpop.f32.mrb[0].mxu0
      %v484 = vadd.f32 %v228, %v483
      %v485 = vpop.f32.mrb[0].mxu0
      %486 = vmatprep.mubr.bf16.mxu0 0
      %487 = vmatmul.mubr.bf16.gmra.mrb[0].mxu0 %v304
      %v488 = vpop.f32.mrb[0].mxu0
      %v489 = vadd.f32 %v228, %v488
      %v490 = vpop.f32.mrb[0].mxu0
      %v491 = vpop.f32.mrb[0].mxu0
      %v492 = vadd.f32 %v228, %v491
      %v493 = vpop.f32.mrb[0].mxu0
      %494 = vmatprep.mubr.bf16.mxu0 0
      %495 = vmatmul.mubr.bf16.gmra.mrb[0].mxu0 %v305
      %v496 = vpop.f32.mrb[0].mxu0
      %v497 = vadd.f32 %v228, %v496
      %v498 = vpop.f32.mrb[0].mxu0
      %v499 = vpop.f32.mrb[0].mxu0
      %v500 = vadd.f32 %v228, %v499
      %v501 = vpop.f32.mrb[0].mxu0
      %502 = vmatprep.mubr.bf16.mxu0 0
      %503 = vmatmul.mubr.bf16.gmra.mrb[0].mxu0 %v306
      %v504 = vpop.f32.mrb[0].mxu0
      %v505 = vadd.f32 %v228, %v504
      %v506 = vpop.f32.mrb[0].mxu0
      %v507 = vpop.f32.mrb[0].mxu0
      %v508 = vadd.f32 %v228, %v507
      %v509 = vpop.f32.mrb[0].mxu0
      %510 = vmatprep.mubr.bf16.mxu0 0
      %511 = vmatmul.mubr.bf16.gmra.mrb[0].mxu0 %v307
      %v512 = vpop.f32.mrb[0].mxu0
      %v513 = vadd.f32 %v228, %v512
      %v514 = vpop.f32.mrb[0].mxu0
      %v515 = vpop.f32.mrb[0].mxu0
      %v516 = vadd.f32 %v228, %v515
      %v517 = vpop.f32.mrb[0].mxu0
      %518 = vmatprep.mubr.bf16.mxu0 0
      %519 = vmatmul.mubr.bf16.gmra.mrb[0].mxu0 %v308
      %v520 = vpop.f32.mrb[0].mxu0
      %v521 = vadd.f32 %v228, %v520
      %v522 = vpop.f32.mrb[0].mxu0
      %v523 = vpop.f32.mrb[0].mxu0
      %v524 = vadd.f32 %v228, %v523
      %v525 = vpop.f32.mrb[0].mxu0
      %526 = vmatprep.mubr.bf16.mxu0 0
      %527 = vmatmul.mubr.bf16.gmra.mrb[0].mxu0 %v309
      %v528 = vpop.f32.mrb[0].mxu0
      %v529 = vadd.f32 %v228, %v528
      %v530 = vpop.f32.mrb[0].mxu0
      %v531 = vpop.f32.mrb[0].mxu0
      %v532 = vadd.f32 %v228, %v531
      %v533 = vpop.f32.mrb[0].mxu0
      %534 = vdwg.mxu0
      %v535 = vmax.f32 %v409, 0.0
      %v536 = vmax.f32 %v412, 0.0
      %v537 = vmax.f32 %v417, 0.0
      %v538 = vmax.f32 %v420, 0.0
      %v539 = vmax.f32 %v425, 0.0
      %v540 = vmax.f32 %v428, 0.0
      %v541 = vmax.f32 %v433, 0.0
      %v542 = vmax.f32 %v436, 0.0
      %v543 = vmax.f32 %v441, 0.0
      %v544 = vmax.f32 %v444, 0.0
      %v545 = vmax.f32 %v449, 0.0
      %v546 = vmax.f32 %v452, 0.0
      %v547 = vmax.f32 %v457, 0.0
      %v548 = vmax.f32 %v460, 0.0
      %v549 = vmax.f32 %v465, 0.0
      %v550 = vmax.f32 %v468, 0.0
      %v551 = vmax.f32 %v473, 0.0
      %v552 = vmax.f32 %v476, 0.0
      %v553 = vmax.f32 %v481, 0.0
      %v554 = vmax.f32 %v484, 0.0
      %v555 = vmax.f32 %v489, 0.0
      %v556 = vmax.f32 %v492, 0.0
      %v557 = vmax.f32 %v497, 0.0
      %v558 = vmax.f32 %v500, 0.0
      %v559 = vmax.f32 %v505, 0.0
      %v560 = vmax.f32 %v508, 0.0
      %v561 = vmax.f32 %v513, 0.0
      %v562 = vmax.f32 %v516, 0.0
      %v563 = vmax.f32 %v521, 0.0
      %v564 = vmax.f32 %v524, 0.0
      %v565 = vmax.f32 %v529, 0.0
      %v566 = vmax.f32 %v532, 0.0
      %vm567 = vcmask 261120
      %568 = vst.msk [vmem:[%s172] sm:$0xff] %vm567, %v535
      %569 = vst.msk [vmem:[%s172 + $0x8] sm:$0xff] %vm567, %v536
      %570 = vst.msk [vmem:[%s172 + $0x10] sm:$0xff] %vm567, %v537
      %571 = vst.msk [vmem:[%s172 + $0x18] sm:$0xff] %vm567, %v538
      %572 = vst.msk [vmem:[%s172 + $0x20] sm:$0xff] %vm567, %v539
      %573 = vst.msk [vmem:[%s172 + $0x28] sm:$0xff] %vm567, %v540
      %574 = vst.msk [vmem:[%s172 + $0x30] sm:$0xff] %vm567, %v541
      %575 = vst.msk [vmem:[%s172 + $0x38] sm:$0xff] %vm567, %v542
      %576 = vst.msk [vmem:[%s172 + $0x40] sm:$0xff] %vm567, %v543
      %577 = vst.msk [vmem:[%s172 + $0x48] sm:$0xff] %vm567, %v544
      %578 = vst.msk [vmem:[%s172 + $0x50] sm:$0xff] %vm567, %v545
      %579 = vst.msk [vmem:[%s172 + $0x58] sm:$0xff] %vm567, %v546
      %580 = vst.msk [vmem:[%s172 + $0x60] sm:$0xff] %vm567, %v547
      %581 = vst.msk [vmem:[%s172 + $0x68] sm:$0xff] %vm567, %v548
      %582 = vst.msk [vmem:[%s172 + $0x70] sm:$0xff] %vm567, %v549
      %583 = vst.msk [vmem:[%s172 + $0x78] sm:$0xff] %vm567, %v550
      %584 = vst.msk [vmem:[%s172 + $0x80] sm:$0xff] %vm567, %v551
      %585 = vst.msk [vmem:[%s172 + $0x88] sm:$0xff] %vm567, %v552
      %586 = vst.msk [vmem:[%s172 + $0x90] sm:$0xff] %vm567, %v553
      %587 = vst.msk [vmem:[%s172 + $0x98] sm:$0xff] %vm567, %v554
      %588 = vst.msk [vmem:[%s172 + $0xa0] sm:$0xff] %vm567, %v555
      %589 = vst.msk [vmem:[%s172 + $0xa8] sm:$0xff] %vm567, %v556
      %590 = vst.msk [vmem:[%s172 + $0xb0] sm:$0xff] %vm567, %v557
      %591 = vst.msk [vmem:[%s172 + $0xb8] sm:$0xff] %vm567, %v558
      %592 = vst.msk [vmem:[%s172 + $0xc0] sm:$0xff] %vm567, %v559
      %593 = vst.msk [vmem:[%s172 + $0xc8] sm:$0xff] %vm567, %v560
      %594 = vst.msk [vmem:[%s172 + $0xd0] sm:$0xff] %vm567, %v561
      %595 = vst.msk [vmem:[%s172 + $0xd8] sm:$0xff] %vm567, %v562
      %596 = vst.msk [vmem:[%s172 + $0xe0] sm:$0xff] %vm567, %v563
      %597 = vst.msk [vmem:[%s172 + $0xe8] sm:$0xff] %vm567, %v564
      %598 = vst.msk [vmem:[%s172 + $0xf0] sm:$0xff] %vm567, %v565
      %599 = vst.msk [vmem:[%s172 + $0xf8] sm:$0xff] %vm567, %v566
      %s600 = smul.u32 32, %s14
      %p601 = scmp.lt.s32.totalorder %s600, 63
      %s602 = scalar_select %p601, %s600, 63
      %s603 = smul.addr %s602, 8
      %s604 = scalar_lea.vmem %s3, %s603
      // Predicated region
      $region33: #{generalized_rcnn_forward.6} parent=31 // pred_check
        %p605 = pneg %p100
      $region34: #{generalized_rcnn_forward.6} parent=31 // pred_check_branch
        %607 = sbr.rel (%p605) target = $region36
      $region35: #{generalized_rcnn_forward.6} parent=31 // pred_region
        %s608 = smul.u32 32, %s14
      $region36: #{generalized_rcnn_forward.6} parent=31 // pred_fallthru
        _
    $region32: #{generalized_rcnn_forward.6} parent=5 // pred_fallthru
      _
    %p609 = scmp.le.s32.totalorder 2, %s9
    // Predicated region
    $region37: #{generalized_rcnn_forward.6} parent=5 // pred_check
      %p610 = pneg %p609
    $region38: #{generalized_rcnn_forward.6} parent=5 // pred_check_branch
      %612 = sbr.rel (%p610) target = $region40
    $region39: #{generalized_rcnn_forward.6} parent=5 // pred_region
      %s613 = ssub.s32 %s9, 2
      // Predicated region
      $region41: #{generalized_rcnn_forward.6} parent=39 // pred_check
        %p614 = pneg %p106
      $region42: #{generalized_rcnn_forward.6} parent=39 // pred_check_branch
        %616 = sbr.rel (%p614) target = $region44
      $region43: #{generalized_rcnn_forward.6} parent=39 // pred_region
        %s617 = smul.u32 32, %s15
        %p618 = scmp.lt.s32.totalorder %s617, 63
        %s619 = scalar_select %p618, %s617, 63
        %s620 = smul.addr %s619, 8
        %s621 = scalar_lea.vmem %s3, %s620
      $region44: #{generalized_rcnn_forward.6} parent=39 // pred_fallthru
        _
    $region40: #{generalized_rcnn_forward.6} parent=5 // pred_fallthru
      _
  $region6: #{generalized_rcnn_forward.6} parent=0 // loop_footer
    %s13 = sadd.s32 1, %s9
  $region7: #{generalized_rcnn_forward.6} parent=0 // loop_footer_branch
    %8 = sbr.rel target = $region3
  $region8: #{generalized_rcnn_forward.6} parent=0 // loop_exit
    _

// kernel: generalized_rcnn_forward.8
$region0: #{generalized_rcnn_forward.8}
  #allocation0 [shape = 'u32[]', space=smem, size = 0x4, offset = 0x4, fixed_abs, tag = 'smem constant byte address 0x4 - core index']
  #allocation1 [shape = 'u32[144,128]{1,0:T(1,128)}', space=vmem, size = 0x12000, scoped, tag = 'internal scratch']
  %s0 = inlined_call_operand.vmem [shape: bf16[512,384], index: 0, kind: input, shape index: {}]
  %s1 = inlined_call_operand.vmem [shape: bf16[384,32], index: 1, kind: input, shape index: {}]
  %s2 = inlined_call_operand.vmem [shape: f32[1,32], index: 2, kind: input, shape index: {}]
  %s3 = inlined_call_operand.vmem [shape: bf16[32,128], index: 3, kind: input, shape index: {}]
  %s4 = inlined_call_operand.vmem [shape: f32[1,128], index: 4, kind: input, shape index: {}]
  %s5 = inlined_call_operand.vmem [shape: f32[512,128], index: 5, kind: output, shape index: {}]
  %s6 = sld [smem:[#allocation0]]
  $region53: #{generalized_rcnn_forward.8} parent=0
    _
  %s8 = ssub.s32 1, %s6
  %s9 = scalar_select 0, %s8, %s6
  loop: start=0, step=1, limit=4
  $region2: #{generalized_rcnn_forward.8} parent=0 // loop_pre_header
    _
  $region3: #{generalized_rcnn_forward.8} parent=0 // loop_header
    %s11 = sphi 0, %s15
    %p12 = scmp.ge.s32.totalorder %s11, 4
    %s21 = sphi 0, %s23
    %s24 = sphi 0, %s21
    %s25 = sphi 0, %s24
    %s41 = sphi 0, %s25
    %s45 = sphi 0, %s45
    %s47 = sphi 0, %s45
    %s48 = sphi 0, %s47
    %s62 = sphi 0, %s48
    %s66 = sphi 0, %s66
    %s68 = sphi 0, %s66
    %s69 = sphi 0, %s68
    %s83 = sphi 0, %s69
    %s87 = sphi 0, %s87
    %s89 = sphi 0, %s87
    %s90 = sphi 0, %s89
    %s104 = sphi 0, %s90
    %s108 = sphi 0, %s108
    %s110 = sphi 0, %s108
    %s111 = sphi 0, %s110
    %s125 = sphi 0, %s111
    %s131 = sphi 0, %s133
    %s134 = sphi 0, %s131
    %s135 = sphi 0, %s134
    %s151 = sphi 0, %s135
  $region4: #{generalized_rcnn_forward.8} parent=0 // loop_header_branch
    %14 = sbr.rel (%p12) target = $region8
  $region5: #{generalized_rcnn_forward.8} parent=0 // loop_body
    %s16 = ssub.s32 %s11, 1
    %s17 = ssub.s32 %s11, 2
    %s18 = sadd.s32 %s11, 1
    %s19 = ssub.s32 %s11, %s18
    %p20 = scmp.eq.s32.totalorder %s19, 0
    %s22 = sadd.s32 %s21, 1
    %s23 = scalar_select %p20, %s21, %s22
    %p26 = pneg %p20
    %p27 = scmp.eq.s32.totalorder %s11, 1
    %p28 = por %p26, %p27
    %p29 = scmp.ne.s32.totalorder %s21, %s24
    %p30 = scmp.eq.s32.totalorder %s11, 0
    %p31 = por %p29, %p30
    %p32 = scmp.ne.s32.totalorder %s21, %s24
    %p33 = scmp.eq.s32.totalorder %s16, 1
    %p34 = por %p32, %p33
    %p35 = scmp.ne.s32.totalorder %s24, %s25
    %p36 = scmp.eq.s32.totalorder %s16, 0
    %p37 = por %p35, %p36
    %p38 = scmp.ne.s32.totalorder %s24, %s25
    %p39 = scmp.eq.s32.totalorder %s17, 1
    %p40 = por %p38, %p39
    %p42 = scmp.ne.s32.totalorder %s25, %s41
    %p43 = scmp.eq.s32.totalorder %s17, 0
    %p44 = por %p42, %p43
    %s46 = sadd.s32 %s45, 1
    %p49 = scmp.eq.s32.totalorder %s11, 1
    %p50 = scmp.ne.s32.totalorder %s45, %s47
    %p51 = scmp.eq.s32.totalorder %s11, 0
    %p52 = por %p50, %p51
    %p53 = scmp.ne.s32.totalorder %s45, %s47
    %p54 = scmp.eq.s32.totalorder %s16, 1
    %p55 = por %p53, %p54
    %p56 = scmp.ne.s32.totalorder %s47, %s48
    %p57 = scmp.eq.s32.totalorder %s16, 0
    %p58 = por %p56, %p57
    %p59 = scmp.ne.s32.totalorder %s47, %s48
    %p60 = scmp.eq.s32.totalorder %s17, 1
    %p61 = por %p59, %p60
    %p63 = scmp.ne.s32.totalorder %s48, %s62
    %p64 = scmp.eq.s32.totalorder %s17, 0
    %p65 = por %p63, %p64
    %s67 = sadd.s32 %s66, 1
    %p70 = scmp.eq.s32.totalorder %s11, 1
    %p71 = scmp.ne.s32.totalorder %s66, %s68
    %p72 = scmp.eq.s32.totalorder %s11, 0
    %p73 = por %p71, %p72
    %p74 = scmp.ne.s32.totalorder %s66, %s68
    %p75 = scmp.eq.s32.totalorder %s16, 1
    %p76 = por %p74, %p75
    %p77 = scmp.ne.s32.totalorder %s68, %s69
    %p78 = scmp.eq.s32.totalorder %s16, 0
    %p79 = por %p77, %p78
    %p80 = scmp.ne.s32.totalorder %s68, %s69
    %p81 = scmp.eq.s32.totalorder %s17, 1
    %p82 = por %p80, %p81
    %p84 = scmp.ne.s32.totalorder %s69, %s83
    %p85 = scmp.eq.s32.totalorder %s17, 0
    %p86 = por %p84, %p85
    %s88 = sadd.s32 %s87, 1
    %p91 = scmp.eq.s32.totalorder %s11, 1
    %p92 = scmp.ne.s32.totalorder %s87, %s89
    %p93 = scmp.eq.s32.totalorder %s11, 0
    %p94 = por %p92, %p93
    %p95 = scmp.ne.s32.totalorder %s87, %s89
    %p96 = scmp.eq.s32.totalorder %s16, 1
    %p97 = por %p95, %p96
    %p98 = scmp.ne.s32.totalorder %s89, %s90
    %p99 = scmp.eq.s32.totalorder %s16, 0
    %p100 = por %p98, %p99
    %p101 = scmp.ne.s32.totalorder %s89, %s90
    %p102 = scmp.eq.s32.totalorder %s17, 1
    %p103 = por %p101, %p102
    %p105 = scmp.ne.s32.totalorder %s90, %s104
    %p106 = scmp.eq.s32.totalorder %s17, 0
    %p107 = por %p105, %p106
    %s109 = sadd.s32 %s108, 1
    %p112 = scmp.eq.s32.totalorder %s11, 1
    %p113 = scmp.ne.s32.totalorder %s108, %s110
    %p114 = scmp.eq.s32.totalorder %s11, 0
    %p115 = por %p113, %p114
    %p116 = scmp.ne.s32.totalorder %s108, %s110
    %p117 = scmp.eq.s32.totalorder %s16, 1
    %p118 = por %p116, %p117
    %p119 = scmp.ne.s32.totalorder %s110, %s111
    %p120 = scmp.eq.s32.totalorder %s16, 0
    %p121 = por %p119, %p120
    %p122 = scmp.ne.s32.totalorder %s110, %s111
    %p123 = scmp.eq.s32.totalorder %s17, 1
    %p124 = por %p122, %p123
    %p126 = scmp.ne.s32.totalorder %s111, %s125
    %p127 = scmp.eq.s32.totalorder %s17, 0
    %p128 = por %p126, %p127
    %s129 = ssub.s32 %s11, %s18
    %p130 = scmp.eq.s32.totalorder %s129, 0
    %s132 = sadd.s32 %s131, 1
    %s133 = scalar_select %p130, %s131, %s132
    %p136 = pneg %p130
    %p137 = scmp.eq.s32.totalorder %s11, 1
    %p138 = por %p136, %p137
    %p139 = scmp.ne.s32.totalorder %s131, %s134
    %p140 = scmp.eq.s32.totalorder %s11, 0
    %p141 = por %p139, %p140
    %p142 = scmp.ne.s32.totalorder %s131, %s134
    %p143 = scmp.eq.s32.totalorder %s16, 1
    %p144 = por %p142, %p143
    %p145 = scmp.ne.s32.totalorder %s134, %s135
    %p146 = scmp.eq.s32.totalorder %s16, 0
    %p147 = por %p145, %p146
    %p148 = scmp.ne.s32.totalorder %s134, %s135
    %p149 = scmp.eq.s32.totalorder %s17, 1
    %p150 = por %p148, %p149
    %p152 = scmp.ne.s32.totalorder %s135, %s151
    %p153 = scmp.eq.s32.totalorder %s17, 0
    %p154 = por %p152, %p153
    %p155 = scmp.le.s32.totalorder 1, %s11
    %p156 = scmp.lt.s32.totalorder %s11, 3
    %p157 = pnand %p155, %p156
    %p158 = pneg %p157
    // Predicated region
    $region9: #{generalized_rcnn_forward.8} parent=5 // pred_check
      _
    $region10: #{generalized_rcnn_forward.8} parent=5 // pred_check_branch
      %160 = sbr.rel (%p157) target = $region12
    $region11: #{generalized_rcnn_forward.8} parent=5 // pred_region
      %s161 = ssub.s32 %s11, 1
      // Predicated region
      $region13: #{generalized_rcnn_forward.8} parent=11 // pred_check
        %p162 = pneg %p58
      $region14: #{generalized_rcnn_forward.8} parent=11 // pred_check_branch
        %164 = sbr.rel (%p162) target = $region16
      $region15: #{generalized_rcnn_forward.8} parent=11 // pred_region
        _
      $region16: #{generalized_rcnn_forward.8} parent=11 // pred_fallthru
        _
      // Predicated region
      $region17: #{generalized_rcnn_forward.8} parent=11 // pred_check
        %p165 = pneg %p79
      $region18: #{generalized_rcnn_forward.8} parent=11 // pred_check_branch
        %167 = sbr.rel (%p165) target = $region20
      $region19: #{generalized_rcnn_forward.8} parent=11 // pred_region
        _
      $region20: #{generalized_rcnn_forward.8} parent=11 // pred_fallthru
        _
      // Predicated region
      $region21: #{generalized_rcnn_forward.8} parent=11 // pred_check
        %p168 = pneg %p100
      $region22: #{generalized_rcnn_forward.8} parent=11 // pred_check_branch
        %170 = sbr.rel (%p168) target = $region24
      $region23: #{generalized_rcnn_forward.8} parent=11 // pred_region
        _
      $region24: #{generalized_rcnn_forward.8} parent=11 // pred_fallthru
        _
      // Predicated region
      $region25: #{generalized_rcnn_forward.8} parent=11 // pred_check
        %p171 = pneg %p121
      $region26: #{generalized_rcnn_forward.8} parent=11 // pred_check_branch
        %173 = sbr.rel (%p171) target = $region28
      $region27: #{generalized_rcnn_forward.8} parent=11 // pred_region
        _
      $region28: #{generalized_rcnn_forward.8} parent=11 // pred_fallthru
        _
    $region12: #{generalized_rcnn_forward.8} parent=5 // pred_fallthru
      _
    %p174 = scmp.lt.s32.totalorder %s11, 2
    // Predicated region
    $region29: #{generalized_rcnn_forward.8} parent=5 // pred_check
      %p175 = pneg %p174
    $region30: #{generalized_rcnn_forward.8} parent=5 // pred_check_branch
      %177 = sbr.rel (%p175) target = $region32
    $region31: #{generalized_rcnn_forward.8} parent=5 // pred_region
      // Predicated region
      $region33: #{generalized_rcnn_forward.8} parent=31 // pred_check
        %p178 = pneg %p31
      $region34: #{generalized_rcnn_forward.8} parent=31 // pred_check_branch
        %180 = sbr.rel (%p178) target = $region36
      $region35: #{generalized_rcnn_forward.8} parent=31 // pred_region
        %s181 = smul.u32 32, %s11
        %p182 = scmp.lt.s32.totalorder %s181, 63
        %s183 = scalar_select %p182, %s181, 63
        %s184 = smul.addr %s183, 3
        %s185 = smul.addr %s184, 4
        %s186 = scalar_lea.vmem %s0, %s185
        %s187 = smul.u32 32, %s11
      $region36: #{generalized_rcnn_forward.8} parent=31 // pred_fallthru
        _
    $region32: #{generalized_rcnn_forward.8} parent=5 // pred_fallthru
      _
    %p188 = scmp.le.s32.totalorder 1, %s11
    %p189 = scmp.lt.s32.totalorder %s11, 3
    %p190 = pnand %p188, %p189
    %p191 = pneg %p190
    // Predicated region
    $region37: #{generalized_rcnn_forward.8} parent=5 // pred_check
      _
    $region38: #{generalized_rcnn_forward.8} parent=5 // pred_check_branch
      %193 = sbr.rel (%p190) target = $region40
    $region39: #{generalized_rcnn_forward.8} parent=5 // pred_region
      %s194 = ssub.s32 %s11, 1
      %s195 = smul.u32 32, %s16
      %p196 = scmp.lt.s32.totalorder %s195, 63
      %s197 = scalar_select %p196, %s195, 63
      %s198 = smul.addr %s197, 3
      %s199 = smul.addr %s198, 4
      %s200 = scalar_lea.vmem %s0, %s199
      %p201 = pneg %p37
      %p202 = pneg %p34
      %p203 = pneg %p58
      %p204 = pneg %p55
      %p205 = pneg %p79
      %p206 = pneg %p76
      %p207 = pneg %p100
      %p208 = pneg %p97
      %p209 = pneg %p121
      %p210 = pneg %p118
      %p211 = pneg %p147
      %p212 = pneg %p144
      %s213 = smul.u32 32, %s16
      %p214 = scmp.lt.s32.totalorder %s213, 63
      %s215 = scalar_select %p214, %s213, 63
      %s216 = smul.addr %s215, 8
      %s217 = scalar_lea.vmem %s5, %s216
      %s218 = smul.u32 32, %s16
      %p219 = scmp.lt.s32.totalorder %s218, 63
      %s220 = scalar_select %p219, %s218, 63
      %s221 = smul.addr %s220, 3
      %s222 = smul.addr %s221, 4
      %s223 = scalar_lea.vmem %s0, %s222
      %s224 = smul.u32 32, %s16
      %s225 = smul.u32 32, %s16
      %p226 = scmp.lt.s32.totalorder %s225, 63
      %s227 = scalar_select %p226, %s225, 63
      %s228 = smul.addr %s227, 8
      %s229 = scalar_lea.vmem %s5, %s228
      %s230 = smul.u32 32, %s16
      %v232 = vld [vmem:[%s223] sm:$0xff]
      %v233 = vld [vmem:[%s223 + $0x8] sm:$0xf]
      %v234 = vld [vmem:[%s223 + $0xc] sm:$0xff]
      %v235 = vld [vmem:[%s223 + $0x14] sm:$0xf]
      %v236 = vld [vmem:[%s223 + $0x18] sm:$0xff]
      %v237 = vld [vmem:[%s223 + $0x20] sm:$0xf]
      %v238 = vld [vmem:[%s223 + $0x24] sm:$0xff]
      %v239 = vld [vmem:[%s223 + $0x2c] sm:$0xf]
      %v240 = vld [vmem:[%s223 + $0x30] sm:$0xff]
      %v241 = vld [vmem:[%s223 + $0x38] sm:$0xf]
      %v242 = vld [vmem:[%s223 + $0x3c] sm:$0xff]
      %v243 = vld [vmem:[%s223 + $0x44] sm:$0xf]
      %v244 = vld [vmem:[%s223 + $0x48] sm:$0xff]
      %v245 = vld [vmem:[%s223 + $0x50] sm:$0xf]
      %v246 = vld [vmem:[%s223 + $0x54] sm:$0xff]
      %v247 = vld [vmem:[%s223 + $0x5c] sm:$0xf]
      %v248 = vld [vmem:[%s223 + $0x60] sm:$0xff]
      %v249 = vld [vmem:[%s223 + $0x68] sm:$0xf]
      %v250 = vld [vmem:[%s223 + $0x6c] sm:$0xff]
      %v251 = vld [vmem:[%s223 + $0x74] sm:$0xf]
      %v252 = vld [vmem:[%s223 + $0x78] sm:$0xff]
      %v253 = vld [vmem:[%s223 + $0x80] sm:$0xf]
      %v254 = vld [vmem:[%s223 + $0x84] sm:$0xff]
      %v255 = vld [vmem:[%s223 + $0x8c] sm:$0xf]
      %v256 = vld [vmem:[%s223 + $0x90] sm:$0xff]
      %v257 = vld [vmem:[%s223 + $0x98] sm:$0xf]
      %v258 = vld [vmem:[%s223 + $0x9c] sm:$0xff]
      %v259 = vld [vmem:[%s223 + $0xa4] sm:$0xf]
      %v260 = vld [vmem:[%s223 + $0xa8] sm:$0xff]
      %v261 = vld [vmem:[%s223 + $0xb0] sm:$0xf]
      %v262 = vld [vmem:[%s223 + $0xb4] sm:$0xff]
      %v263 = vld [vmem:[%s223 + $0xbc] sm:$0xf]
      %v264 = vld [vmem:[%s223 + $0xc0] sm:$0xff]
      %v265 = vld [vmem:[%s223 + $0xc8] sm:$0xf]
      %v266 = vld [vmem:[%s223 + $0xcc] sm:$0xff]
      %v267 = vld [vmem:[%s223 + $0xd4] sm:$0xf]
      %v268 = vld [vmem:[%s223 + $0xd8] sm:$0xff]
      %v269 = vld [vmem:[%s223 + $0xe0] sm:$0xf]
      %v270 = vld [vmem:[%s223 + $0xe4] sm:$0xff]
      %v271 = vld [vmem:[%s223 + $0xec] sm:$0xf]
      %v272 = vld [vmem:[%s223 + $0xf0] sm:$0xff]
      %v273 = vld [vmem:[%s223 + $0xf8] sm:$0xf]
      %v274 = vld [vmem:[%s223 + $0xfc] sm:$0xff]
      %v275 = vld [vmem:[%s223 + $0x104] sm:$0xf]
      %v276 = vld [vmem:[%s223 + $0x108] sm:$0xff]
      %v277 = vld [vmem:[%s223 + $0x110] sm:$0xf]
      %v278 = vld [vmem:[%s223 + $0x114] sm:$0xff]
      %v279 = vld [vmem:[%s223 + $0x11c] sm:$0xf]
      %v280 = vld [vmem:[%s223 + $0x120] sm:$0xff]
      %v281 = vld [vmem:[%s223 + $0x128] sm:$0xf]
      %v282 = vld [vmem:[%s223 + $0x12c] sm:$0xff]
      %v283 = vld [vmem:[%s223 + $0x134] sm:$0xf]
      %v284 = vld [vmem:[%s223 + $0x138] sm:$0xff]
      %v285 = vld [vmem:[%s223 + $0x140] sm:$0xf]
      %v286 = vld [vmem:[%s223 + $0x144] sm:$0xff]
      %v287 = vld [vmem:[%s223 + $0x14c] sm:$0xf]
      %v288 = vld [vmem:[%s223 + $0x150] sm:$0xff]
      %v289 = vld [vmem:[%s223 + $0x158] sm:$0xf]
      %v290 = vld [vmem:[%s223 + $0x15c] sm:$0xff]
      %v291 = vld [vmem:[%s223 + $0x164] sm:$0xf]
      %v292 = vld [vmem:[%s223 + $0x168] sm:$0xff]
      %v293 = vld [vmem:[%s223 + $0x170] sm:$0xf]
      %v294 = vld [vmem:[%s223 + $0x174] sm:$0xff]
      %v295 = vld [vmem:[%s223 + $0x17c] sm:$0xf]
      %v296 = vld [vmem:[%s1] sm:$0xf]
      %v297 = vld [vmem:[%s1 + $0x4] sm:$0xf]
      %v298 = vld [vmem:[%s1 + $0x8] sm:$0xf]
      %v299 = vld [vmem:[%s1 + $0xc] sm:$0xf]
      %v300 = vld [vmem:[%s1 + $0x10] sm:$0xf]
      %v301 = vld [vmem:[%s1 + $0x14] sm:$0xf]
      %v302 = vld [vmem:[%s1 + $0x18] sm:$0xf]
      %v303 = vld [vmem:[%s1 + $0x1c] sm:$0xf]
      %v304 = vld [vmem:[%s1 + $0x20] sm:$0xf]
      %v305 = vld [vmem:[%s1 + $0x24] sm:$0xf]
      %v306 = vld [vmem:[%s1 + $0x28] sm:$0xf]
      %v307 = vld [vmem:[%s1 + $0x2c] sm:$0xf]
      %v308 = vld [vmem:[%s1 + $0x30] sm:$0xf]
      %v309 = vld [vmem:[%s1 + $0x34] sm:$0xf]
      %v310 = vld [vmem:[%s1 + $0x38] sm:$0xf]
      %v311 = vld [vmem:[%s1 + $0x3c] sm:$0xf]
      %v312 = vld [vmem:[%s1 + $0x40] sm:$0xf]
      %v313 = vld [vmem:[%s1 + $0x44] sm:$0xf]
      %v314 = vld [vmem:[%s1 + $0x48] sm:$0xf]
      %v315 = vld [vmem:[%s1 + $0x4c] sm:$0xf]
      %v316 = vld [vmem:[%s1 + $0x50] sm:$0xf]
      %v317 = vld [vmem:[%s1 + $0x54] sm:$0xf]
      %v318 = vld [vmem:[%s1 + $0x58] sm:$0xf]
      %v319 = vld [vmem:[%s1 + $0x5c] sm:$0xf]
      %v320 = vld [vmem:[%s1 + $0x60] sm:$0xf]
      %v321 = vld [vmem:[%s1 + $0x64] sm:$0xf]
      %v322 = vld [vmem:[%s1 + $0x68] sm:$0xf]
      %v323 = vld [vmem:[%s1 + $0x6c] sm:$0xf]
      %v324 = vld [vmem:[%s1 + $0x70] sm:$0xf]
      %v325 = vld [vmem:[%s1 + $0x74] sm:$0xf]
      %v326 = vld [vmem:[%s1 + $0x78] sm:$0xf]
      %v327 = vld [vmem:[%s1 + $0x7c] sm:$0xf]
      %v328 = vld [vmem:[%s1 + $0x80] sm:$0xf]
      %v329 = vld [vmem:[%s1 + $0x84] sm:$0xf]
      %v330 = vld [vmem:[%s1 + $0x88] sm:$0xf]
      %v331 = vld [vmem:[%s1 + $0x8c] sm:$0xf]
      %v332 = vld [vmem:[%s1 + $0x90] sm:$0xf]
      %v333 = vld [vmem:[%s1 + $0x94] sm:$0xf]
      %v334 = vld [vmem:[%s1 + $0x98] sm:$0xf]
      %v335 = vld [vmem:[%s1 + $0x9c] sm:$0xf]
      %v336 = vld [vmem:[%s1 + $0xa0] sm:$0xf]
      %v337 = vld [vmem:[%s1 + $0xa4] sm:$0xf]
      %v338 = vld [vmem:[%s1 + $0xa8] sm:$0xf]
      %v339 = vld [vmem:[%s1 + $0xac] sm:$0xf]
      %v340 = vld [vmem:[%s1 + $0xb0] sm:$0xf]
      %v341 = vld [vmem:[%s1 + $0xb4] sm:$0xf]
      %v342 = vld [vmem:[%s1 + $0xb8] sm:$0xf]
      %v343 = vld [vmem:[%s1 + $0xbc] sm:$0xf]
      %v344 = vld [vmem:[%s2] sm:$0x1]
      %v346 = vlaneseq
      %v347 = vshrl.u32 %v346, 7
      %v348 = vsub.s32 0, %v347
      %v349 = vrot.slane %v344, %v348
      %v415 = vunpack.c.l.b16 %v232
      %v416 = vunpack.c.h.b16 %v232
      %v417 = vunpack.c.l.b16 %v233
      %v418 = vunpack.c.l.b16 %v234
      %v419 = vunpack.c.h.b16 %v234
      %v420 = vunpack.c.l.b16 %v235
      %v421 = vunpack.c.l.b16 %v236
      %v422 = vunpack.c.h.b16 %v236
      %v423 = vunpack.c.l.b16 %v237
      %v424 = vunpack.c.l.b16 %v238
      %v425 = vunpack.c.h.b16 %v238
      %v426 = vunpack.c.l.b16 %v239
      %v427 = vunpack.c.l.b16 %v240
      %v428 = vunpack.c.h.b16 %v240
      %v429 = vunpack.c.l.b16 %v241
      %v430 = vunpack.c.l.b16 %v242
      %v431 = vunpack.c.h.b16 %v242
      %v432 = vunpack.c.l.b16 %v243
      %v433 = vunpack.c.l.b16 %v244
      %v434 = vunpack.c.h.b16 %v244
      %v435 = vunpack.c.l.b16 %v245
      %v436 = vunpack.c.l.b16 %v246
      %v437 = vunpack.c.h.b16 %v246
      %v438 = vunpack.c.l.b16 %v247
      %v439 = vunpack.c.l.b16 %v248
      %v440 = vunpack.c.h.b16 %v248
      %v441 = vunpack.c.l.b16 %v249
      %v442 = vunpack.c.l.b16 %v250
      %v443 = vunpack.c.h.b16 %v250
      %v444 = vunpack.c.l.b16 %v251
      %v445 = vunpack.c.l.b16 %v252
      %v446 = vunpack.c.h.b16 %v252
      %v447 = vunpack.c.l.b16 %v253
      %v448 = vunpack.c.l.b16 %v254
      %v449 = vunpack.c.h.b16 %v254
      %v450 = vunpack.c.l.b16 %v255
      %v451 = vunpack.c.l.b16 %v256
      %v452 = vunpack.c.h.b16 %v256
      %v453 = vunpack.c.l.b16 %v257
      %v454 = vunpack.c.l.b16 %v258
      %v455 = vunpack.c.h.b16 %v258
      %v456 = vunpack.c.l.b16 %v259
      %v457 = vunpack.c.l.b16 %v260
      %v458 = vunpack.c.h.b16 %v260
      %v459 = vunpack.c.l.b16 %v261
      %v460 = vunpack.c.l.b16 %v262
      %v461 = vunpack.c.h.b16 %v262
      %v462 = vunpack.c.l.b16 %v263
      %v463 = vunpack.c.l.b16 %v264
      %v464 = vunpack.c.h.b16 %v264
      %v465 = vunpack.c.l.b16 %v265
      %v466 = vunpack.c.l.b16 %v266
      %v467 = vunpack.c.h.b16 %v266
      %v468 = vunpack.c.l.b16 %v267
      %v469 = vunpack.c.l.b16 %v268
      %v470 = vunpack.c.h.b16 %v268
      %v471 = vunpack.c.l.b16 %v269
      %v472 = vunpack.c.l.b16 %v270
      %v473 = vunpack.c.h.b16 %v270
      %v474 = vunpack.c.l.b16 %v271
      %v475 = vunpack.c.l.b16 %v272
      %v476 = vunpack.c.h.b16 %v272
      %v477 = vunpack.c.l.b16 %v273
      %v478 = vunpack.c.l.b16 %v274
      %v479 = vunpack.c.h.b16 %v274
      %v480 = vunpack.c.l.b16 %v275
      %v481 = vunpack.c.l.b16 %v276
      %v482 = vunpack.c.h.b16 %v276
      %v483 = vunpack.c.l.b16 %v277
      %v484 = vunpack.c.l.b16 %v278
      %v485 = vunpack.c.h.b16 %v278
      %v486 = vunpack.c.l.b16 %v279
      %v487 = vunpack.c.l.b16 %v280
      %v488 = vunpack.c.h.b16 %v280
      %v489 = vunpack.c.l.b16 %v281
      %v490 = vunpack.c.l.b16 %v282
      %v491 = vunpack.c.h.b16 %v282
      %v492 = vunpack.c.l.b16 %v283
      %v493 = vunpack.c.l.b16 %v284
      %v494 = vunpack.c.h.b16 %v284
      %v495 = vunpack.c.l.b16 %v285
      %v496 = vunpack.c.l.b16 %v286
      %v497 = vunpack.c.h.b16 %v286
      %v498 = vunpack.c.l.b16 %v287
      %v499 = vunpack.c.l.b16 %v288
      %v500 = vunpack.c.h.b16 %v288
      %v501 = vunpack.c.l.b16 %v289
      %v502 = vunpack.c.l.b16 %v290
      %v503 = vunpack.c.h.b16 %v290
      %v504 = vunpack.c.l.b16 %v291
      %v505 = vunpack.c.l.b16 %v292
      %v506 = vunpack.c.h.b16 %v292
      %v507 = vunpack.c.l.b16 %v293
      %v508 = vunpack.c.l.b16 %v294
      %v509 = vunpack.c.h.b16 %v294
      %v510 = vunpack.c.l.b16 %v295
      %v511 = vpack.c.b16 %v418, %v415
      %v512 = vpack.c.b16 %v419, %v416
      %v513 = vpack.c.b16 %v420, %v417
      %v514 = vpack.c.b16 %v424, %v421
      %v515 = vpack.c.b16 %v425, %v422
      %v516 = vpack.c.b16 %v426, %v423
      %v517 = vpack.c.b16 %v430, %v427
      %v518 = vpack.c.b16 %v431, %v428
      %v519 = vpack.c.b16 %v432, %v429
      %v520 = vpack.c.b16 %v436, %v433
      %v521 = vpack.c.b16 %v437, %v434
      %v522 = vpack.c.b16 %v438, %v435
      %v523 = vpack.c.b16 %v442, %v439
      %v524 = vpack.c.b16 %v443, %v440
      %v525 = vpack.c.b16 %v444, %v441
      %v526 = vpack.c.b16 %v448, %v445
      %v527 = vpack.c.b16 %v449, %v446
      %v528 = vpack.c.b16 %v450, %v447
      %v529 = vpack.c.b16 %v454, %v451
      %v530 = vpack.c.b16 %v455, %v452
      %v531 = vpack.c.b16 %v456, %v453
      %v532 = vpack.c.b16 %v460, %v457
      %v533 = vpack.c.b16 %v461, %v458
      %v534 = vpack.c.b16 %v462, %v459
      %v535 = vpack.c.b16 %v466, %v463
      %v536 = vpack.c.b16 %v467, %v464
      %v537 = vpack.c.b16 %v468, %v465
      %v538 = vpack.c.b16 %v472, %v469
      %v539 = vpack.c.b16 %v473, %v470
      %v540 = vpack.c.b16 %v474, %v471
      %v541 = vpack.c.b16 %v478, %v475
      %v542 = vpack.c.b16 %v479, %v476
      %v543 = vpack.c.b16 %v480, %v477
      %v544 = vpack.c.b16 %v484, %v481
      %v545 = vpack.c.b16 %v485, %v482
      %v546 = vpack.c.b16 %v486, %v483
      %v547 = vpack.c.b16 %v490, %v487
      %v548 = vpack.c.b16 %v491, %v488
      %v549 = vpack.c.b16 %v492, %v489
      %v550 = vpack.c.b16 %v496, %v493
      %v551 = vpack.c.b16 %v497, %v494
      %v552 = vpack.c.b16 %v498, %v495
      %v553 = vpack.c.b16 %v502, %v499
      %v554 = vpack.c.b16 %v503, %v500
      %v555 = vpack.c.b16 %v504, %v501
      %v556 = vpack.c.b16 %v508, %v505
      %v557 = vpack.c.b16 %v509, %v506
      %v558 = vpack.c.b16 %v510, %v507
      %v655 = vunpack.c.l.b16 %v296
      %v656 = vunpack.c.l.b16 %v297
      %v657 = vunpack.c.l.b16 %v298
      %v658 = vunpack.c.l.b16 %v299
      %v659 = vunpack.c.l.b16 %v300
      %v660 = vunpack.c.l.b16 %v301
      %v661 = vunpack.c.l.b16 %v302
      %v662 = vunpack.c.l.b16 %v303
      %v663 = vunpack.c.l.b16 %v304
      %v664 = vunpack.c.l.b16 %v305
      %v665 = vunpack.c.l.b16 %v306
      %v666 = vunpack.c.l.b16 %v307
      %v667 = vunpack.c.l.b16 %v308
      %v668 = vunpack.c.l.b16 %v309
      %v669 = vunpack.c.l.b16 %v310
      %v670 = vunpack.c.l.b16 %v311
      %v671 = vunpack.c.l.b16 %v312
      %v672 = vunpack.c.l.b16 %v313
      %v673 = vunpack.c.l.b16 %v314
      %v674 = vunpack.c.l.b16 %v315
      %v675 = vunpack.c.l.b16 %v316
      %v676 = vunpack.c.l.b16 %v317
      %v677 = vunpack.c.l.b16 %v318
      %v678 = vunpack.c.l.b16 %v319
      %v679 = vunpack.c.l.b16 %v320
      %v680 = vunpack.c.l.b16 %v321
      %v681 = vunpack.c.l.b16 %v322
      %v682 = vunpack.c.l.b16 %v323
      %v683 = vunpack.c.l.b16 %v324
      %v684 = vunpack.c.l.b16 %v325
      %v685 = vunpack.c.l.b16 %v326
      %v686 = vunpack.c.l.b16 %v327
      %v687 = vunpack.c.l.b16 %v328
      %v688 = vunpack.c.l.b16 %v329
      %v689 = vunpack.c.l.b16 %v330
      %v690 = vunpack.c.l.b16 %v331
      %v691 = vunpack.c.l.b16 %v332
      %v692 = vunpack.c.l.b16 %v333
      %v693 = vunpack.c.l.b16 %v334
      %v694 = vunpack.c.l.b16 %v335
      %v695 = vunpack.c.l.b16 %v336
      %v696 = vunpack.c.l.b16 %v337
      %v697 = vunpack.c.l.b16 %v338
      %v698 = vunpack.c.l.b16 %v339
      %v699 = vunpack.c.l.b16 %v340
      %v700 = vunpack.c.l.b16 %v341
      %v701 = vunpack.c.l.b16 %v342
      %v702 = vunpack.c.l.b16 %v343
      %v703 = vpack.c.b16 %v656, %v655
      %v704 = vpack.c.b16 %v658, %v657
      %v705 = vpack.c.b16 %v660, %v659
      %v706 = vpack.c.b16 %v662, %v661
      %v707 = vpack.c.b16 %v664, %v663
      %v708 = vpack.c.b16 %v666, %v665
      %v709 = vpack.c.b16 %v668, %v667
      %v710 = vpack.c.b16 %v670, %v669
      %v711 = vpack.c.b16 %v672, %v671
      %v712 = vpack.c.b16 %v674, %v673
      %v713 = vpack.c.b16 %v676, %v675
      %v714 = vpack.c.b16 %v678, %v677
      %v715 = vpack.c.b16 %v680, %v679
      %v716 = vpack.c.b16 %v682, %v681
      %v717 = vpack.c.b16 %v684, %v683
      %v718 = vpack.c.b16 %v686, %v685
      %v719 = vpack.c.b16 %v688, %v687
      %v720 = vpack.c.b16 %v690, %v689
      %v721 = vpack.c.b16 %v692, %v691
      %v722 = vpack.c.b16 %v694, %v693
      %v723 = vpack.c.b16 %v696, %v695
      %v724 = vpack.c.b16 %v698, %v697
      %v725 = vpack.c.b16 %v700, %v699
      %v726 = vpack.c.b16 %v702, %v701
      %751 = vmatprep.subr.bf16.mxu0 0
      %752 = vmatpush1.bf16.msra.mxu0 %v703
      %753 = vmatprep.subr.bf16.mxu0 0
      %754 = vmatpush1.bf16.msra.mxu0 %v704
      %755 = vmatprep.subr.bf16.mxu0 0
      %756 = vmatpush1.bf16.msra.mxu0 %v705
      %757 = vmatprep.subr.bf16.mxu0 0
      %758 = vmatpush1.bf16.msra.mxu0 %v706
      %759 = vmatprep.subr.bf16.mxu0 0
      %760 = vmatpush1.bf16.msra.mxu0 %v707
      %761 = vmatprep.subr.bf16.mxu0 0
      %762 = vmatpush1.bf16.msra.mxu0 %v708
      %763 = vmatprep.subr.bf16.mxu0 0
      %764 = vmatpush1.bf16.msra.mxu0 %v709
      %765 = vmatprep.subr.bf16.mxu0 0
      %766 = vmatpush1.bf16.msra.mxu0 %v710
      %767 = vmatprep.subr.bf16.mxu0 0
      %768 = vmatpush1.bf16.msra.mxu0 %v711
      %769 = vmatprep.subr.bf16.mxu0 0
      %770 = vmatpush1.bf16.msra.mxu0 %v712
      %771 = vmatprep.subr.bf16.mxu0 0
      %772 = vmatpush1.bf16.msra.mxu0 %v713
      %773 = vmatprep.subr.bf16.mxu0 0
      %774 = vmatpush1.bf16.msra.mxu0 %v714
      %775 = vmatprep.subr.bf16.mxu0 0
      %776 = vmatpush1.bf16.msra.mxu0 %v715
      %777 = vmatprep.subr.bf16.mxu0 0
      %778 = vmatpush1.bf16.msra.mxu0 %v716
      %779 = vmatprep.subr.bf16.mxu0 0
      %780 = vmatpush1.bf16.msra.mxu0 %v717
      %781 = vmatprep.subr.bf16.mxu0 0
      %782 = vmatpush1.bf16.msra.mxu0 %v718
      %783 = vmatprep.mubr.bf16.mxu0 %v512
      %784 = vmatmul.mubr.bf16.gmra.mrb[0].mxu0 %v511
      %v785 = vpop.f32.mrb[0].mxu0
      %v786 = vadd.f32 %v349, %v785
      %v787 = vpop.f32.mrb[0].mxu0
      %v788 = vpop.f32.mrb[0].mxu0
      %v789 = vadd.f32 %v349, %v788
      %v790 = vpop.f32.mrb[0].mxu0
      %791 = vmatprep.mubr.bf16.mxu0 %v515
      %792 = vmatmul.mubr.bf16.gmra.mrb[0].mxu0 %v514
      %v793 = vpop.f32.mrb[0].mxu0
      %v794 = vadd.f32 %v349, %v793
      %v795 = vpop.f32.mrb[0].mxu0
      %v796 = vpop.f32.mrb[0].mxu0
      %v797 = vadd.f32 %v349, %v796
      %v798 = vpop.f32.mrb[0].mxu0
      %799 = vmatprep.mubr.bf16.mxu0 %v518
      %800 = vmatmul.mubr.bf16.gmra.mrb[0].mxu0 %v517
      %v801 = vpop.f32.mrb[0].mxu0
      %v802 = vadd.f32 %v349, %v801
      %v803 = vpop.f32.mrb[0].mxu0
      %v804 = vpop.f32.mrb[0].mxu0
      %v805 = vadd.f32 %v349, %v804
      %v806 = vpop.f32.mrb[0].mxu0
      %807 = vmatprep.mubr.bf16.mxu0 %v521
      %808 = vmatmul.mubr.bf16.gmra.mrb[0].mxu0 %v520
      %v809 = vpop.f32.mrb[0].mxu0
      %v810 = vadd.f32 %v349, %v809
      %v811 = vpop.f32.mrb[0].mxu0
      %v812 = vpop.f32.mrb[0].mxu0
      %v813 = vadd.f32 %v349, %v812
      %v814 = vpop.f32.mrb[0].mxu0
      %815 = vmatprep.mubr.bf16.mxu0 %v524
      %816 = vmatmul.mubr.bf16.gmra.mrb[0].mxu0 %v523
      %v817 = vpop.f32.mrb[0].mxu0
      %v818 = vadd.f32 %v349, %v817
      %v819 = vpop.f32.mrb[0].mxu0
      %v820 = vpop.f32.mrb[0].mxu0
      %v821 = vadd.f32 %v349, %v820
      %v822 = vpop.f32.mrb[0].mxu0
      %823 = vmatprep.mubr.bf16.mxu0 %v527
      %824 = vmatmul.mubr.bf16.gmra.mrb[0].mxu0 %v526
      %v825 = vpop.f32.mrb[0].mxu0
      %v826 = vadd.f32 %v349, %v825
      %v827 = vpop.f32.mrb[0].mxu0
      %v828 = vpop.f32.mrb[0].mxu0
      %v829 = vadd.f32 %v349, %v828
      %v830 = vpop.f32.mrb[0].mxu0
      %831 = vmatprep.mubr.bf16.mxu0 %v530
      %832 = vmatmul.mubr.bf16.gmra.mrb[0].mxu0 %v529
      %v833 = vpop.f32.mrb[0].mxu0
      %v834 = vadd.f32 %v349, %v833
      %v835 = vpop.f32.mrb[0].mxu0
      %v836 = vpop.f32.mrb[0].mxu0
      %v837 = vadd.f32 %v349, %v836
      %v838 = vpop.f32.mrb[0].mxu0
      %839 = vmatprep.mubr.bf16.mxu0 %v533
      %840 = vmatmul.mubr.bf16.gmra.mrb[0].mxu0 %v532
      %v841 = vpop.f32.mrb[0].mxu0
      %v842 = vadd.f32 %v349, %v841
      %v843 = vpop.f32.mrb[0].mxu0
      %v844 = vpop.f32.mrb[0].mxu0
      %v845 = vadd.f32 %v349, %v844
      %v846 = vpop.f32.mrb[0].mxu0
      %847 = vmatprep.mubr.bf16.mxu0 %v536
      %848 = vmatmul.mubr.bf16.gmra.mrb[0].mxu0 %v535
      %v849 = vpop.f32.mrb[0].mxu0
      %v850 = vadd.f32 %v349, %v849
      %v851 = vpop.f32.mrb[0].mxu0
      %v852 = vpop.f32.mrb[0].mxu0
      %v853 = vadd.f32 %v349, %v852
      %v854 = vpop.f32.mrb[0].mxu0
      %855 = vmatprep.mubr.bf16.mxu0 %v539
      %856 = vmatmul.mubr.bf16.gmra.mrb[0].mxu0 %v538
      %v857 = vpop.f32.mrb[0].mxu0
      %v858 = vadd.f32 %v349, %v857
      %v859 = vpop.f32.mrb[0].mxu0
      %v860 = vpop.f32.mrb[0].mxu0
      %v861 = vadd.f32 %v349, %v860
      %v862 = vpop.f32.mrb[0].mxu0
      %863 = vmatprep.mubr.bf16.mxu0 %v542
      %864 = vmatmul.mubr.bf16.gmra.mrb[0].mxu0 %v541
      %v865 = vpop.f32.mrb[0].mxu0
      %v866 = vadd.f32 %v349, %v865
      %v867 = vpop.f32.mrb[0].mxu0
      %v868 = vpop.f32.mrb[0].mxu0
      %v869 = vadd.f32 %v349, %v868
      %v870 = vpop.f32.mrb[0].mxu0
      %871 = vmatprep.mubr.bf16.mxu0 %v545
      %872 = vmatmul.mubr.bf16.gmra.mrb[0].mxu0 %v544
      %v873 = vpop.f32.mrb[0].mxu0
      %v874 = vadd.f32 %v349, %v873
      %v875 = vpop.f32.mrb[0].mxu0
      %v876 = vpop.f32.mrb[0].mxu0
      %v877 = vadd.f32 %v349, %v876
      %v878 = vpop.f32.mrb[0].mxu0
      %879 = vmatprep.mubr.bf16.mxu0 %v548
      %880 = vmatmul.mubr.bf16.gmra.mrb[0].mxu0 %v547
      %v881 = vpop.f32.mrb[0].mxu0
      %v882 = vadd.f32 %v349, %v881
      %v883 = vpop.f32.mrb[0].mxu0
      %v884 = vpop.f32.mrb[0].mxu0
      %v885 = vadd.f32 %v349, %v884
      %v886 = vpop.f32.mrb[0].mxu0
      %887 = vmatprep.mubr.bf16.mxu0 %v551
      %888 = vmatmul.mubr.bf16.gmra.mrb[0].mxu0 %v550
      %v889 = vpop.f32.mrb[0].mxu0
      %v890 = vadd.f32 %v349, %v889
      %v891 = vpop.f32.mrb[0].mxu0
      %v892 = vpop.f32.mrb[0].mxu0
      %v893 = vadd.f32 %v349, %v892
      %v894 = vpop.f32.mrb[0].mxu0
      %895 = vmatprep.mubr.bf16.mxu0 %v554
      %896 = vmatmul.mubr.bf16.gmra.mrb[0].mxu0 %v553
      %v897 = vpop.f32.mrb[0].mxu0
      %v898 = vadd.f32 %v349, %v897
      %v899 = vpop.f32.mrb[0].mxu0
      %v900 = vpop.f32.mrb[0].mxu0
      %v901 = vadd.f32 %v349, %v900
      %v902 = vpop.f32.mrb[0].mxu0
      %903 = vmatprep.mubr.bf16.mxu0 %v557
      %904 = vmatmul.mubr.bf16.gmra.mrb[0].mxu0 %v556
      %v905 = vpop.f32.mrb[0].mxu0
      %v906 = vadd.f32 %v349, %v905
      %v907 = vpop.f32.mrb[0].mxu0
      %v908 = vpop.f32.mrb[0].mxu0
      %v909 = vadd.f32 %v349, %v908
      %v910 = vpop.f32.mrb[0].mxu0
      %911 = vdwg.mxu0
      %912 = vmatprep.subr.bf16.mxu0 0
      %913 = vmatpush1.bf16.msra.mxu0 %v719
      %914 = vmatprep.subr.bf16.mxu0 0
      %915 = vmatpush1.bf16.msra.mxu0 %v720
      %916 = vmatprep.subr.bf16.mxu0 0
      %917 = vmatpush1.bf16.msra.mxu0 %v721
      %918 = vmatprep.subr.bf16.mxu0 0
      %919 = vmatpush1.bf16.msra.mxu0 %v722
      %920 = vmatprep.subr.bf16.mxu0 0
      %921 = vmatpush1.bf16.msra.mxu0 %v723
      %922 = vmatprep.subr.bf16.mxu0 0
      %923 = vmatpush1.bf16.msra.mxu0 %v724
      %924 = vmatprep.subr.bf16.mxu0 0
      %925 = vmatpush1.bf16.msra.mxu0 %v725
      %926 = vmatprep.subr.bf16.mxu0 0
      %927 = vmatpush1.bf16.msra.mxu0 %v726
      %928 = vmatprep.subr.bf16.mxu0 0
      %929 = vmatpush1.bf16.msra.mxu0 0
      %930 = vmatprep.subr.bf16.mxu0 0
      %931 = vmatpush1.bf16.msra.mxu0 0
      %932 = vmatprep.subr.bf16.mxu0 0
      %933 = vmatpush1.bf16.msra.mxu0 0
      %934 = vmatprep.subr.bf16.mxu0 0
      %935 = vmatpush1.bf16.msra.mxu0 0
      %936 = vmatprep.subr.bf16.mxu0 0
      %937 = vmatpush1.bf16.msra.mxu0 0
      %938 = vmatprep.subr.bf16.mxu0 0
      %939 = vmatpush1.bf16.msra.mxu0 0
      %940 = vmatprep.subr.bf16.mxu0 0
      %941 = vmatpush1.bf16.msra.mxu0 0
      %942 = vmatprep.subr.bf16.mxu0 0
      %943 = vmatpush1.bf16.msra.mxu0 0
      %944 = vmatprep.mubr.bf16.mxu0 0
      %945 = vmatmul.mubr.bf16.gmra.mrb[0].mxu0 %v513
      %v946 = vpop.f32.mrb[0].mxu0
      %v947 = vadd.f32 %v786, %v946
      %v948 = vpop.f32.mrb[0].mxu0
      %v949 = vpop.f32.mrb[0].mxu0
      %v950 = vadd.f32 %v789, %v949
      %v951 = vpop.f32.mrb[0].mxu0
      %952 = vmatprep.mubr.bf16.mxu0 0
      %953 = vmatmul.mubr.bf16.gmra.mrb[0].mxu0 %v516
      %v954 = vpop.f32.mrb[0].mxu0
      %v955 = vadd.f32 %v794, %v954
      %v956 = vpop.f32.mrb[0].mxu0
      %v957 = vpop.f32.mrb[0].mxu0
      %v958 = vadd.f32 %v797, %v957
      %v959 = vpop.f32.mrb[0].mxu0
      %960 = vmatprep.mubr.bf16.mxu0 0
      %961 = vmatmul.mubr.bf16.gmra.mrb[0].mxu0 %v519
      %v962 = vpop.f32.mrb[0].mxu0
      %v963 = vadd.f32 %v802, %v962
      %v964 = vpop.f32.mrb[0].mxu0
      %v965 = vpop.f32.mrb[0].mxu0
      %v966 = vadd.f32 %v805, %v965
      %v967 = vpop.f32.mrb[0].mxu0
      %968 = vmatprep.mubr.bf16.mxu0 0
      %969 = vmatmul.mubr.bf16.gmra.mrb[0].mxu0 %v522
      %v970 = vpop.f32.mrb[0].mxu0
      %v971 = vadd.f32 %v810, %v970
      %v972 = vpop.f32.mrb[0].mxu0
      %v973 = vpop.f32.mrb[0].mxu0
      %v974 = vadd.f32 %v813, %v973
      %v975 = vpop.f32.mrb[0].mxu0
      %976 = vmatprep.mubr.bf16.mxu0 0
      %977 = vmatmul.mubr.bf16.gmra.mrb[0].mxu0 %v525
      %v978 = vpop.f32.mrb[0].mxu0
      %v979 = vadd.f32 %v818, %v978
      %v980 = vpop.f32.mrb[0].mxu0
      %v981 = vpop.f32.mrb[0].mxu0
      %v982 = vadd.f32 %v821, %v981
      %v983 = vpop.f32.mrb[0].mxu0
      %984 = vmatprep.mubr.bf16.mxu0 0
      %985 = vmatmul.mubr.bf16.gmra.mrb[0].mxu0 %v528
      %v986 = vpop.f32.mrb[0].mxu0
      %v987 = vadd.f32 %v826, %v986
      %v988 = vpop.f32.mrb[0].mxu0
      %v989 = vpop.f32.mrb[0].mxu0
      %v990 = vadd.f32 %v829, %v989
      %v991 = vpop.f32.mrb[0].mxu0
      %992 = vmatprep.mubr.bf16.mxu0 0
      %993 = vmatmul.mubr.bf16.gmra.mrb[0].mxu0 %v531
      %v994 = vpop.f32.mrb[0].mxu0
      %v995 = vadd.f32 %v834, %v994
      %v996 = vpop.f32.mrb[0].mxu0
      %v997 = vpop.f32.mrb[0].mxu0
      %v998 = vadd.f32 %v837, %v997
      %v999 = vpop.f32.mrb[0].mxu0
      %1000 = vmatprep.mubr.bf16.mxu0 0
      %1001 = vmatmul.mubr.bf16.gmra.mrb[0].mxu0 %v534
      %v1002 = vpop.f32.mrb[0].mxu0
      %v1003 = vadd.f32 %v842, %v1002
      %v1004 = vpop.f32.mrb[0].mxu0
      %v1005 = vpop.f32.mrb[0].mxu0
      %v1006 = vadd.f32 %v845, %v1005
      %v1007 = vpop.f32.mrb[0].mxu0
      %1008 = vmatprep.mubr.bf16.mxu0 0
      %1009 = vmatmul.mubr.bf16.gmra.mrb[0].mxu0 %v537
      %v1010 = vpop.f32.mrb[0].mxu0
      %v1011 = vadd.f32 %v850, %v1010
      %v1012 = vpop.f32.mrb[0].mxu0
      %v1013 = vpop.f32.mrb[0].mxu0
      %v1014 = vadd.f32 %v853, %v1013
      %v1015 = vpop.f32.mrb[0].mxu0
      %1016 = vmatprep.mubr.bf16.mxu0 0
      %1017 = vmatmul.mubr.bf16.gmra.mrb[0].mxu0 %v540
      %v1018 = vpop.f32.mrb[0].mxu0
      %v1019 = vadd.f32 %v858, %v1018
      %v1020 = vpop.f32.mrb[0].mxu0
      %v1021 = vpop.f32.mrb[0].mxu0
      %v1022 = vadd.f32 %v861, %v1021
      %v1023 = vpop.f32.mrb[0].mxu0
      %1024 = vmatprep.mubr.bf16.mxu0 0
      %1025 = vmatmul.mubr.bf16.gmra.mrb[0].mxu0 %v543
      %v1026 = vpop.f32.mrb[0].mxu0
      %v1027 = vadd.f32 %v866, %v1026
      %v1028 = vpop.f32.mrb[0].mxu0
      %v1029 = vpop.f32.mrb[0].mxu0
      %v1030 = vadd.f32 %v869, %v1029
      %v1031 = vpop.f32.mrb[0].mxu0
      %1032 = vmatprep.mubr.bf16.mxu0 0
      %1033 = vmatmul.mubr.bf16.gmra.mrb[0].mxu0 %v546
      %v1034 = vpop.f32.mrb[0].mxu0
      %v1035 = vadd.f32 %v874, %v1034
      %v1036 = vpop.f32.mrb[0].mxu0
      %v1037 = vpop.f32.mrb[0].mxu0
      %v1038 = vadd.f32 %v877, %v1037
      %v1039 = vpop.f32.mrb[0].mxu0
      %1040 = vmatprep.mubr.bf16.mxu0 0
      %1041 = vmatmul.mubr.bf16.gmra.mrb[0].mxu0 %v549
      %v1042 = vpop.f32.mrb[0].mxu0
      %v1043 = vadd.f32 %v882, %v1042
      %v1044 = vpop.f32.mrb[0].mxu0
      %v1045 = vpop.f32.mrb[0].mxu0
      %v1046 = vadd.f32 %v885, %v1045
      %v1047 = vpop.f32.mrb[0].mxu0
      %1048 = vmatprep.mubr.bf16.mxu0 0
      %1049 = vmatmul.mubr.bf16.gmra.mrb[0].mxu0 %v552
      %v1050 = vpop.f32.mrb[0].mxu0
      %v1051 = vadd.f32 %v890, %v1050
      %v1052 = vpop.f32.mrb[0].mxu0
      %v1053 = vpop.f32.mrb[0].mxu0
      %v1054 = vadd.f32 %v893, %v1053
      %v1055 = vpop.f32.mrb[0].mxu0
      %1056 = vmatprep.mubr.bf16.mxu0 0
      %1057 = vmatmul.mubr.bf16.gmra.mrb[0].mxu0 %v555
      %v1058 = vpop.f32.mrb[0].mxu0
      %v1059 = vadd.f32 %v898, %v1058
      %v1060 = vpop.f32.mrb[0].mxu0
      %v1061 = vpop.f32.mrb[0].mxu0
      %v1062 = vadd.f32 %v901, %v1061
      %v1063 = vpop.f32.mrb[0].mxu0
      %1064 = vmatprep.mubr.bf16.mxu0 0
      %1065 = vmatmul.mubr.bf16.gmra.mrb[0].mxu0 %v558
      %v1066 = vpop.f32.mrb[0].mxu0
      %v1067 = vadd.f32 %v906, %v1066
      %v1068 = vpop.f32.mrb[0].mxu0
      %v1069 = vpop.f32.mrb[0].mxu0
      %v1070 = vadd.f32 %v909, %v1069
      %v1071 = vpop.f32.mrb[0].mxu0
      %1072 = vdwg.mxu0
      %v1073 = vmax.f32 %v947, 0.0
      %v1074 = vmax.f32 %v950, 0.0
      %v1075 = vmax.f32 %v955, 0.0
      %v1076 = vmax.f32 %v958, 0.0
      %v1077 = vmax.f32 %v963, 0.0
      %v1078 = vmax.f32 %v966, 0.0
      %v1079 = vmax.f32 %v971, 0.0
      %v1080 = vmax.f32 %v974, 0.0
      %v1081 = vmax.f32 %v979, 0.0
      %v1082 = vmax.f32 %v982, 0.0
      %v1083 = vmax.f32 %v987, 0.0
      %v1084 = vmax.f32 %v990, 0.0
      %v1085 = vmax.f32 %v995, 0.0
      %v1086 = vmax.f32 %v998, 0.0
      %v1087 = vmax.f32 %v1003, 0.0
      %v1088 = vmax.f32 %v1006, 0.0
      %v1089 = vmax.f32 %v1011, 0.0
      %v1090 = vmax.f32 %v1014, 0.0
      %v1091 = vmax.f32 %v1019, 0.0
      %v1092 = vmax.f32 %v1022, 0.0
      %v1093 = vmax.f32 %v1027, 0.0
      %v1094 = vmax.f32 %v1030, 0.0
      %v1095 = vmax.f32 %v1035, 0.0
      %v1096 = vmax.f32 %v1038, 0.0
      %v1097 = vmax.f32 %v1043, 0.0
      %v1098 = vmax.f32 %v1046, 0.0
      %v1099 = vmax.f32 %v1051, 0.0
      %v1100 = vmax.f32 %v1054, 0.0
      %v1101 = vmax.f32 %v1059, 0.0
      %v1102 = vmax.f32 %v1062, 0.0
      %v1103 = vmax.f32 %v1067, 0.0
      %v1104 = vmax.f32 %v1070, 0.0
      %v1105 = vpack.c.bf16 %v1074, %v1073
      %v1106 = vpack.c.bf16 %v1076, %v1075
      %v1107 = vpack.c.bf16 %v1078, %v1077
      %v1108 = vpack.c.bf16 %v1080, %v1079
      %v1109 = vpack.c.bf16 %v1082, %v1081
      %v1110 = vpack.c.bf16 %v1084, %v1083
      %v1111 = vpack.c.bf16 %v1086, %v1085
      %v1112 = vpack.c.bf16 %v1088, %v1087
      %v1113 = vpack.c.bf16 %v1090, %v1089
      %v1114 = vpack.c.bf16 %v1092, %v1091
      %v1115 = vpack.c.bf16 %v1094, %v1093
      %v1116 = vpack.c.bf16 %v1096, %v1095
      %v1117 = vpack.c.bf16 %v1098, %v1097
      %v1118 = vpack.c.bf16 %v1100, %v1099
      %v1119 = vpack.c.bf16 %v1102, %v1101
      %v1120 = vpack.c.bf16 %v1104, %v1103
      %v1121 = vld [vmem:[%s3] sm:$0xf]
      %v1122 = vld [vmem:[%s3 + $0x4] sm:$0xf]
      %v1123 = vld [vmem:[%s3 + $0x8] sm:$0xf]
      %v1124 = vld [vmem:[%s3 + $0xc] sm:$0xf]
      %v1125 = vld [vmem:[%s4] sm:$0x1]
      %v1127 = vlaneseq
      %v1128 = vshrl.u32 %v1127, 7
      %v1129 = vsub.s32 0, %v1128
      %v1130 = vrot.slane %v1125, %v1129
      %v1136 = vunpack.c.l.b16 %v1121
      %v1137 = vunpack.c.l.b16 %v1122
      %v1138 = vunpack.c.l.b16 %v1123
      %v1139 = vunpack.c.l.b16 %v1124
      %v1140 = vpack.c.b16 %v1137, %v1136
      %v1141 = vpack.c.b16 %v1139, %v1138
      %vm1144 = vcmask 261120
      %v1146 = vsel %vm1144, %v1105, 0
      %v1149 = vsel %vm1144, %v1106, 0
      %v1152 = vsel %vm1144, %v1107, 0
      %v1155 = vsel %vm1144, %v1108, 0
      %v1158 = vsel %vm1144, %v1109, 0
      %v1161 = vsel %vm1144, %v1110, 0
      %v1164 = vsel %vm1144, %v1111, 0
      %v1167 = vsel %vm1144, %v1112, 0
      %v1170 = vsel %vm1144, %v1113, 0
      %v1173 = vsel %vm1144, %v1114, 0
      %v1176 = vsel %vm1144, %v1115, 0
      %v1179 = vsel %vm1144, %v1116, 0
      %v1182 = vsel %vm1144, %v1117, 0
      %v1185 = vsel %vm1144, %v1118, 0
      %v1188 = vsel %vm1144, %v1119, 0
      %v1191 = vsel %vm1144, %v1120, 0
      %1193 = vmatprep.subr.bf16.mxu0 0
      %1194 = vmatpush1.bf16.msra.mxu0 %v1140
      %1195 = vmatprep.subr.bf16.mxu0 0
      %1196 = vmatpush1.bf16.msra.mxu0 %v1141
      %1197 = vmatprep.subr.bf16.mxu0 0
      %1198 = vmatpush1.bf16.msra.mxu0 0
      %1199 = vmatprep.subr.bf16.mxu0 0
      %1200 = vmatpush1.bf16.msra.mxu0 0
      %1201 = vmatprep.subr.bf16.mxu0 0
      %1202 = vmatpush1.bf16.msra.mxu0 0
      %1203 = vmatprep.subr.bf16.mxu0 0
      %1204 = vmatpush1.bf16.msra.mxu0 0
      %1205 = vmatprep.subr.bf16.mxu0 0
      %1206 = vmatpush1.bf16.msra.mxu0 0
      %1207 = vmatprep.subr.bf16.mxu0 0
      %1208 = vmatpush1.bf16.msra.mxu0 0
      %1209 = vmatprep.subr.bf16.mxu0 0
      %1210 = vmatpush1.bf16.msra.mxu0 0
      %1211 = vmatprep.subr.bf16.mxu0 0
      %1212 = vmatpush1.bf16.msra.mxu0 0
      %1213 = vmatprep.subr.bf16.mxu0 0
      %1214 = vmatpush1.bf16.msra.mxu0 0
      %1215 = vmatprep.subr.bf16.mxu0 0
      %1216 = vmatpush1.bf16.msra.mxu0 0
      %1217 = vmatprep.subr.bf16.mxu0 0
      %1218 = vmatpush1.bf16.msra.mxu0 0
      %1219 = vmatprep.subr.bf16.mxu0 0
      %1220 = vmatpush1.bf16.msra.mxu0 0
      %1221 = vmatprep.subr.bf16.mxu0 0
      %1222 = vmatpush1.bf16.msra.mxu0 0
      %1223 = vmatprep.subr.bf16.mxu0 0
      %1224 = vmatpush1.bf16.msra.mxu0 0
      %1225 = vmatprep.mubr.bf16.mxu0 0
      %1226 = vmatmul.mubr.bf16.gmra.mrb[0].mxu0 %v1146
      %v1227 = vpop.f32.mrb[0].mxu0
      %v1228 = vadd.f32 %v1130, %v1227
      %v1229 = vpop.f32.mrb[0].mxu0
      %v1230 = vpop.f32.mrb[0].mxu0
      %v1231 = vadd.f32 %v1130, %v1230
      %v1232 = vpop.f32.mrb[0].mxu0
      %1233 = vmatprep.mubr.bf16.mxu0 0
      %1234 = vmatmul.mubr.bf16.gmra.mrb[0].mxu0 %v1149
      %v1235 = vpop.f32.mrb[0].mxu0
      %v1236 = vadd.f32 %v1130, %v1235
      %v1237 = vpop.f32.mrb[0].mxu0
      %v1238 = vpop.f32.mrb[0].mxu0
      %v1239 = vadd.f32 %v1130, %v1238
      %v1240 = vpop.f32.mrb[0].mxu0
      %1241 = vmatprep.mubr.bf16.mxu0 0
      %1242 = vmatmul.mubr.bf16.gmra.mrb[0].mxu0 %v1152
      %v1243 = vpop.f32.mrb[0].mxu0
      %v1244 = vadd.f32 %v1130, %v1243
      %v1245 = vpop.f32.mrb[0].mxu0
      %v1246 = vpop.f32.mrb[0].mxu0
      %v1247 = vadd.f32 %v1130, %v1246
      %v1248 = vpop.f32.mrb[0].mxu0
      %1249 = vmatprep.mubr.bf16.mxu0 0
      %1250 = vmatmul.mubr.bf16.gmra.mrb[0].mxu0 %v1155
      %v1251 = vpop.f32.mrb[0].mxu0
      %v1252 = vadd.f32 %v1130, %v1251
      %v1253 = vpop.f32.mrb[0].mxu0
      %v1254 = vpop.f32.mrb[0].mxu0
      %v1255 = vadd.f32 %v1130, %v1254
      %v1256 = vpop.f32.mrb[0].mxu0
      %1257 = vmatprep.mubr.bf16.mxu0 0
      %1258 = vmatmul.mubr.bf16.gmra.mrb[0].mxu0 %v1158
      %v1259 = vpop.f32.mrb[0].mxu0
      %v1260 = vadd.f32 %v1130, %v1259
      %v1261 = vpop.f32.mrb[0].mxu0
      %v1262 = vpop.f32.mrb[0].mxu0
      %v1263 = vadd.f32 %v1130, %v1262
      %v1264 = vpop.f32.mrb[0].mxu0
      %1265 = vmatprep.mubr.bf16.mxu0 0
      %1266 = vmatmul.mubr.bf16.gmra.mrb[0].mxu0 %v1161
      %v1267 = vpop.f32.mrb[0].mxu0
      %v1268 = vadd.f32 %v1130, %v1267
      %v1269 = vpop.f32.mrb[0].mxu0
      %v1270 = vpop.f32.mrb[0].mxu0
      %v1271 = vadd.f32 %v1130, %v1270
      %v1272 = vpop.f32.mrb[0].mxu0
      %1273 = vmatprep.mubr.bf16.mxu0 0
      %1274 = vmatmul.mubr.bf16.gmra.mrb[0].mxu0 %v1164
      %v1275 = vpop.f32.mrb[0].mxu0
      %v1276 = vadd.f32 %v1130, %v1275
      %v1277 = vpop.f32.mrb[0].mxu0
      %v1278 = vpop.f32.mrb[0].mxu0
      %v1279 = vadd.f32 %v1130, %v1278
      %v1280 = vpop.f32.mrb[0].mxu0
      %1281 = vmatprep.mubr.bf16.mxu0 0
      %1282 = vmatmul.mubr.bf16.gmra.mrb[0].mxu0 %v1167
      %v1283 = vpop.f32.mrb[0].mxu0
      %v1284 = vadd.f32 %v1130, %v1283
      %v1285 = vpop.f32.mrb[0].mxu0
      %v1286 = vpop.f32.mrb[0].mxu0
      %v1287 = vadd.f32 %v1130, %v1286
      %v1288 = vpop.f32.mrb[0].mxu0
      %1289 = vmatprep.mubr.bf16.mxu0 0
      %1290 = vmatmul.mubr.bf16.gmra.mrb[0].mxu0 %v1170
      %v1291 = vpop.f32.mrb[0].mxu0
      %v1292 = vadd.f32 %v1130, %v1291
      %v1293 = vpop.f32.mrb[0].mxu0
      %v1294 = vpop.f32.mrb[0].mxu0
      %v1295 = vadd.f32 %v1130, %v1294
      %v1296 = vpop.f32.mrb[0].mxu0
      %1297 = vmatprep.mubr.bf16.mxu0 0
      %1298 = vmatmul.mubr.bf16.gmra.mrb[0].mxu0 %v1173
      %v1299 = vpop.f32.mrb[0].mxu0
      %v1300 = vadd.f32 %v1130, %v1299
      %v1301 = vpop.f32.mrb[0].mxu0
      %v1302 = vpop.f32.mrb[0].mxu0
      %v1303 = vadd.f32 %v1130, %v1302
      %v1304 = vpop.f32.mrb[0].mxu0
      %1305 = vmatprep.mubr.bf16.mxu0 0
      %1306 = vmatmul.mubr.bf16.gmra.mrb[0].mxu0 %v1176
      %v1307 = vpop.f32.mrb[0].mxu0
      %v1308 = vadd.f32 %v1130, %v1307
      %v1309 = vpop.f32.mrb[0].mxu0
      %v1310 = vpop.f32.mrb[0].mxu0
      %v1311 = vadd.f32 %v1130, %v1310
      %v1312 = vpop.f32.mrb[0].mxu0
      %1313 = vmatprep.mubr.bf16.mxu0 0
      %1314 = vmatmul.mubr.bf16.gmra.mrb[0].mxu0 %v1179
      %v1315 = vpop.f32.mrb[0].mxu0
      %v1316 = vadd.f32 %v1130, %v1315
      %v1317 = vpop.f32.mrb[0].mxu0
      %v1318 = vpop.f32.mrb[0].mxu0
      %v1319 = vadd.f32 %v1130, %v1318
      %v1320 = vpop.f32.mrb[0].mxu0
      %1321 = vmatprep.mubr.bf16.mxu0 0
      %1322 = vmatmul.mubr.bf16.gmra.mrb[0].mxu0 %v1182
      %v1323 = vpop.f32.mrb[0].mxu0
      %v1324 = vadd.f32 %v1130, %v1323
      %v1325 = vpop.f32.mrb[0].mxu0
      %v1326 = vpop.f32.mrb[0].mxu0
      %v1327 = vadd.f32 %v1130, %v1326
      %v1328 = vpop.f32.mrb[0].mxu0
      %1329 = vmatprep.mubr.bf16.mxu0 0
      %1330 = vmatmul.mubr.bf16.gmra.mrb[0].mxu0 %v1185
      %v1331 = vpop.f32.mrb[0].mxu0
      %v1332 = vadd.f32 %v1130, %v1331
      %v1333 = vpop.f32.mrb[0].mxu0
      %v1334 = vpop.f32.mrb[0].mxu0
      %v1335 = vadd.f32 %v1130, %v1334
      %v1336 = vpop.f32.mrb[0].mxu0
      %1337 = vmatprep.mubr.bf16.mxu0 0
      %1338 = vmatmul.mubr.bf16.gmra.mrb[0].mxu0 %v1188
      %v1339 = vpop.f32.mrb[0].mxu0
      %v1340 = vadd.f32 %v1130, %v1339
      %v1341 = vpop.f32.mrb[0].mxu0
      %v1342 = vpop.f32.mrb[0].mxu0
      %v1343 = vadd.f32 %v1130, %v1342
      %v1344 = vpop.f32.mrb[0].mxu0
      %1345 = vmatprep.mubr.bf16.mxu0 0
      %1346 = vmatmul.mubr.bf16.gmra.mrb[0].mxu0 %v1191
      %v1347 = vpop.f32.mrb[0].mxu0
      %v1348 = vadd.f32 %v1130, %v1347
      %v1349 = vpop.f32.mrb[0].mxu0
      %v1350 = vpop.f32.mrb[0].mxu0
      %v1351 = vadd.f32 %v1130, %v1350
      %v1352 = vpop.f32.mrb[0].mxu0
      %1353 = vdwg.mxu0
      %1354 = vst [vmem:[%s229] sm:$0xff] %v1228
      %1355 = vst [vmem:[%s229 + $0x8] sm:$0xff] %v1231
      %1356 = vst [vmem:[%s229 + $0x10] sm:$0xff] %v1236
      %1357 = vst [vmem:[%s229 + $0x18] sm:$0xff] %v1239
      %1358 = vst [vmem:[%s229 + $0x20] sm:$0xff] %v1244
      %1359 = vst [vmem:[%s229 + $0x28] sm:$0xff] %v1247
      %1360 = vst [vmem:[%s229 + $0x30] sm:$0xff] %v1252
      %1361 = vst [vmem:[%s229 + $0x38] sm:$0xff] %v1255
      %1362 = vst [vmem:[%s229 + $0x40] sm:$0xff] %v1260
      %1363 = vst [vmem:[%s229 + $0x48] sm:$0xff] %v1263
      %1364 = vst [vmem:[%s229 + $0x50] sm:$0xff] %v1268
      %1365 = vst [vmem:[%s229 + $0x58] sm:$0xff] %v1271
      %1366 = vst [vmem:[%s229 + $0x60] sm:$0xff] %v1276
      %1367 = vst [vmem:[%s229 + $0x68] sm:$0xff] %v1279
      %1368 = vst [vmem:[%s229 + $0x70] sm:$0xff] %v1284
      %1369 = vst [vmem:[%s229 + $0x78] sm:$0xff] %v1287
      %1370 = vst [vmem:[%s229 + $0x80] sm:$0xff] %v1292
      %1371 = vst [vmem:[%s229 + $0x88] sm:$0xff] %v1295
      %1372 = vst [vmem:[%s229 + $0x90] sm:$0xff] %v1300
      %1373 = vst [vmem:[%s229 + $0x98] sm:$0xff] %v1303
      %1374 = vst [vmem:[%s229 + $0xa0] sm:$0xff] %v1308
      %1375 = vst [vmem:[%s229 + $0xa8] sm:$0xff] %v1311
      %1376 = vst [vmem:[%s229 + $0xb0] sm:$0xff] %v1316
      %1377 = vst [vmem:[%s229 + $0xb8] sm:$0xff] %v1319
      %1378 = vst [vmem:[%s229 + $0xc0] sm:$0xff] %v1324
      %1379 = vst [vmem:[%s229 + $0xc8] sm:$0xff] %v1327
      %1380 = vst [vmem:[%s229 + $0xd0] sm:$0xff] %v1332
      %1381 = vst [vmem:[%s229 + $0xd8] sm:$0xff] %v1335
      %1382 = vst [vmem:[%s229 + $0xe0] sm:$0xff] %v1340
      %1383 = vst [vmem:[%s229 + $0xe8] sm:$0xff] %v1343
      %1384 = vst [vmem:[%s229 + $0xf0] sm:$0xff] %v1348
      %1385 = vst [vmem:[%s229 + $0xf8] sm:$0xff] %v1351
      %s1386 = smul.u32 32, %s16
      %p1387 = scmp.lt.s32.totalorder %s1386, 63
      %s1388 = scalar_select %p1387, %s1386, 63
      %s1389 = smul.addr %s1388, 8
      %s1390 = scalar_lea.vmem %s5, %s1389
      // Predicated region
      $region41: #{generalized_rcnn_forward.8} parent=39 // pred_check
        %p1391 = pneg %p144
      $region42: #{generalized_rcnn_forward.8} parent=39 // pred_check_branch
        %1393 = sbr.rel (%p1391) target = $region44
      $region43: #{generalized_rcnn_forward.8} parent=39 // pred_region
        %s1394 = smul.u32 32, %s16
      $region44: #{generalized_rcnn_forward.8} parent=39 // pred_fallthru
        _
    $region40: #{generalized_rcnn_forward.8} parent=5 // pred_fallthru
      _
    %p1395 = scmp.le.s32.totalorder 2, %s11
    // Predicated region
    $region45: #{generalized_rcnn_forward.8} parent=5 // pred_check
      %p1396 = pneg %p1395
    $region46: #{generalized_rcnn_forward.8} parent=5 // pred_check_branch
      %1398 = sbr.rel (%p1396) target = $region48
    $region47: #{generalized_rcnn_forward.8} parent=5 // pred_region
      %s1399 = ssub.s32 %s11, 2
      // Predicated region
      $region49: #{generalized_rcnn_forward.8} parent=47 // pred_check
        %p1400 = pneg %p150
      $region50: #{generalized_rcnn_forward.8} parent=47 // pred_check_branch
        %1402 = sbr.rel (%p1400) target = $region52
      $region51: #{generalized_rcnn_forward.8} parent=47 // pred_region
        %s1403 = smul.u32 32, %s17
        %p1404 = scmp.lt.s32.totalorder %s1403, 63
        %s1405 = scalar_select %p1404, %s1403, 63
        %s1406 = smul.addr %s1405, 8
        %s1407 = scalar_lea.vmem %s5, %s1406
      $region52: #{generalized_rcnn_forward.8} parent=47 // pred_fallthru
        _
    $region48: #{generalized_rcnn_forward.8} parent=5 // pred_fallthru
      _
  $region6: #{generalized_rcnn_forward.8} parent=0 // loop_footer
    %s15 = sadd.s32 1, %s11
  $region7: #{generalized_rcnn_forward.8} parent=0 // loop_footer_branch
    %10 = sbr.rel target = $region3
  $region8: #{generalized_rcnn_forward.8} parent=0 // loop_exit
    _

// kernel: generalized_rcnn_forward.7
$region0: #{generalized_rcnn_forward.7}
  #allocation0 [shape = 'u32[]', space=smem, size = 0x4, offset = 0x4, fixed_abs, tag = 'smem constant byte address 0x4 - core index']
  #allocation1 [shape = 'u32[144,128]{1,0:T(1,128)}', space=vmem, size = 0x12000, scoped, tag = 'internal scratch']
  %s0 = inlined_call_operand.vmem [shape: bf16[512,384], index: 0, kind: input, shape index: {}]
  %s1 = inlined_call_operand.vmem [shape: bf16[384,32], index: 1, kind: input, shape index: {}]
  %s2 = inlined_call_operand.vmem [shape: f32[1,32], index: 2, kind: input, shape index: {}]
  %s3 = inlined_call_operand.vmem [shape: f32[512,32], index: 3, kind: output, shape index: {}]
  %s4 = sld [smem:[#allocation0]]
  $region45: #{generalized_rcnn_forward.7} parent=0
    _
  %s6 = ssub.s32 1, %s4
  %s7 = scalar_select 0, %s6, %s4
  loop: start=0, step=1, limit=4
  $region2: #{generalized_rcnn_forward.7} parent=0 // loop_pre_header
    _
  $region3: #{generalized_rcnn_forward.7} parent=0 // loop_header
    %s9 = sphi 0, %s13
    %p10 = scmp.ge.s32.totalorder %s9, 4
    %s19 = sphi 0, %s21
    %s22 = sphi 0, %s19
    %s23 = sphi 0, %s22
    %s39 = sphi 0, %s23
    %s43 = sphi 0, %s43
    %s45 = sphi 0, %s43
    %s46 = sphi 0, %s45
    %s60 = sphi 0, %s46
    %s64 = sphi 0, %s64
    %s66 = sphi 0, %s64
    %s67 = sphi 0, %s66
    %s81 = sphi 0, %s67
    %s87 = sphi 0, %s89
    %s90 = sphi 0, %s87
    %s91 = sphi 0, %s90
    %s107 = sphi 0, %s91
  $region4: #{generalized_rcnn_forward.7} parent=0 // loop_header_branch
    %12 = sbr.rel (%p10) target = $region8
  $region5: #{generalized_rcnn_forward.7} parent=0 // loop_body
    %s14 = ssub.s32 %s9, 1
    %s15 = ssub.s32 %s9, 2
    %s16 = sadd.s32 %s9, 1
    %s17 = ssub.s32 %s9, %s16
    %p18 = scmp.eq.s32.totalorder %s17, 0
    %s20 = sadd.s32 %s19, 1
    %s21 = scalar_select %p18, %s19, %s20
    %p24 = pneg %p18
    %p25 = scmp.eq.s32.totalorder %s9, 1
    %p26 = por %p24, %p25
    %p27 = scmp.ne.s32.totalorder %s19, %s22
    %p28 = scmp.eq.s32.totalorder %s9, 0
    %p29 = por %p27, %p28
    %p30 = scmp.ne.s32.totalorder %s19, %s22
    %p31 = scmp.eq.s32.totalorder %s14, 1
    %p32 = por %p30, %p31
    %p33 = scmp.ne.s32.totalorder %s22, %s23
    %p34 = scmp.eq.s32.totalorder %s14, 0
    %p35 = por %p33, %p34
    %p36 = scmp.ne.s32.totalorder %s22, %s23
    %p37 = scmp.eq.s32.totalorder %s15, 1
    %p38 = por %p36, %p37
    %p40 = scmp.ne.s32.totalorder %s23, %s39
    %p41 = scmp.eq.s32.totalorder %s15, 0
    %p42 = por %p40, %p41
    %s44 = sadd.s32 %s43, 1
    %p47 = scmp.eq.s32.totalorder %s9, 1
    %p48 = scmp.ne.s32.totalorder %s43, %s45
    %p49 = scmp.eq.s32.totalorder %s9, 0
    %p50 = por %p48, %p49
    %p51 = scmp.ne.s32.totalorder %s43, %s45
    %p52 = scmp.eq.s32.totalorder %s14, 1
    %p53 = por %p51, %p52
    %p54 = scmp.ne.s32.totalorder %s45, %s46
    %p55 = scmp.eq.s32.totalorder %s14, 0
    %p56 = por %p54, %p55
    %p57 = scmp.ne.s32.totalorder %s45, %s46
    %p58 = scmp.eq.s32.totalorder %s15, 1
    %p59 = por %p57, %p58
    %p61 = scmp.ne.s32.totalorder %s46, %s60
    %p62 = scmp.eq.s32.totalorder %s15, 0
    %p63 = por %p61, %p62
    %s65 = sadd.s32 %s64, 1
    %p68 = scmp.eq.s32.totalorder %s9, 1
    %p69 = scmp.ne.s32.totalorder %s64, %s66
    %p70 = scmp.eq.s32.totalorder %s9, 0
    %p71 = por %p69, %p70
    %p72 = scmp.ne.s32.totalorder %s64, %s66
    %p73 = scmp.eq.s32.totalorder %s14, 1
    %p74 = por %p72, %p73
    %p75 = scmp.ne.s32.totalorder %s66, %s67
    %p76 = scmp.eq.s32.totalorder %s14, 0
    %p77 = por %p75, %p76
    %p78 = scmp.ne.s32.totalorder %s66, %s67
    %p79 = scmp.eq.s32.totalorder %s15, 1
    %p80 = por %p78, %p79
    %p82 = scmp.ne.s32.totalorder %s67, %s81
    %p83 = scmp.eq.s32.totalorder %s15, 0
    %p84 = por %p82, %p83
    %s85 = ssub.s32 %s9, %s16
    %p86 = scmp.eq.s32.totalorder %s85, 0
    %s88 = sadd.s32 %s87, 1
    %s89 = scalar_select %p86, %s87, %s88
    %p92 = pneg %p86
    %p93 = scmp.eq.s32.totalorder %s9, 1
    %p94 = por %p92, %p93
    %p95 = scmp.ne.s32.totalorder %s87, %s90
    %p96 = scmp.eq.s32.totalorder %s9, 0
    %p97 = por %p95, %p96
    %p98 = scmp.ne.s32.totalorder %s87, %s90
    %p99 = scmp.eq.s32.totalorder %s14, 1
    %p100 = por %p98, %p99
    %p101 = scmp.ne.s32.totalorder %s90, %s91
    %p102 = scmp.eq.s32.totalorder %s14, 0
    %p103 = por %p101, %p102
    %p104 = scmp.ne.s32.totalorder %s90, %s91
    %p105 = scmp.eq.s32.totalorder %s15, 1
    %p106 = por %p104, %p105
    %p108 = scmp.ne.s32.totalorder %s91, %s107
    %p109 = scmp.eq.s32.totalorder %s15, 0
    %p110 = por %p108, %p109
    %p111 = scmp.le.s32.totalorder 1, %s9
    %p112 = scmp.lt.s32.totalorder %s9, 3
    %p113 = pnand %p111, %p112
    %p114 = pneg %p113
    // Predicated region
    $region9: #{generalized_rcnn_forward.7} parent=5 // pred_check
      _
    $region10: #{generalized_rcnn_forward.7} parent=5 // pred_check_branch
      %116 = sbr.rel (%p113) target = $region12
    $region11: #{generalized_rcnn_forward.7} parent=5 // pred_region
      %s117 = ssub.s32 %s9, 1
      // Predicated region
      $region13: #{generalized_rcnn_forward.7} parent=11 // pred_check
        %p118 = pneg %p56
      $region14: #{generalized_rcnn_forward.7} parent=11 // pred_check_branch
        %120 = sbr.rel (%p118) target = $region16
      $region15: #{generalized_rcnn_forward.7} parent=11 // pred_region
        _
      $region16: #{generalized_rcnn_forward.7} parent=11 // pred_fallthru
        _
      // Predicated region
      $region17: #{generalized_rcnn_forward.7} parent=11 // pred_check
        %p121 = pneg %p77
      $region18: #{generalized_rcnn_forward.7} parent=11 // pred_check_branch
        %123 = sbr.rel (%p121) target = $region20
      $region19: #{generalized_rcnn_forward.7} parent=11 // pred_region
        _
      $region20: #{generalized_rcnn_forward.7} parent=11 // pred_fallthru
        _
    $region12: #{generalized_rcnn_forward.7} parent=5 // pred_fallthru
      _
    %p124 = scmp.lt.s32.totalorder %s9, 2
    // Predicated region
    $region21: #{generalized_rcnn_forward.7} parent=5 // pred_check
      %p125 = pneg %p124
    $region22: #{generalized_rcnn_forward.7} parent=5 // pred_check_branch
      %127 = sbr.rel (%p125) target = $region24
    $region23: #{generalized_rcnn_forward.7} parent=5 // pred_region
      // Predicated region
      $region25: #{generalized_rcnn_forward.7} parent=23 // pred_check
        %p128 = pneg %p29
      $region26: #{generalized_rcnn_forward.7} parent=23 // pred_check_branch
        %130 = sbr.rel (%p128) target = $region28
      $region27: #{generalized_rcnn_forward.7} parent=23 // pred_region
        %s131 = smul.u32 32, %s9
        %p132 = scmp.lt.s32.totalorder %s131, 63
        %s133 = scalar_select %p132, %s131, 63
        %s134 = smul.addr %s133, 3
        %s135 = smul.addr %s134, 4
        %s136 = scalar_lea.vmem %s0, %s135
        %s137 = smul.u32 32, %s9
      $region28: #{generalized_rcnn_forward.7} parent=23 // pred_fallthru
        _
    $region24: #{generalized_rcnn_forward.7} parent=5 // pred_fallthru
      _
    %p138 = scmp.le.s32.totalorder 1, %s9
    %p139 = scmp.lt.s32.totalorder %s9, 3
    %p140 = pnand %p138, %p139
    %p141 = pneg %p140
    // Predicated region
    $region29: #{generalized_rcnn_forward.7} parent=5 // pred_check
      _
    $region30: #{generalized_rcnn_forward.7} parent=5 // pred_check_branch
      %143 = sbr.rel (%p140) target = $region32
    $region31: #{generalized_rcnn_forward.7} parent=5 // pred_region
      %s144 = ssub.s32 %s9, 1
      %s145 = smul.u32 32, %s14
      %p146 = scmp.lt.s32.totalorder %s145, 63
      %s147 = scalar_select %p146, %s145, 63
      %s148 = smul.addr %s147, 3
      %s149 = smul.addr %s148, 4
      %s150 = scalar_lea.vmem %s0, %s149
      %p151 = pneg %p35
      %p152 = pneg %p32
      %p153 = pneg %p56
      %p154 = pneg %p53
      %p155 = pneg %p77
      %p156 = pneg %p74
      %p157 = pneg %p103
      %p158 = pneg %p100
      %s159 = smul.u32 32, %s14
      %p160 = scmp.lt.s32.totalorder %s159, 63
      %s161 = scalar_select %p160, %s159, 63
      %s162 = smul.addr %s161, 8
      %s163 = scalar_lea.vmem %s3, %s162
      %s164 = smul.u32 32, %s14
      %p165 = scmp.lt.s32.totalorder %s164, 63
      %s166 = scalar_select %p165, %s164, 63
      %s167 = smul.addr %s166, 3
      %s168 = smul.addr %s167, 4
      %s169 = scalar_lea.vmem %s0, %s168
      %s170 = smul.u32 32, %s14
      %s171 = smul.u32 32, %s14
      %p172 = scmp.lt.s32.totalorder %s171, 63
      %s173 = scalar_select %p172, %s171, 63
      %s174 = smul.addr %s173, 8
      %s175 = scalar_lea.vmem %s3, %s174
      %s176 = smul.u32 32, %s14
      %v178 = vld [vmem:[%s169] sm:$0xff]
      %v179 = vld [vmem:[%s169 + $0x8] sm:$0xf]
      %v180 = vld [vmem:[%s169 + $0xc] sm:$0xff]
      %v181 = vld [vmem:[%s169 + $0x14] sm:$0xf]
      %v182 = vld [vmem:[%s169 + $0x18] sm:$0xff]
      %v183 = vld [vmem:[%s169 + $0x20] sm:$0xf]
      %v184 = vld [vmem:[%s169 + $0x24] sm:$0xff]
      %v185 = vld [vmem:[%s169 + $0x2c] sm:$0xf]
      %v186 = vld [vmem:[%s169 + $0x30] sm:$0xff]
      %v187 = vld [vmem:[%s169 + $0x38] sm:$0xf]
      %v188 = vld [vmem:[%s169 + $0x3c] sm:$0xff]
      %v189 = vld [vmem:[%s169 + $0x44] sm:$0xf]
      %v190 = vld [vmem:[%s169 + $0x48] sm:$0xff]
      %v191 = vld [vmem:[%s169 + $0x50] sm:$0xf]
      %v192 = vld [vmem:[%s169 + $0x54] sm:$0xff]
      %v193 = vld [vmem:[%s169 + $0x5c] sm:$0xf]
      %v194 = vld [vmem:[%s169 + $0x60] sm:$0xff]
      %v195 = vld [vmem:[%s169 + $0x68] sm:$0xf]
      %v196 = vld [vmem:[%s169 + $0x6c] sm:$0xff]
      %v197 = vld [vmem:[%s169 + $0x74] sm:$0xf]
      %v198 = vld [vmem:[%s169 + $0x78] sm:$0xff]
      %v199 = vld [vmem:[%s169 + $0x80] sm:$0xf]
      %v200 = vld [vmem:[%s169 + $0x84] sm:$0xff]
      %v201 = vld [vmem:[%s169 + $0x8c] sm:$0xf]
      %v202 = vld [vmem:[%s169 + $0x90] sm:$0xff]
      %v203 = vld [vmem:[%s169 + $0x98] sm:$0xf]
      %v204 = vld [vmem:[%s169 + $0x9c] sm:$0xff]
      %v205 = vld [vmem:[%s169 + $0xa4] sm:$0xf]
      %v206 = vld [vmem:[%s169 + $0xa8] sm:$0xff]
      %v207 = vld [vmem:[%s169 + $0xb0] sm:$0xf]
      %v208 = vld [vmem:[%s169 + $0xb4] sm:$0xff]
      %v209 = vld [vmem:[%s169 + $0xbc] sm:$0xf]
      %v210 = vld [vmem:[%s169 + $0xc0] sm:$0xff]
      %v211 = vld [vmem:[%s169 + $0xc8] sm:$0xf]
      %v212 = vld [vmem:[%s169 + $0xcc] sm:$0xff]
      %v213 = vld [vmem:[%s169 + $0xd4] sm:$0xf]
      %v214 = vld [vmem:[%s169 + $0xd8] sm:$0xff]
      %v215 = vld [vmem:[%s169 + $0xe0] sm:$0xf]
      %v216 = vld [vmem:[%s169 + $0xe4] sm:$0xff]
      %v217 = vld [vmem:[%s169 + $0xec] sm:$0xf]
      %v218 = vld [vmem:[%s169 + $0xf0] sm:$0xff]
      %v219 = vld [vmem:[%s169 + $0xf8] sm:$0xf]
      %v220 = vld [vmem:[%s169 + $0xfc] sm:$0xff]
      %v221 = vld [vmem:[%s169 + $0x104] sm:$0xf]
      %v222 = vld [vmem:[%s169 + $0x108] sm:$0xff]
      %v223 = vld [vmem:[%s169 + $0x110] sm:$0xf]
      %v224 = vld [vmem:[%s169 + $0x114] sm:$0xff]
      %v225 = vld [vmem:[%s169 + $0x11c] sm:$0xf]
      %v226 = vld [vmem:[%s169 + $0x120] sm:$0xff]
      %v227 = vld [vmem:[%s169 + $0x128] sm:$0xf]
      %v228 = vld [vmem:[%s169 + $0x12c] sm:$0xff]
      %v229 = vld [vmem:[%s169 + $0x134] sm:$0xf]
      %v230 = vld [vmem:[%s169 + $0x138] sm:$0xff]
      %v231 = vld [vmem:[%s169 + $0x140] sm:$0xf]
      %v232 = vld [vmem:[%s169 + $0x144] sm:$0xff]
      %v233 = vld [vmem:[%s169 + $0x14c] sm:$0xf]
      %v234 = vld [vmem:[%s169 + $0x150] sm:$0xff]
      %v235 = vld [vmem:[%s169 + $0x158] sm:$0xf]
      %v236 = vld [vmem:[%s169 + $0x15c] sm:$0xff]
      %v237 = vld [vmem:[%s169 + $0x164] sm:$0xf]
      %v238 = vld [vmem:[%s169 + $0x168] sm:$0xff]
      %v239 = vld [vmem:[%s169 + $0x170] sm:$0xf]
      %v240 = vld [vmem:[%s169 + $0x174] sm:$0xff]
      %v241 = vld [vmem:[%s169 + $0x17c] sm:$0xf]
      %v242 = vld [vmem:[%s1] sm:$0xf]
      %v243 = vld [vmem:[%s1 + $0x4] sm:$0xf]
      %v244 = vld [vmem:[%s1 + $0x8] sm:$0xf]
      %v245 = vld [vmem:[%s1 + $0xc] sm:$0xf]
      %v246 = vld [vmem:[%s1 + $0x10] sm:$0xf]
      %v247 = vld [vmem:[%s1 + $0x14] sm:$0xf]
      %v248 = vld [vmem:[%s1 + $0x18] sm:$0xf]
      %v249 = vld [vmem:[%s1 + $0x1c] sm:$0xf]
      %v250 = vld [vmem:[%s1 + $0x20] sm:$0xf]
      %v251 = vld [vmem:[%s1 + $0x24] sm:$0xf]
      %v252 = vld [vmem:[%s1 + $0x28] sm:$0xf]
      %v253 = vld [vmem:[%s1 + $0x2c] sm:$0xf]
      %v254 = vld [vmem:[%s1 + $0x30] sm:$0xf]
      %v255 = vld [vmem:[%s1 + $0x34] sm:$0xf]
      %v256 = vld [vmem:[%s1 + $0x38] sm:$0xf]
      %v257 = vld [vmem:[%s1 + $0x3c] sm:$0xf]
      %v258 = vld [vmem:[%s1 + $0x40] sm:$0xf]
      %v259 = vld [vmem:[%s1 + $0x44] sm:$0xf]
      %v260 = vld [vmem:[%s1 + $0x48] sm:$0xf]
      %v261 = vld [vmem:[%s1 + $0x4c] sm:$0xf]
      %v262 = vld [vmem:[%s1 + $0x50] sm:$0xf]
      %v263 = vld [vmem:[%s1 + $0x54] sm:$0xf]
      %v264 = vld [vmem:[%s1 + $0x58] sm:$0xf]
      %v265 = vld [vmem:[%s1 + $0x5c] sm:$0xf]
      %v266 = vld [vmem:[%s1 + $0x60] sm:$0xf]
      %v267 = vld [vmem:[%s1 + $0x64] sm:$0xf]
      %v268 = vld [vmem:[%s1 + $0x68] sm:$0xf]
      %v269 = vld [vmem:[%s1 + $0x6c] sm:$0xf]
      %v270 = vld [vmem:[%s1 + $0x70] sm:$0xf]
      %v271 = vld [vmem:[%s1 + $0x74] sm:$0xf]
      %v272 = vld [vmem:[%s1 + $0x78] sm:$0xf]
      %v273 = vld [vmem:[%s1 + $0x7c] sm:$0xf]
      %v274 = vld [vmem:[%s1 + $0x80] sm:$0xf]
      %v275 = vld [vmem:[%s1 + $0x84] sm:$0xf]
      %v276 = vld [vmem:[%s1 + $0x88] sm:$0xf]
      %v277 = vld [vmem:[%s1 + $0x8c] sm:$0xf]
      %v278 = vld [vmem:[%s1 + $0x90] sm:$0xf]
      %v279 = vld [vmem:[%s1 + $0x94] sm:$0xf]
      %v280 = vld [vmem:[%s1 + $0x98] sm:$0xf]
      %v281 = vld [vmem:[%s1 + $0x9c] sm:$0xf]
      %v282 = vld [vmem:[%s1 + $0xa0] sm:$0xf]
      %v283 = vld [vmem:[%s1 + $0xa4] sm:$0xf]
      %v284 = vld [vmem:[%s1 + $0xa8] sm:$0xf]
      %v285 = vld [vmem:[%s1 + $0xac] sm:$0xf]
      %v286 = vld [vmem:[%s1 + $0xb0] sm:$0xf]
      %v287 = vld [vmem:[%s1 + $0xb4] sm:$0xf]
      %v288 = vld [vmem:[%s1 + $0xb8] sm:$0xf]
      %v289 = vld [vmem:[%s1 + $0xbc] sm:$0xf]
      %v290 = vld [vmem:[%s2] sm:$0x1]
      %v292 = vlaneseq
      %v293 = vshrl.u32 %v292, 7
      %v294 = vsub.s32 0, %v293
      %v295 = vrot.slane %v290, %v294
      %v361 = vunpack.c.l.b16 %v178
      %v362 = vunpack.c.h.b16 %v178
      %v363 = vunpack.c.l.b16 %v179
      %v364 = vunpack.c.l.b16 %v180
      %v365 = vunpack.c.h.b16 %v180
      %v366 = vunpack.c.l.b16 %v181
      %v367 = vunpack.c.l.b16 %v182
      %v368 = vunpack.c.h.b16 %v182
      %v369 = vunpack.c.l.b16 %v183
      %v370 = vunpack.c.l.b16 %v184
      %v371 = vunpack.c.h.b16 %v184
      %v372 = vunpack.c.l.b16 %v185
      %v373 = vunpack.c.l.b16 %v186
      %v374 = vunpack.c.h.b16 %v186
      %v375 = vunpack.c.l.b16 %v187
      %v376 = vunpack.c.l.b16 %v188
      %v377 = vunpack.c.h.b16 %v188
      %v378 = vunpack.c.l.b16 %v189
      %v379 = vunpack.c.l.b16 %v190
      %v380 = vunpack.c.h.b16 %v190
      %v381 = vunpack.c.l.b16 %v191
      %v382 = vunpack.c.l.b16 %v192
      %v383 = vunpack.c.h.b16 %v192
      %v384 = vunpack.c.l.b16 %v193
      %v385 = vunpack.c.l.b16 %v194
      %v386 = vunpack.c.h.b16 %v194
      %v387 = vunpack.c.l.b16 %v195
      %v388 = vunpack.c.l.b16 %v196
      %v389 = vunpack.c.h.b16 %v196
      %v390 = vunpack.c.l.b16 %v197
      %v391 = vunpack.c.l.b16 %v198
      %v392 = vunpack.c.h.b16 %v198
      %v393 = vunpack.c.l.b16 %v199
      %v394 = vunpack.c.l.b16 %v200
      %v395 = vunpack.c.h.b16 %v200
      %v396 = vunpack.c.l.b16 %v201
      %v397 = vunpack.c.l.b16 %v202
      %v398 = vunpack.c.h.b16 %v202
      %v399 = vunpack.c.l.b16 %v203
      %v400 = vunpack.c.l.b16 %v204
      %v401 = vunpack.c.h.b16 %v204
      %v402 = vunpack.c.l.b16 %v205
      %v403 = vunpack.c.l.b16 %v206
      %v404 = vunpack.c.h.b16 %v206
      %v405 = vunpack.c.l.b16 %v207
      %v406 = vunpack.c.l.b16 %v208
      %v407 = vunpack.c.h.b16 %v208
      %v408 = vunpack.c.l.b16 %v209
      %v409 = vunpack.c.l.b16 %v210
      %v410 = vunpack.c.h.b16 %v210
      %v411 = vunpack.c.l.b16 %v211
      %v412 = vunpack.c.l.b16 %v212
      %v413 = vunpack.c.h.b16 %v212
      %v414 = vunpack.c.l.b16 %v213
      %v415 = vunpack.c.l.b16 %v214
      %v416 = vunpack.c.h.b16 %v214
      %v417 = vunpack.c.l.b16 %v215
      %v418 = vunpack.c.l.b16 %v216
      %v419 = vunpack.c.h.b16 %v216
      %v420 = vunpack.c.l.b16 %v217
      %v421 = vunpack.c.l.b16 %v218
      %v422 = vunpack.c.h.b16 %v218
      %v423 = vunpack.c.l.b16 %v219
      %v424 = vunpack.c.l.b16 %v220
      %v425 = vunpack.c.h.b16 %v220
      %v426 = vunpack.c.l.b16 %v221
      %v427 = vunpack.c.l.b16 %v222
      %v428 = vunpack.c.h.b16 %v222
      %v429 = vunpack.c.l.b16 %v223
      %v430 = vunpack.c.l.b16 %v224
      %v431 = vunpack.c.h.b16 %v224
      %v432 = vunpack.c.l.b16 %v225
      %v433 = vunpack.c.l.b16 %v226
      %v434 = vunpack.c.h.b16 %v226
      %v435 = vunpack.c.l.b16 %v227
      %v436 = vunpack.c.l.b16 %v228
      %v437 = vunpack.c.h.b16 %v228
      %v438 = vunpack.c.l.b16 %v229
      %v439 = vunpack.c.l.b16 %v230
      %v440 = vunpack.c.h.b16 %v230
      %v441 = vunpack.c.l.b16 %v231
      %v442 = vunpack.c.l.b16 %v232
      %v443 = vunpack.c.h.b16 %v232
      %v444 = vunpack.c.l.b16 %v233
      %v445 = vunpack.c.l.b16 %v234
      %v446 = vunpack.c.h.b16 %v234
      %v447 = vunpack.c.l.b16 %v235
      %v448 = vunpack.c.l.b16 %v236
      %v449 = vunpack.c.h.b16 %v236
      %v450 = vunpack.c.l.b16 %v237
      %v451 = vunpack.c.l.b16 %v238
      %v452 = vunpack.c.h.b16 %v238
      %v453 = vunpack.c.l.b16 %v239
      %v454 = vunpack.c.l.b16 %v240
      %v455 = vunpack.c.h.b16 %v240
      %v456 = vunpack.c.l.b16 %v241
      %v457 = vpack.c.b16 %v364, %v361
      %v458 = vpack.c.b16 %v365, %v362
      %v459 = vpack.c.b16 %v366, %v363
      %v460 = vpack.c.b16 %v370, %v367
      %v461 = vpack.c.b16 %v371, %v368
      %v462 = vpack.c.b16 %v372, %v369
      %v463 = vpack.c.b16 %v376, %v373
      %v464 = vpack.c.b16 %v377, %v374
      %v465 = vpack.c.b16 %v378, %v375
      %v466 = vpack.c.b16 %v382, %v379
      %v467 = vpack.c.b16 %v383, %v380
      %v468 = vpack.c.b16 %v384, %v381
      %v469 = vpack.c.b16 %v388, %v385
      %v470 = vpack.c.b16 %v389, %v386
      %v471 = vpack.c.b16 %v390, %v387
      %v472 = vpack.c.b16 %v394, %v391
      %v473 = vpack.c.b16 %v395, %v392
      %v474 = vpack.c.b16 %v396, %v393
      %v475 = vpack.c.b16 %v400, %v397
      %v476 = vpack.c.b16 %v401, %v398
      %v477 = vpack.c.b16 %v402, %v399
      %v478 = vpack.c.b16 %v406, %v403
      %v479 = vpack.c.b16 %v407, %v404
      %v480 = vpack.c.b16 %v408, %v405
      %v481 = vpack.c.b16 %v412, %v409
      %v482 = vpack.c.b16 %v413, %v410
      %v483 = vpack.c.b16 %v414, %v411
      %v484 = vpack.c.b16 %v418, %v415
      %v485 = vpack.c.b16 %v419, %v416
      %v486 = vpack.c.b16 %v420, %v417
      %v487 = vpack.c.b16 %v424, %v421
      %v488 = vpack.c.b16 %v425, %v422
      %v489 = vpack.c.b16 %v426, %v423
      %v490 = vpack.c.b16 %v430, %v427
      %v491 = vpack.c.b16 %v431, %v428
      %v492 = vpack.c.b16 %v432, %v429
      %v493 = vpack.c.b16 %v436, %v433
      %v494 = vpack.c.b16 %v437, %v434
      %v495 = vpack.c.b16 %v438, %v435
      %v496 = vpack.c.b16 %v442, %v439
      %v497 = vpack.c.b16 %v443, %v440
      %v498 = vpack.c.b16 %v444, %v441
      %v499 = vpack.c.b16 %v448, %v445
      %v500 = vpack.c.b16 %v449, %v446
      %v501 = vpack.c.b16 %v450, %v447
      %v502 = vpack.c.b16 %v454, %v451
      %v503 = vpack.c.b16 %v455, %v452
      %v504 = vpack.c.b16 %v456, %v453
      %v601 = vunpack.c.l.b16 %v242
      %v602 = vunpack.c.l.b16 %v243
      %v603 = vunpack.c.l.b16 %v244
      %v604 = vunpack.c.l.b16 %v245
      %v605 = vunpack.c.l.b16 %v246
      %v606 = vunpack.c.l.b16 %v247
      %v607 = vunpack.c.l.b16 %v248
      %v608 = vunpack.c.l.b16 %v249
      %v609 = vunpack.c.l.b16 %v250
      %v610 = vunpack.c.l.b16 %v251
      %v611 = vunpack.c.l.b16 %v252
      %v612 = vunpack.c.l.b16 %v253
      %v613 = vunpack.c.l.b16 %v254
      %v614 = vunpack.c.l.b16 %v255
      %v615 = vunpack.c.l.b16 %v256
      %v616 = vunpack.c.l.b16 %v257
      %v617 = vunpack.c.l.b16 %v258
      %v618 = vunpack.c.l.b16 %v259
      %v619 = vunpack.c.l.b16 %v260
      %v620 = vunpack.c.l.b16 %v261
      %v621 = vunpack.c.l.b16 %v262
      %v622 = vunpack.c.l.b16 %v263
      %v623 = vunpack.c.l.b16 %v264
      %v624 = vunpack.c.l.b16 %v265
      %v625 = vunpack.c.l.b16 %v266
      %v626 = vunpack.c.l.b16 %v267
      %v627 = vunpack.c.l.b16 %v268
      %v628 = vunpack.c.l.b16 %v269
      %v629 = vunpack.c.l.b16 %v270
      %v630 = vunpack.c.l.b16 %v271
      %v631 = vunpack.c.l.b16 %v272
      %v632 = vunpack.c.l.b16 %v273
      %v633 = vunpack.c.l.b16 %v274
      %v634 = vunpack.c.l.b16 %v275
      %v635 = vunpack.c.l.b16 %v276
      %v636 = vunpack.c.l.b16 %v277
      %v637 = vunpack.c.l.b16 %v278
      %v638 = vunpack.c.l.b16 %v279
      %v639 = vunpack.c.l.b16 %v280
      %v640 = vunpack.c.l.b16 %v281
      %v641 = vunpack.c.l.b16 %v282
      %v642 = vunpack.c.l.b16 %v283
      %v643 = vunpack.c.l.b16 %v284
      %v644 = vunpack.c.l.b16 %v285
      %v645 = vunpack.c.l.b16 %v286
      %v646 = vunpack.c.l.b16 %v287
      %v647 = vunpack.c.l.b16 %v288
      %v648 = vunpack.c.l.b16 %v289
      %v649 = vpack.c.b16 %v602, %v601
      %v650 = vpack.c.b16 %v604, %v603
      %v651 = vpack.c.b16 %v606, %v605
      %v652 = vpack.c.b16 %v608, %v607
      %v653 = vpack.c.b16 %v610, %v609
      %v654 = vpack.c.b16 %v612, %v611
      %v655 = vpack.c.b16 %v614, %v613
      %v656 = vpack.c.b16 %v616, %v615
      %v657 = vpack.c.b16 %v618, %v617
      %v658 = vpack.c.b16 %v620, %v619
      %v659 = vpack.c.b16 %v622, %v621
      %v660 = vpack.c.b16 %v624, %v623
      %v661 = vpack.c.b16 %v626, %v625
      %v662 = vpack.c.b16 %v628, %v627
      %v663 = vpack.c.b16 %v630, %v629
      %v664 = vpack.c.b16 %v632, %v631
      %v665 = vpack.c.b16 %v634, %v633
      %v666 = vpack.c.b16 %v636, %v635
      %v667 = vpack.c.b16 %v638, %v637
      %v668 = vpack.c.b16 %v640, %v639
      %v669 = vpack.c.b16 %v642, %v641
      %v670 = vpack.c.b16 %v644, %v643
      %v671 = vpack.c.b16 %v646, %v645
      %v672 = vpack.c.b16 %v648, %v647
      %697 = vmatprep.subr.bf16.mxu0 0
      %698 = vmatpush1.bf16.msra.mxu0 %v649
      %699 = vmatprep.subr.bf16.mxu0 0
      %700 = vmatpush1.bf16.msra.mxu0 %v650
      %701 = vmatprep.subr.bf16.mxu0 0
      %702 = vmatpush1.bf16.msra.mxu0 %v651
      %703 = vmatprep.subr.bf16.mxu0 0
      %704 = vmatpush1.bf16.msra.mxu0 %v652
      %705 = vmatprep.subr.bf16.mxu0 0
      %706 = vmatpush1.bf16.msra.mxu0 %v653
      %707 = vmatprep.subr.bf16.mxu0 0
      %708 = vmatpush1.bf16.msra.mxu0 %v654
      %709 = vmatprep.subr.bf16.mxu0 0
      %710 = vmatpush1.bf16.msra.mxu0 %v655
      %711 = vmatprep.subr.bf16.mxu0 0
      %712 = vmatpush1.bf16.msra.mxu0 %v656
      %713 = vmatprep.subr.bf16.mxu0 0
      %714 = vmatpush1.bf16.msra.mxu0 %v657
      %715 = vmatprep.subr.bf16.mxu0 0
      %716 = vmatpush1.bf16.msra.mxu0 %v658
      %717 = vmatprep.subr.bf16.mxu0 0
      %718 = vmatpush1.bf16.msra.mxu0 %v659
      %719 = vmatprep.subr.bf16.mxu0 0
      %720 = vmatpush1.bf16.msra.mxu0 %v660
      %721 = vmatprep.subr.bf16.mxu0 0
      %722 = vmatpush1.bf16.msra.mxu0 %v661
      %723 = vmatprep.subr.bf16.mxu0 0
      %724 = vmatpush1.bf16.msra.mxu0 %v662
      %725 = vmatprep.subr.bf16.mxu0 0
      %726 = vmatpush1.bf16.msra.mxu0 %v663
      %727 = vmatprep.subr.bf16.mxu0 0
      %728 = vmatpush1.bf16.msra.mxu0 %v664
      %729 = vmatprep.mubr.bf16.mxu0 %v458
      %730 = vmatmul.mubr.bf16.gmra.mrb[0].mxu0 %v457
      %v731 = vpop.f32.mrb[0].mxu0
      %v732 = vadd.f32 %v295, %v731
      %v733 = vpop.f32.mrb[0].mxu0
      %v734 = vpop.f32.mrb[0].mxu0
      %v735 = vadd.f32 %v295, %v734
      %v736 = vpop.f32.mrb[0].mxu0
      %737 = vmatprep.mubr.bf16.mxu0 %v461
      %738 = vmatmul.mubr.bf16.gmra.mrb[0].mxu0 %v460
      %v739 = vpop.f32.mrb[0].mxu0
      %v740 = vadd.f32 %v295, %v739
      %v741 = vpop.f32.mrb[0].mxu0
      %v742 = vpop.f32.mrb[0].mxu0
      %v743 = vadd.f32 %v295, %v742
      %v744 = vpop.f32.mrb[0].mxu0
      %745 = vmatprep.mubr.bf16.mxu0 %v464
      %746 = vmatmul.mubr.bf16.gmra.mrb[0].mxu0 %v463
      %v747 = vpop.f32.mrb[0].mxu0
      %v748 = vadd.f32 %v295, %v747
      %v749 = vpop.f32.mrb[0].mxu0
      %v750 = vpop.f32.mrb[0].mxu0
      %v751 = vadd.f32 %v295, %v750
      %v752 = vpop.f32.mrb[0].mxu0
      %753 = vmatprep.mubr.bf16.mxu0 %v467
      %754 = vmatmul.mubr.bf16.gmra.mrb[0].mxu0 %v466
      %v755 = vpop.f32.mrb[0].mxu0
      %v756 = vadd.f32 %v295, %v755
      %v757 = vpop.f32.mrb[0].mxu0
      %v758 = vpop.f32.mrb[0].mxu0
      %v759 = vadd.f32 %v295, %v758
      %v760 = vpop.f32.mrb[0].mxu0
      %761 = vmatprep.mubr.bf16.mxu0 %v470
      %762 = vmatmul.mubr.bf16.gmra.mrb[0].mxu0 %v469
      %v763 = vpop.f32.mrb[0].mxu0
      %v764 = vadd.f32 %v295, %v763
      %v765 = vpop.f32.mrb[0].mxu0
      %v766 = vpop.f32.mrb[0].mxu0
      %v767 = vadd.f32 %v295, %v766
      %v768 = vpop.f32.mrb[0].mxu0
      %769 = vmatprep.mubr.bf16.mxu0 %v473
      %770 = vmatmul.mubr.bf16.gmra.mrb[0].mxu0 %v472
      %v771 = vpop.f32.mrb[0].mxu0
      %v772 = vadd.f32 %v295, %v771
      %v773 = vpop.f32.mrb[0].mxu0
      %v774 = vpop.f32.mrb[0].mxu0
      %v775 = vadd.f32 %v295, %v774
      %v776 = vpop.f32.mrb[0].mxu0
      %777 = vmatprep.mubr.bf16.mxu0 %v476
      %778 = vmatmul.mubr.bf16.gmra.mrb[0].mxu0 %v475
      %v779 = vpop.f32.mrb[0].mxu0
      %v780 = vadd.f32 %v295, %v779
      %v781 = vpop.f32.mrb[0].mxu0
      %v782 = vpop.f32.mrb[0].mxu0
      %v783 = vadd.f32 %v295, %v782
      %v784 = vpop.f32.mrb[0].mxu0
      %785 = vmatprep.mubr.bf16.mxu0 %v479
      %786 = vmatmul.mubr.bf16.gmra.mrb[0].mxu0 %v478
      %v787 = vpop.f32.mrb[0].mxu0
      %v788 = vadd.f32 %v295, %v787
      %v789 = vpop.f32.mrb[0].mxu0
      %v790 = vpop.f32.mrb[0].mxu0
      %v791 = vadd.f32 %v295, %v790
      %v792 = vpop.f32.mrb[0].mxu0
      %793 = vmatprep.mubr.bf16.mxu0 %v482
      %794 = vmatmul.mubr.bf16.gmra.mrb[0].mxu0 %v481
      %v795 = vpop.f32.mrb[0].mxu0
      %v796 = vadd.f32 %v295, %v795
      %v797 = vpop.f32.mrb[0].mxu0
      %v798 = vpop.f32.mrb[0].mxu0
      %v799 = vadd.f32 %v295, %v798
      %v800 = vpop.f32.mrb[0].mxu0
      %801 = vmatprep.mubr.bf16.mxu0 %v485
      %802 = vmatmul.mubr.bf16.gmra.mrb[0].mxu0 %v484
      %v803 = vpop.f32.mrb[0].mxu0
      %v804 = vadd.f32 %v295, %v803
      %v805 = vpop.f32.mrb[0].mxu0
      %v806 = vpop.f32.mrb[0].mxu0
      %v807 = vadd.f32 %v295, %v806
      %v808 = vpop.f32.mrb[0].mxu0
      %809 = vmatprep.mubr.bf16.mxu0 %v488
      %810 = vmatmul.mubr.bf16.gmra.mrb[0].mxu0 %v487
      %v811 = vpop.f32.mrb[0].mxu0
      %v812 = vadd.f32 %v295, %v811
      %v813 = vpop.f32.mrb[0].mxu0
      %v814 = vpop.f32.mrb[0].mxu0
      %v815 = vadd.f32 %v295, %v814
      %v816 = vpop.f32.mrb[0].mxu0
      %817 = vmatprep.mubr.bf16.mxu0 %v491
      %818 = vmatmul.mubr.bf16.gmra.mrb[0].mxu0 %v490
      %v819 = vpop.f32.mrb[0].mxu0
      %v820 = vadd.f32 %v295, %v819
      %v821 = vpop.f32.mrb[0].mxu0
      %v822 = vpop.f32.mrb[0].mxu0
      %v823 = vadd.f32 %v295, %v822
      %v824 = vpop.f32.mrb[0].mxu0
      %825 = vmatprep.mubr.bf16.mxu0 %v494
      %826 = vmatmul.mubr.bf16.gmra.mrb[0].mxu0 %v493
      %v827 = vpop.f32.mrb[0].mxu0
      %v828 = vadd.f32 %v295, %v827
      %v829 = vpop.f32.mrb[0].mxu0
      %v830 = vpop.f32.mrb[0].mxu0
      %v831 = vadd.f32 %v295, %v830
      %v832 = vpop.f32.mrb[0].mxu0
      %833 = vmatprep.mubr.bf16.mxu0 %v497
      %834 = vmatmul.mubr.bf16.gmra.mrb[0].mxu0 %v496
      %v835 = vpop.f32.mrb[0].mxu0
      %v836 = vadd.f32 %v295, %v835
      %v837 = vpop.f32.mrb[0].mxu0
      %v838 = vpop.f32.mrb[0].mxu0
      %v839 = vadd.f32 %v295, %v838
      %v840 = vpop.f32.mrb[0].mxu0
      %841 = vmatprep.mubr.bf16.mxu0 %v500
      %842 = vmatmul.mubr.bf16.gmra.mrb[0].mxu0 %v499
      %v843 = vpop.f32.mrb[0].mxu0
      %v844 = vadd.f32 %v295, %v843
      %v845 = vpop.f32.mrb[0].mxu0
      %v846 = vpop.f32.mrb[0].mxu0
      %v847 = vadd.f32 %v295, %v846
      %v848 = vpop.f32.mrb[0].mxu0
      %849 = vmatprep.mubr.bf16.mxu0 %v503
      %850 = vmatmul.mubr.bf16.gmra.mrb[0].mxu0 %v502
      %v851 = vpop.f32.mrb[0].mxu0
      %v852 = vadd.f32 %v295, %v851
      %v853 = vpop.f32.mrb[0].mxu0
      %v854 = vpop.f32.mrb[0].mxu0
      %v855 = vadd.f32 %v295, %v854
      %v856 = vpop.f32.mrb[0].mxu0
      %857 = vdwg.mxu0
      %858 = vmatprep.subr.bf16.mxu0 0
      %859 = vmatpush1.bf16.msra.mxu0 %v665
      %860 = vmatprep.subr.bf16.mxu0 0
      %861 = vmatpush1.bf16.msra.mxu0 %v666
      %862 = vmatprep.subr.bf16.mxu0 0
      %863 = vmatpush1.bf16.msra.mxu0 %v667
      %864 = vmatprep.subr.bf16.mxu0 0
      %865 = vmatpush1.bf16.msra.mxu0 %v668
      %866 = vmatprep.subr.bf16.mxu0 0
      %867 = vmatpush1.bf16.msra.mxu0 %v669
      %868 = vmatprep.subr.bf16.mxu0 0
      %869 = vmatpush1.bf16.msra.mxu0 %v670
      %870 = vmatprep.subr.bf16.mxu0 0
      %871 = vmatpush1.bf16.msra.mxu0 %v671
      %872 = vmatprep.subr.bf16.mxu0 0
      %873 = vmatpush1.bf16.msra.mxu0 %v672
      %874 = vmatprep.subr.bf16.mxu0 0
      %875 = vmatpush1.bf16.msra.mxu0 0
      %876 = vmatprep.subr.bf16.mxu0 0
      %877 = vmatpush1.bf16.msra.mxu0 0
      %878 = vmatprep.subr.bf16.mxu0 0
      %879 = vmatpush1.bf16.msra.mxu0 0
      %880 = vmatprep.subr.bf16.mxu0 0
      %881 = vmatpush1.bf16.msra.mxu0 0
      %882 = vmatprep.subr.bf16.mxu0 0
      %883 = vmatpush1.bf16.msra.mxu0 0
      %884 = vmatprep.subr.bf16.mxu0 0
      %885 = vmatpush1.bf16.msra.mxu0 0
      %886 = vmatprep.subr.bf16.mxu0 0
      %887 = vmatpush1.bf16.msra.mxu0 0
      %888 = vmatprep.subr.bf16.mxu0 0
      %889 = vmatpush1.bf16.msra.mxu0 0
      %890 = vmatprep.mubr.bf16.mxu0 0
      %891 = vmatmul.mubr.bf16.gmra.mrb[0].mxu0 %v459
      %v892 = vpop.f32.mrb[0].mxu0
      %v893 = vadd.f32 %v732, %v892
      %v894 = vpop.f32.mrb[0].mxu0
      %v895 = vpop.f32.mrb[0].mxu0
      %v896 = vadd.f32 %v735, %v895
      %v897 = vpop.f32.mrb[0].mxu0
      %898 = vmatprep.mubr.bf16.mxu0 0
      %899 = vmatmul.mubr.bf16.gmra.mrb[0].mxu0 %v462
      %v900 = vpop.f32.mrb[0].mxu0
      %v901 = vadd.f32 %v740, %v900
      %v902 = vpop.f32.mrb[0].mxu0
      %v903 = vpop.f32.mrb[0].mxu0
      %v904 = vadd.f32 %v743, %v903
      %v905 = vpop.f32.mrb[0].mxu0
      %906 = vmatprep.mubr.bf16.mxu0 0
      %907 = vmatmul.mubr.bf16.gmra.mrb[0].mxu0 %v465
      %v908 = vpop.f32.mrb[0].mxu0
      %v909 = vadd.f32 %v748, %v908
      %v910 = vpop.f32.mrb[0].mxu0
      %v911 = vpop.f32.mrb[0].mxu0
      %v912 = vadd.f32 %v751, %v911
      %v913 = vpop.f32.mrb[0].mxu0
      %914 = vmatprep.mubr.bf16.mxu0 0
      %915 = vmatmul.mubr.bf16.gmra.mrb[0].mxu0 %v468
      %v916 = vpop.f32.mrb[0].mxu0
      %v917 = vadd.f32 %v756, %v916
      %v918 = vpop.f32.mrb[0].mxu0
      %v919 = vpop.f32.mrb[0].mxu0
      %v920 = vadd.f32 %v759, %v919
      %v921 = vpop.f32.mrb[0].mxu0
      %922 = vmatprep.mubr.bf16.mxu0 0
      %923 = vmatmul.mubr.bf16.gmra.mrb[0].mxu0 %v471
      %v924 = vpop.f32.mrb[0].mxu0
      %v925 = vadd.f32 %v764, %v924
      %v926 = vpop.f32.mrb[0].mxu0
      %v927 = vpop.f32.mrb[0].mxu0
      %v928 = vadd.f32 %v767, %v927
      %v929 = vpop.f32.mrb[0].mxu0
      %930 = vmatprep.mubr.bf16.mxu0 0
      %931 = vmatmul.mubr.bf16.gmra.mrb[0].mxu0 %v474
      %v932 = vpop.f32.mrb[0].mxu0
      %v933 = vadd.f32 %v772, %v932
      %v934 = vpop.f32.mrb[0].mxu0
      %v935 = vpop.f32.mrb[0].mxu0
      %v936 = vadd.f32 %v775, %v935
      %v937 = vpop.f32.mrb[0].mxu0
      %938 = vmatprep.mubr.bf16.mxu0 0
      %939 = vmatmul.mubr.bf16.gmra.mrb[0].mxu0 %v477
      %v940 = vpop.f32.mrb[0].mxu0
      %v941 = vadd.f32 %v780, %v940
      %v942 = vpop.f32.mrb[0].mxu0
      %v943 = vpop.f32.mrb[0].mxu0
      %v944 = vadd.f32 %v783, %v943
      %v945 = vpop.f32.mrb[0].mxu0
      %946 = vmatprep.mubr.bf16.mxu0 0
      %947 = vmatmul.mubr.bf16.gmra.mrb[0].mxu0 %v480
      %v948 = vpop.f32.mrb[0].mxu0
      %v949 = vadd.f32 %v788, %v948
      %v950 = vpop.f32.mrb[0].mxu0
      %v951 = vpop.f32.mrb[0].mxu0
      %v952 = vadd.f32 %v791, %v951
      %v953 = vpop.f32.mrb[0].mxu0
      %954 = vmatprep.mubr.bf16.mxu0 0
      %955 = vmatmul.mubr.bf16.gmra.mrb[0].mxu0 %v483
      %v956 = vpop.f32.mrb[0].mxu0
      %v957 = vadd.f32 %v796, %v956
      %v958 = vpop.f32.mrb[0].mxu0
      %v959 = vpop.f32.mrb[0].mxu0
      %v960 = vadd.f32 %v799, %v959
      %v961 = vpop.f32.mrb[0].mxu0
      %962 = vmatprep.mubr.bf16.mxu0 0
      %963 = vmatmul.mubr.bf16.gmra.mrb[0].mxu0 %v486
      %v964 = vpop.f32.mrb[0].mxu0
      %v965 = vadd.f32 %v804, %v964
      %v966 = vpop.f32.mrb[0].mxu0
      %v967 = vpop.f32.mrb[0].mxu0
      %v968 = vadd.f32 %v807, %v967
      %v969 = vpop.f32.mrb[0].mxu0
      %970 = vmatprep.mubr.bf16.mxu0 0
      %971 = vmatmul.mubr.bf16.gmra.mrb[0].mxu0 %v489
      %v972 = vpop.f32.mrb[0].mxu0
      %v973 = vadd.f32 %v812, %v972
      %v974 = vpop.f32.mrb[0].mxu0
      %v975 = vpop.f32.mrb[0].mxu0
      %v976 = vadd.f32 %v815, %v975
      %v977 = vpop.f32.mrb[0].mxu0
      %978 = vmatprep.mubr.bf16.mxu0 0
      %979 = vmatmul.mubr.bf16.gmra.mrb[0].mxu0 %v492
      %v980 = vpop.f32.mrb[0].mxu0
      %v981 = vadd.f32 %v820, %v980
      %v982 = vpop.f32.mrb[0].mxu0
      %v983 = vpop.f32.mrb[0].mxu0
      %v984 = vadd.f32 %v823, %v983
      %v985 = vpop.f32.mrb[0].mxu0
      %986 = vmatprep.mubr.bf16.mxu0 0
      %987 = vmatmul.mubr.bf16.gmra.mrb[0].mxu0 %v495
      %v988 = vpop.f32.mrb[0].mxu0
      %v989 = vadd.f32 %v828, %v988
      %v990 = vpop.f32.mrb[0].mxu0
      %v991 = vpop.f32.mrb[0].mxu0
      %v992 = vadd.f32 %v831, %v991
      %v993 = vpop.f32.mrb[0].mxu0
      %994 = vmatprep.mubr.bf16.mxu0 0
      %995 = vmatmul.mubr.bf16.gmra.mrb[0].mxu0 %v498
      %v996 = vpop.f32.mrb[0].mxu0
      %v997 = vadd.f32 %v836, %v996
      %v998 = vpop.f32.mrb[0].mxu0
      %v999 = vpop.f32.mrb[0].mxu0
      %v1000 = vadd.f32 %v839, %v999
      %v1001 = vpop.f32.mrb[0].mxu0
      %1002 = vmatprep.mubr.bf16.mxu0 0
      %1003 = vmatmul.mubr.bf16.gmra.mrb[0].mxu0 %v501
      %v1004 = vpop.f32.mrb[0].mxu0
      %v1005 = vadd.f32 %v844, %v1004
      %v1006 = vpop.f32.mrb[0].mxu0
      %v1007 = vpop.f32.mrb[0].mxu0
      %v1008 = vadd.f32 %v847, %v1007
      %v1009 = vpop.f32.mrb[0].mxu0
      %1010 = vmatprep.mubr.bf16.mxu0 0
      %1011 = vmatmul.mubr.bf16.gmra.mrb[0].mxu0 %v504
      %v1012 = vpop.f32.mrb[0].mxu0
      %v1013 = vadd.f32 %v852, %v1012
      %v1014 = vpop.f32.mrb[0].mxu0
      %v1015 = vpop.f32.mrb[0].mxu0
      %v1016 = vadd.f32 %v855, %v1015
      %v1017 = vpop.f32.mrb[0].mxu0
      %1018 = vdwg.mxu0
      %v1019 = vmax.f32 %v893, 0.0
      %v1020 = vmax.f32 %v896, 0.0
      %v1021 = vmax.f32 %v901, 0.0
      %v1022 = vmax.f32 %v904, 0.0
      %v1023 = vmax.f32 %v909, 0.0
      %v1024 = vmax.f32 %v912, 0.0
      %v1025 = vmax.f32 %v917, 0.0
      %v1026 = vmax.f32 %v920, 0.0
      %v1027 = vmax.f32 %v925, 0.0
      %v1028 = vmax.f32 %v928, 0.0
      %v1029 = vmax.f32 %v933, 0.0
      %v1030 = vmax.f32 %v936, 0.0
      %v1031 = vmax.f32 %v941, 0.0
      %v1032 = vmax.f32 %v944, 0.0
      %v1033 = vmax.f32 %v949, 0.0
      %v1034 = vmax.f32 %v952, 0.0
      %v1035 = vmax.f32 %v957, 0.0
      %v1036 = vmax.f32 %v960, 0.0
      %v1037 = vmax.f32 %v965, 0.0
      %v1038 = vmax.f32 %v968, 0.0
      %v1039 = vmax.f32 %v973, 0.0
      %v1040 = vmax.f32 %v976, 0.0
      %v1041 = vmax.f32 %v981, 0.0
      %v1042 = vmax.f32 %v984, 0.0
      %v1043 = vmax.f32 %v989, 0.0
      %v1044 = vmax.f32 %v992, 0.0
      %v1045 = vmax.f32 %v997, 0.0
      %v1046 = vmax.f32 %v1000, 0.0
      %v1047 = vmax.f32 %v1005, 0.0
      %v1048 = vmax.f32 %v1008, 0.0
      %v1049 = vmax.f32 %v1013, 0.0
      %v1050 = vmax.f32 %v1016, 0.0
      %vm1051 = vcmask 261120
      %1052 = vst.msk [vmem:[%s175] sm:$0xff] %vm1051, %v1019
      %1053 = vst.msk [vmem:[%s175 + $0x8] sm:$0xff] %vm1051, %v1020
      %1054 = vst.msk [vmem:[%s175 + $0x10] sm:$0xff] %vm1051, %v1021
      %1055 = vst.msk [vmem:[%s175 + $0x18] sm:$0xff] %vm1051, %v1022
      %1056 = vst.msk [vmem:[%s175 + $0x20] sm:$0xff] %vm1051, %v1023
      %1057 = vst.msk [vmem:[%s175 + $0x28] sm:$0xff] %vm1051, %v1024
      %1058 = vst.msk [vmem:[%s175 + $0x30] sm:$0xff] %vm1051, %v1025
      %1059 = vst.msk [vmem:[%s175 + $0x38] sm:$0xff] %vm1051, %v1026
      %1060 = vst.msk [vmem:[%s175 + $0x40] sm:$0xff] %vm1051, %v1027
      %1061 = vst.msk [vmem:[%s175 + $0x48] sm:$0xff] %vm1051, %v1028
      %1062 = vst.msk [vmem:[%s175 + $0x50] sm:$0xff] %vm1051, %v1029
      %1063 = vst.msk [vmem:[%s175 + $0x58] sm:$0xff] %vm1051, %v1030
      %1064 = vst.msk [vmem:[%s175 + $0x60] sm:$0xff] %vm1051, %v1031
      %1065 = vst.msk [vmem:[%s175 + $0x68] sm:$0xff] %vm1051, %v1032
      %1066 = vst.msk [vmem:[%s175 + $0x70] sm:$0xff] %vm1051, %v1033
      %1067 = vst.msk [vmem:[%s175 + $0x78] sm:$0xff] %vm1051, %v1034
      %1068 = vst.msk [vmem:[%s175 + $0x80] sm:$0xff] %vm1051, %v1035
      %1069 = vst.msk [vmem:[%s175 + $0x88] sm:$0xff] %vm1051, %v1036
      %1070 = vst.msk [vmem:[%s175 + $0x90] sm:$0xff] %vm1051, %v1037
      %1071 = vst.msk [vmem:[%s175 + $0x98] sm:$0xff] %vm1051, %v1038
      %1072 = vst.msk [vmem:[%s175 + $0xa0] sm:$0xff] %vm1051, %v1039
      %1073 = vst.msk [vmem:[%s175 + $0xa8] sm:$0xff] %vm1051, %v1040
      %1074 = vst.msk [vmem:[%s175 + $0xb0] sm:$0xff] %vm1051, %v1041
      %1075 = vst.msk [vmem:[%s175 + $0xb8] sm:$0xff] %vm1051, %v1042
      %1076 = vst.msk [vmem:[%s175 + $0xc0] sm:$0xff] %vm1051, %v1043
      %1077 = vst.msk [vmem:[%s175 + $0xc8] sm:$0xff] %vm1051, %v1044
      %1078 = vst.msk [vmem:[%s175 + $0xd0] sm:$0xff] %vm1051, %v1045
      %1079 = vst.msk [vmem:[%s175 + $0xd8] sm:$0xff] %vm1051, %v1046
      %1080 = vst.msk [vmem:[%s175 + $0xe0] sm:$0xff] %vm1051, %v1047
      %1081 = vst.msk [vmem:[%s175 + $0xe8] sm:$0xff] %vm1051, %v1048
      %1082 = vst.msk [vmem:[%s175 + $0xf0] sm:$0xff] %vm1051, %v1049
      %1083 = vst.msk [vmem:[%s175 + $0xf8] sm:$0xff] %vm1051, %v1050
      %s1084 = smul.u32 32, %s14
      %p1085 = scmp.lt.s32.totalorder %s1084, 63
      %s1086 = scalar_select %p1085, %s1084, 63
      %s1087 = smul.addr %s1086, 8
      %s1088 = scalar_lea.vmem %s3, %s1087
      // Predicated region
      $region33: #{generalized_rcnn_forward.7} parent=31 // pred_check
        %p1089 = pneg %p100
      $region34: #{generalized_rcnn_forward.7} parent=31 // pred_check_branch
        %1091 = sbr.rel (%p1089) target = $region36
      $region35: #{generalized_rcnn_forward.7} parent=31 // pred_region
        %s1092 = smul.u32 32, %s14
      $region36: #{generalized_rcnn_forward.7} parent=31 // pred_fallthru
        _
    $region32: #{generalized_rcnn_forward.7} parent=5 // pred_fallthru
      _
    %p1093 = scmp.le.s32.totalorder 2, %s9
    // Predicated region
    $region37: #{generalized_rcnn_forward.7} parent=5 // pred_check
      %p1094 = pneg %p1093
    $region38: #{generalized_rcnn_forward.7} parent=5 // pred_check_branch
      %1096 = sbr.rel (%p1094) target = $region40
    $region39: #{generalized_rcnn_forward.7} parent=5 // pred_region
      %s1097 = ssub.s32 %s9, 2
      // Predicated region
      $region41: #{generalized_rcnn_forward.7} parent=39 // pred_check
        %p1098 = pneg %p106
      $region42: #{generalized_rcnn_forward.7} parent=39 // pred_check_branch
        %1100 = sbr.rel (%p1098) target = $region44
      $region43: #{generalized_rcnn_forward.7} parent=39 // pred_region
        %s1101 = smul.u32 32, %s15
        %p1102 = scmp.lt.s32.totalorder %s1101, 63
        %s1103 = scalar_select %p1102, %s1101, 63
        %s1104 = smul.addr %s1103, 8
        %s1105 = scalar_lea.vmem %s3, %s1104
      $region44: #{generalized_rcnn_forward.7} parent=39 // pred_fallthru
        _
    $region40: #{generalized_rcnn_forward.7} parent=5 // pred_fallthru
      _
  $region6: #{generalized_rcnn_forward.7} parent=0 // loop_footer
    %s13 = sadd.s32 1, %s9
  $region7: #{generalized_rcnn_forward.7} parent=0 // loop_footer_branch
    %8 = sbr.rel target = $region3
  $region8: #{generalized_rcnn_forward.7} parent=0 // loop_exit
    _

// kernel: custom-call
$region0: #{custom-call}
  #allocation0 [shape = 'u32[8,128]{1,0}', space=vmem, size = 0x1000, scoped, tag = 'scratch']
  #allocation1 [shape = 'u32[8,128]{1,0}', space=vmem, size = 0x1000, scoped, tag = 'scratch']
  #allocation2 [shape = 'u32[8,128]{1,0}', space=vmem, size = 0x1000, scoped, tag = 'scratch']
  #allocation3 [shape = 'u32[8,128]{1,0}', space=vmem, size = 0x1000, scoped, tag = 'scratch']
  #allocation4 [shape = 'u32[8,128]{1,0}', space=vmem, size = 0x1000, scoped, tag = 'scratch']
  #allocation5 [shape = 'u32[8,128]{1,0}', space=vmem, size = 0x1000, scoped, tag = 'scratch']
  #allocation6 [shape = 'u32[8,128]{1,0}', space=vmem, size = 0x1000, scoped, tag = 'scratch']
  %s0 = inlined_call_operand.vmem [shape: f32[2,768], index: 0, kind: input, shape index: {}]
  %s1 = inlined_call_operand.hbm [shape: f32[2,8], index: 1, kind: output, shape index: {0}]
  %s2 = inlined_call_operand.vmem [shape: s32[2,8], index: 2, kind: output, shape index: {1}]
  %3 = xla_tuple %s1, %s2
  %4 = xla_tuple 2147483648, 2147483647
  $region1: #{custom-call} parent=0
    #allocation7 [shape = 'u8[4096]{0}', space=vmem, size = 0x1000, scoped, tag = 'operand span for operand 1']
    #allocation8 [shape = 'u8[1024]{0}', space=vmem, size = 0x400, scoped, tag = 'packed  for operand 1']
    #allocation9 [shape = 's32[1]{0}', space=sflag, size = 0x4, scoped, tag = 'scoped memory for custom-call']
    #allocation10 [shape = 'u8[4096]{0}', space=vmem, size = 0x1000, scoped, tag = 'operand span for operand 2']
    #allocation11 [shape = 'u8[1024]{0}', space=vmem, size = 0x400, scoped, tag = 'packed  for operand 2']
    #allocation12 [shape = 'f32[8,2]{1,0:T(8,128)}', space=vmem, size = 0x1000, scoped, tag = 'scoped memory for custom-call']
    #allocation13 [shape = 'f32[8,2]{1,0:T(8,128)}', space=vmem, size = 0x1000, scoped, tag = 'scoped memory for custom-call']
    #allocation14 [shape = 's32[8,2]{1,0:T(8,128)}', space=vmem, size = 0x1000, scoped, tag = 'scoped memory for custom-call']
    #allocation15 [shape = 's32[8,2]{1,0:T(8,128)}', space=vmem, size = 0x1000, scoped, tag = 'scoped memory for custom-call']
    %5 = vsyncpa [#allocation9], 0
    %6 = xla_tuple [#allocation7], [#allocation10]
    %7 = vst [vmem:[#allocation12] sm:$0xff] 2147483648
    %8 = vst [vmem:[#allocation14] sm:$0xff] 2147483647
    %9 = xla_tuple [#allocation12], [#allocation14]
    %10 = xla_tuple [#allocation13], [#allocation15]
    $region2: #{custom-call} parent=1
      #allocation16 [shape = 'u8[8192]{0}', space=vmem, size = 0x2000, scoped, tag = 'operand span for operand 0']
      #allocation17 [shape = 's32[2048]{0}', space=vmem, size = 0x2000, scoped, tag = 'scoped memory for custom-call']
      // Predicated region
      $region3: #{custom-call} parent=2 // pred_check
        _
      $region4: #{custom-call} parent=2 // pred_check_branch
        %12 = sbr.rel (0) target = $region6
      $region5: #{custom-call} parent=2 // pred_region
        // Predicated region
        $region7: #{custom-call} parent=5 // pred_check
          _
        $region8: #{custom-call} parent=5 // pred_check_branch
          %14 = sbr.rel (0) target = $region10
        $region9: #{custom-call} parent=5 // pred_region
          // Predicated region
          $region11: #{custom-call} parent=9 // pred_check
            _
          $region12: #{custom-call} parent=9 // pred_check_branch
            %16 = sbr.rel (0) target = $region14
          $region13: #{custom-call} parent=9 // pred_region
            %s17 = scalar_lea.vmem %s0, 8
            %s18 = scalar_lea.vmem [#allocation16], 8
            loop: start=0, step=1, limit=1
            $region15: #{custom-call} parent=13 // loop_pre_header
              _
            $region16: #{custom-call} parent=13 // loop_header
              %s20 = sphi 0, %s24
              %p21 = scmp.ge.s32.totalorder %s20, 1
              %s25 = sphi %s0, %s0
              %s26 = sphi [#allocation16], [#allocation16]
            $region17: #{custom-call} parent=13 // loop_header_branch
              %23 = sbr.rel (%p21) target = $region21
            $region18: #{custom-call} parent=13 // loop_body
              %v27 = vld [vmem:[%s25] sm:$0xff]
              %28 = vst [vmem:[%s26] sm:$0xff] %v27
            $region19: #{custom-call} parent=13 // loop_footer
              %s24 = sadd.s32 1, %s20
            $region20: #{custom-call} parent=13 // loop_footer_branch
              %19 = sbr.rel target = $region16
            $region21: #{custom-call} parent=13 // loop_exit
              _
            loop: start=0, step=1, limit=1
            $region22: #{custom-call} parent=13 // loop_pre_header
              _
            $region23: #{custom-call} parent=13 // loop_header
              %s31 = sphi 0, %s35
              %p32 = scmp.ge.s32.totalorder %s31, 1
              %s36 = sphi %s17, %s17
              %s37 = sphi %s18, %s18
            $region24: #{custom-call} parent=13 // loop_header_branch
              %34 = sbr.rel (%p32) target = $region28
            $region25: #{custom-call} parent=13 // loop_body
              %v38 = vld [vmem:[%s36] sm:$0xf]
              %39 = vst [vmem:[%s37] sm:$0xf] %v38
            $region26: #{custom-call} parent=13 // loop_footer
              %s35 = sadd.s32 1, %s31
            $region27: #{custom-call} parent=13 // loop_footer_branch
              %30 = sbr.rel target = $region23
            $region28: #{custom-call} parent=13 // loop_exit
              _
          $region14: #{custom-call} parent=9 // pred_fallthru
            _
        $region10: #{custom-call} parent=5 // pred_fallthru
          _
        %40 = vnop
      $region6: #{custom-call} parent=2 // pred_fallthru
        _
      // Predicated region
      $region29: #{custom-call} parent=2 // pred_check
        _
      $region30: #{custom-call} parent=2 // pred_check_branch
        %42 = sbr.rel (0) target = $region32
      $region31: #{custom-call} parent=2 // pred_region
        _
      $region32: #{custom-call} parent=2 // pred_fallthru
        _
      %v43 = vlaneseq
      %v44 = vand.u32 %v43, 127
      %v45 = vlaneseq
      %v46 = vshrl.u32 %v45, 7
      %v47 = vshrl.u32 %v46, 1
      %v48 = vand.u32 %v46, 1
      %v49 = vmul.u32 %v47, 128
      %v50 = vadd.s32 %v44, %v49
      %v52 = vld [vmem:[#allocation16] sm:$0xff]
      %vm53 = vcmp.lt.s32.totalorder %v52, 0
      %v54 = vsub.s32 2147483647, %v52
      %v55 = vsel %vm53, %v54, %v52
      %vm57 = vcmp.lt.s32.totalorder %v50, 768
      %v58 = vsel %vm57, %v55, 2147483648
      %59 = vst [vmem:[#allocation16] sm:$0xff] %v58
      %s60 = scalar_lea.vmem [#allocation16], 8
      %v61 = vld [vmem:[%s60] sm:$0xff]
      %vm62 = vcmp.lt.s32.totalorder %v61, 0
      %v63 = vsub.s32 2147483647, %v61
      %v64 = vsel %vm62, %v63, %v61
      %v65 = vadd.s32 %v50, 512
      %vm66 = vcmp.lt.s32.totalorder %v65, 768
      %v67 = vsel %vm66, %v64, 2147483648
      %68 = vst [vmem:[%s60] sm:$0xff] %v67
      %v69 = vlaneseq
      %v70 = vand.u32 %v69, 127
      %v71 = vlaneseq
      %v72 = vshrl.u32 %v71, 7
      %v73 = vshrl.u32 %v72, 1
      %v74 = vand.u32 %v72, 1
      %v75 = vmul.u32 %v73, 128
      %v76 = vadd.s32 %v70, %v75
      %79 = vst [vmem:[#allocation17] sm:$0xff] %v76
      %v80 = vadd.s32 %v76, 512
      %s81 = scalar_lea.vmem [#allocation17], 8
      %82 = vst [vmem:[%s81] sm:$0xff] %v80
      %83 = xla_tuple [#allocation16], [#allocation17]
      %84 = vst [vmem:[#allocation13] sm:$0xff] 2147483648
      %85 = vst [vmem:[#allocation15] sm:$0xff] 2147483647
      %86 = xla_tuple [#allocation13], [#allocation15]
      loop: start=0, step=1, limit=8
      $region33: #{custom-call} parent=2 // loop_pre_header
        _
      $region34: #{custom-call} parent=2 // loop_header
        %s88 = sphi 0, %s92
        %p89 = scmp.ge.s32.totalorder %s88, 8
      $region35: #{custom-call} parent=2 // loop_header_branch
        %91 = sbr.rel (%p89) target = $region39
      $region36: #{custom-call} parent=2 // loop_body
        %v93 = vld [vmem:[#allocation16] sm:$0xff]
        %v94 = vld [vmem:[#allocation17] sm:$0xff]
        %95 = xla_tuple %v93, %v94
        %s96 = scalar_lea.vmem [#allocation16], 8
        %v97 = vld [vmem:[%s96] sm:$0xff]
        %s98 = scalar_lea.vmem [#allocation17], 8
        %v99 = vld [vmem:[%s98] sm:$0xff]
        %100 = xla_tuple %v97, %v99
        %vm101 = vcmp.gt.s32.totalorder %v97, %v93
        %vm102 = vcmp.eq.s32.totalorder %v97, %v93
        %vm103 = vcmp.lt.s32.totalorder %v99, %v94
        %vm104 = vmand %vm102, %vm103
        %vm105 = vmor %vm101, %vm104
        %v106 = vsel %vm105, %v97, %v93
        %v107 = vsel %vm105, %v99, %v94
        %108 = xla_tuple %v106, %v107
        %v109 = vrot.slane %v106, 2
        %v110 = vrot.slane %v107, 2
        %111 = xla_tuple %v109, %v110
        %vm112 = vcmp.gt.s32.totalorder %v109, %v106
        %vm113 = vcmp.eq.s32.totalorder %v109, %v106
        %vm114 = vcmp.lt.s32.totalorder %v110, %v107
        %vm115 = vmand %vm113, %vm114
        %vm116 = vmor %vm112, %vm115
        %v117 = vsel %vm116, %v109, %v106
        %v118 = vsel %vm116, %v110, %v107
        %119 = xla_tuple %v117, %v118
        %v120 = vrot.slane %v117, 2
        %v121 = vrot.slane %v118, 2
        %122 = xla_tuple %v120, %v121
        %vm123 = vcmp.gt.s32.totalorder %v120, %v117
        %vm124 = vcmp.eq.s32.totalorder %v120, %v117
        %vm125 = vcmp.lt.s32.totalorder %v121, %v118
        %vm126 = vmand %vm124, %vm125
        %vm127 = vmor %vm123, %vm126
        %v128 = vsel %vm127, %v120, %v117
        %v129 = vsel %vm127, %v121, %v118
        %130 = xla_tuple %v128, %v129
        %v131 = vrot.slane %v128, 2
        %v132 = vrot.slane %v129, 2
        %133 = xla_tuple %v131, %v132
        %vm134 = vcmp.gt.s32.totalorder %v131, %v128
        %vm135 = vcmp.eq.s32.totalorder %v131, %v128
        %vm136 = vcmp.lt.s32.totalorder %v132, %v129
        %vm137 = vmand %vm135, %vm136
        %vm138 = vmor %vm134, %vm137
        %v139 = vsel %vm138, %v131, %v128
        %v140 = vsel %vm138, %v132, %v129
        %141 = xla_tuple %v139, %v140
        %142 = vxpose.xlu0.b32.start [1/16] %v139, 128
        %143 = vxpose.xlu0.b32.cont [2/16] %v139, 128
        %144 = vxpose.xlu0.b32.cont [3/16] %v139, 128
        %145 = vxpose.xlu0.b32.cont [4/16] %v139, 128
        %146 = vxpose.xlu0.b32.cont [5/16] %v139, 128
        %147 = vxpose.xlu0.b32.cont [6/16] %v139, 128
        %148 = vxpose.xlu0.b32.cont [7/16] %v139, 128
        %149 = vxpose.xlu0.b32.cont [8/16] %v139, 128
        %150 = vxpose.xlu0.b32.cont [9/16] %v139, 128
        %151 = vxpose.xlu0.b32.cont [10/16] %v139, 128
        %152 = vxpose.xlu0.b32.cont [11/16] %v139, 128
        %153 = vxpose.xlu0.b32.cont [12/16] %v139, 128
        %154 = vxpose.xlu0.b32.cont [13/16] %v139, 128
        %155 = vxpose.xlu0.b32.cont [14/16] %v139, 128
        %156 = vxpose.xlu0.b32.cont [15/16] %v139, 128
        %157 = vxpose.xlu0.b32.end [16/16] %v139, 128
        %v158 = vpop.trf.xlu0
        %v159 = vpop.trf.xlu0
        %v160 = vpop.trf.xlu0
        %v161 = vpop.trf.xlu0
        %v162 = vpop.trf.xlu0
        %v163 = vpop.trf.xlu0
        %v164 = vpop.trf.xlu0
        %v165 = vpop.trf.xlu0
        %v166 = vpop.trf.xlu0
        %v167 = vpop.trf.xlu0
        %v168 = vpop.trf.xlu0
        %v169 = vpop.trf.xlu0
        %v170 = vpop.trf.xlu0
        %v171 = vpop.trf.xlu0
        %v172 = vpop.trf.xlu0
        %v173 = vpop.trf.xlu0
        %174 = vxpose.xlu0.b32.start [1/16] %v140, 128
        %175 = vxpose.xlu0.b32.cont [2/16] %v140, 128
        %176 = vxpose.xlu0.b32.cont [3/16] %v140, 128
        %177 = vxpose.xlu0.b32.cont [4/16] %v140, 128
        %178 = vxpose.xlu0.b32.cont [5/16] %v140, 128
        %179 = vxpose.xlu0.b32.cont [6/16] %v140, 128
        %180 = vxpose.xlu0.b32.cont [7/16] %v140, 128
        %181 = vxpose.xlu0.b32.cont [8/16] %v140, 128
        %182 = vxpose.xlu0.b32.cont [9/16] %v140, 128
        %183 = vxpose.xlu0.b32.cont [10/16] %v140, 128
        %184 = vxpose.xlu0.b32.cont [11/16] %v140, 128
        %185 = vxpose.xlu0.b32.cont [12/16] %v140, 128
        %186 = vxpose.xlu0.b32.cont [13/16] %v140, 128
        %187 = vxpose.xlu0.b32.cont [14/16] %v140, 128
        %188 = vxpose.xlu0.b32.cont [15/16] %v140, 128
        %189 = vxpose.xlu0.b32.end [16/16] %v140, 128
        %v190 = vpop.trf.xlu0
        %v191 = vpop.trf.xlu0
        %v192 = vpop.trf.xlu0
        %v193 = vpop.trf.xlu0
        %v194 = vpop.trf.xlu0
        %v195 = vpop.trf.xlu0
        %v196 = vpop.trf.xlu0
        %v197 = vpop.trf.xlu0
        %v198 = vpop.trf.xlu0
        %v199 = vpop.trf.xlu0
        %v200 = vpop.trf.xlu0
        %v201 = vpop.trf.xlu0
        %v202 = vpop.trf.xlu0
        %v203 = vpop.trf.xlu0
        %v204 = vpop.trf.xlu0
        %v205 = vpop.trf.xlu0
        %206 = xla_tuple %v158, %v190
        %207 = xla_tuple %v159, %v191
        %vm208 = vcmp.gt.s32.totalorder %v159, %v158
        %vm209 = vcmp.eq.s32.totalorder %v159, %v158
        %vm210 = vcmp.lt.s32.totalorder %v191, %v190
        %vm211 = vmand %vm209, %vm210
        %vm212 = vmor %vm208, %vm211
        %v213 = vsel %vm212, %v159, %v158
        %v214 = vsel %vm212, %v191, %v190
        %215 = xla_tuple %v213, %v214
        %216 = xla_tuple %v160, %v192
        %vm217 = vcmp.gt.s32.totalorder %v160, %v213
        %vm218 = vcmp.eq.s32.totalorder %v160, %v213
        %vm219 = vcmp.lt.s32.totalorder %v192, %v214
        %vm220 = vmand %vm218, %vm219
        %vm221 = vmor %vm217, %vm220
        %v222 = vsel %vm221, %v160, %v213
        %v223 = vsel %vm221, %v192, %v214
        %224 = xla_tuple %v222, %v223
        %225 = xla_tuple %v161, %v193
        %vm226 = vcmp.gt.s32.totalorder %v161, %v222
        %vm227 = vcmp.eq.s32.totalorder %v161, %v222
        %vm228 = vcmp.lt.s32.totalorder %v193, %v223
        %vm229 = vmand %vm227, %vm228
        %vm230 = vmor %vm226, %vm229
        %v231 = vsel %vm230, %v161, %v222
        %v232 = vsel %vm230, %v193, %v223
        %233 = xla_tuple %v231, %v232
        %234 = xla_tuple %v162, %v194
        %vm235 = vcmp.gt.s32.totalorder %v162, %v231
        %vm236 = vcmp.eq.s32.totalorder %v162, %v231
        %vm237 = vcmp.lt.s32.totalorder %v194, %v232
        %vm238 = vmand %vm236, %vm237
        %vm239 = vmor %vm235, %vm238
        %v240 = vsel %vm239, %v162, %v231
        %v241 = vsel %vm239, %v194, %v232
        %242 = xla_tuple %v240, %v241
        %243 = xla_tuple %v163, %v195
        %vm244 = vcmp.gt.s32.totalorder %v163, %v240
        %vm245 = vcmp.eq.s32.totalorder %v163, %v240
        %vm246 = vcmp.lt.s32.totalorder %v195, %v241
        %vm247 = vmand %vm245, %vm246
        %vm248 = vmor %vm244, %vm247
        %v249 = vsel %vm248, %v163, %v240
        %v250 = vsel %vm248, %v195, %v241
        %251 = xla_tuple %v249, %v250
        %252 = xla_tuple %v164, %v196
        %vm253 = vcmp.gt.s32.totalorder %v164, %v249
        %vm254 = vcmp.eq.s32.totalorder %v164, %v249
        %vm255 = vcmp.lt.s32.totalorder %v196, %v250
        %vm256 = vmand %vm254, %vm255
        %vm257 = vmor %vm253, %vm256
        %v258 = vsel %vm257, %v164, %v249
        %v259 = vsel %vm257, %v196, %v250
        %260 = xla_tuple %v258, %v259
        %261 = xla_tuple %v165, %v197
        %vm262 = vcmp.gt.s32.totalorder %v165, %v258
        %vm263 = vcmp.eq.s32.totalorder %v165, %v258
        %vm264 = vcmp.lt.s32.totalorder %v197, %v259
        %vm265 = vmand %vm263, %vm264
        %vm266 = vmor %vm262, %vm265
        %v267 = vsel %vm266, %v165, %v258
        %v268 = vsel %vm266, %v197, %v259
        %269 = xla_tuple %v267, %v268
        %270 = xla_tuple %v166, %v198
        %vm271 = vcmp.gt.s32.totalorder %v166, %v267
        %vm272 = vcmp.eq.s32.totalorder %v166, %v267
        %vm273 = vcmp.lt.s32.totalorder %v198, %v268
        %vm274 = vmand %vm272, %vm273
        %vm275 = vmor %vm271, %vm274
        %v276 = vsel %vm275, %v166, %v267
        %v277 = vsel %vm275, %v198, %v268
        %278 = xla_tuple %v276, %v277
        %279 = xla_tuple %v167, %v199
        %vm280 = vcmp.gt.s32.totalorder %v167, %v276
        %vm281 = vcmp.eq.s32.totalorder %v167, %v276
        %vm282 = vcmp.lt.s32.totalorder %v199, %v277
        %vm283 = vmand %vm281, %vm282
        %vm284 = vmor %vm280, %vm283
        %v285 = vsel %vm284, %v167, %v276
        %v286 = vsel %vm284, %v199, %v277
        %287 = xla_tuple %v285, %v286
        %288 = xla_tuple %v168, %v200
        %vm289 = vcmp.gt.s32.totalorder %v168, %v285
        %vm290 = vcmp.eq.s32.totalorder %v168, %v285
        %vm291 = vcmp.lt.s32.totalorder %v200, %v286
        %vm292 = vmand %vm290, %vm291
        %vm293 = vmor %vm289, %vm292
        %v294 = vsel %vm293, %v168, %v285
        %v295 = vsel %vm293, %v200, %v286
        %296 = xla_tuple %v294, %v295
        %297 = xla_tuple %v169, %v201
        %vm298 = vcmp.gt.s32.totalorder %v169, %v294
        %vm299 = vcmp.eq.s32.totalorder %v169, %v294
        %vm300 = vcmp.lt.s32.totalorder %v201, %v295
        %vm301 = vmand %vm299, %vm300
        %vm302 = vmor %vm298, %vm301
        %v303 = vsel %vm302, %v169, %v294
        %v304 = vsel %vm302, %v201, %v295
        %305 = xla_tuple %v303, %v304
        %306 = xla_tuple %v170, %v202
        %vm307 = vcmp.gt.s32.totalorder %v170, %v303
        %vm308 = vcmp.eq.s32.totalorder %v170, %v303
        %vm309 = vcmp.lt.s32.totalorder %v202, %v304
        %vm310 = vmand %vm308, %vm309
        %vm311 = vmor %vm307, %vm310
        %v312 = vsel %vm311, %v170, %v303
        %v313 = vsel %vm311, %v202, %v304
        %314 = xla_tuple %v312, %v313
        %315 = xla_tuple %v171, %v203
        %vm316 = vcmp.gt.s32.totalorder %v171, %v312
        %vm317 = vcmp.eq.s32.totalorder %v171, %v312
        %vm318 = vcmp.lt.s32.totalorder %v203, %v313
        %vm319 = vmand %vm317, %vm318
        %vm320 = vmor %vm316, %vm319
        %v321 = vsel %vm320, %v171, %v312
        %v322 = vsel %vm320, %v203, %v313
        %323 = xla_tuple %v321, %v322
        %324 = xla_tuple %v172, %v204
        %vm325 = vcmp.gt.s32.totalorder %v172, %v321
        %vm326 = vcmp.eq.s32.totalorder %v172, %v321
        %vm327 = vcmp.lt.s32.totalorder %v204, %v322
        %vm328 = vmand %vm326, %vm327
        %vm329 = vmor %vm325, %vm328
        %v330 = vsel %vm329, %v172, %v321
        %v331 = vsel %vm329, %v204, %v322
        %332 = xla_tuple %v330, %v331
        %333 = xla_tuple %v173, %v205
        %vm334 = vcmp.gt.s32.totalorder %v173, %v330
        %vm335 = vcmp.eq.s32.totalorder %v173, %v330
        %vm336 = vcmp.lt.s32.totalorder %v205, %v331
        %vm337 = vmand %vm335, %vm336
        %vm338 = vmor %vm334, %vm337
        %v339 = vsel %vm338, %v173, %v330
        %v340 = vsel %vm338, %v205, %v331
        %341 = xla_tuple %v339, %v340
        %v342 = vrot.slane %v339, 1
        %v343 = vrot.slane %v340, 1
        %344 = xla_tuple %v342, %v343
        %vm345 = vcmp.gt.s32.totalorder %v342, %v339
        %vm346 = vcmp.eq.s32.totalorder %v342, %v339
        %vm347 = vcmp.lt.s32.totalorder %v343, %v340
        %vm348 = vmand %vm346, %vm347
        %vm349 = vmor %vm345, %vm348
        %v350 = vsel %vm349, %v342, %v339
        %v351 = vsel %vm349, %v343, %v340
        %352 = xla_tuple %v350, %v351
        %v353 = vrot.slane %v350, 1
        %v354 = vrot.slane %v351, 1
        %355 = xla_tuple %v353, %v354
        %vm356 = vcmp.gt.s32.totalorder %v353, %v350
        %vm357 = vcmp.eq.s32.totalorder %v353, %v350
        %vm358 = vcmp.lt.s32.totalorder %v354, %v351
        %vm359 = vmand %vm357, %vm358
        %vm360 = vmor %vm356, %vm359
        %v361 = vsel %vm360, %v353, %v350
        %v362 = vsel %vm360, %v354, %v351
        %363 = xla_tuple %v361, %v362
        %v364 = vrot.slane %v361, 1
        %v365 = vrot.slane %v362, 1
        %366 = xla_tuple %v364, %v365
        %vm367 = vcmp.gt.s32.totalorder %v364, %v361
        %vm368 = vcmp.eq.s32.totalorder %v364, %v361
        %vm369 = vcmp.lt.s32.totalorder %v365, %v362
        %vm370 = vmand %vm368, %vm369
        %vm371 = vmor %vm367, %vm370
        %v372 = vsel %vm371, %v364, %v361
        %v373 = vsel %vm371, %v365, %v362
        %374 = xla_tuple %v372, %v373
        %v375 = vrot.slane %v372, 1
        %v376 = vrot.slane %v373, 1
        %377 = xla_tuple %v375, %v376
        %vm378 = vcmp.gt.s32.totalorder %v375, %v372
        %vm379 = vcmp.eq.s32.totalorder %v375, %v372
        %vm380 = vcmp.lt.s32.totalorder %v376, %v373
        %vm381 = vmand %vm379, %vm380
        %vm382 = vmor %vm378, %vm381
        %v383 = vsel %vm382, %v375, %v372
        %v384 = vsel %vm382, %v376, %v373
        %385 = xla_tuple %v383, %v384
        %v386 = vrot.slane %v383, 1
        %v387 = vrot.slane %v384, 1
        %388 = xla_tuple %v386, %v387
        %vm389 = vcmp.gt.s32.totalorder %v386, %v383
        %vm390 = vcmp.eq.s32.totalorder %v386, %v383
        %vm391 = vcmp.lt.s32.totalorder %v387, %v384
        %vm392 = vmand %vm390, %vm391
        %vm393 = vmor %vm389, %vm392
        %v394 = vsel %vm393, %v386, %v383
        %v395 = vsel %vm393, %v387, %v384
        %396 = xla_tuple %v394, %v395
        %v397 = vrot.slane %v394, 1
        %v398 = vrot.slane %v395, 1
        %399 = xla_tuple %v397, %v398
        %vm400 = vcmp.gt.s32.totalorder %v397, %v394
        %vm401 = vcmp.eq.s32.totalorder %v397, %v394
        %vm402 = vcmp.lt.s32.totalorder %v398, %v395
        %vm403 = vmand %vm401, %vm402
        %vm404 = vmor %vm400, %vm403
        %v405 = vsel %vm404, %v397, %v394
        %v406 = vsel %vm404, %v398, %v395
        %407 = xla_tuple %v405, %v406
        %v408 = vrot.slane %v405, 1
        %v409 = vrot.slane %v406, 1
        %410 = xla_tuple %v408, %v409
        %vm411 = vcmp.gt.s32.totalorder %v408, %v405
        %vm412 = vcmp.eq.s32.totalorder %v408, %v405
        %vm413 = vcmp.lt.s32.totalorder %v409, %v406
        %vm414 = vmand %vm412, %vm413
        %vm415 = vmor %vm411, %vm414
        %v416 = vsel %vm415, %v408, %v405
        %v417 = vsel %vm415, %v409, %v406
        %418 = xla_tuple %v416, %v417
        %s419 = scalar_lea.vmem [#allocation13], %s88
        %420 = vst [vmem:[%s419] sm:$0x1] %v416
        %s421 = scalar_lea.vmem [#allocation15], %s88
        %422 = vst [vmem:[%s421] sm:$0x1] %v417
        %423 = xla_tuple %420, %422
        %424 = vxpose.xlu0.b32.start [1/16] %v417, 128
        %425 = vxpose.xlu0.b32.cont [2/16] 0.0, 128
        %426 = vxpose.xlu0.b32.cont [3/16] 0.0, 128
        %427 = vxpose.xlu0.b32.cont [4/16] 0.0, 128
        %428 = vxpose.xlu0.b32.cont [5/16] 0.0, 128
        %429 = vxpose.xlu0.b32.cont [6/16] 0.0, 128
        %430 = vxpose.xlu0.b32.cont [7/16] 0.0, 128
        %431 = vxpose.xlu0.b32.cont [8/16] 0.0, 128
        %432 = vxpose.xlu0.b32.cont [9/16] 0.0, 128
        %433 = vxpose.xlu0.b32.cont [10/16] 0.0, 128
        %434 = vxpose.xlu0.b32.cont [11/16] 0.0, 128
        %435 = vxpose.xlu0.b32.cont [12/16] 0.0, 128
        %436 = vxpose.xlu0.b32.cont [13/16] 0.0, 128
        %437 = vxpose.xlu0.b32.cont [14/16] 0.0, 128
        %438 = vxpose.xlu0.b32.cont [15/16] 0.0, 128
        %439 = vxpose.xlu0.b32.end [16/16] 0.0, 128
        %v440 = vpop.trf.xlu0
        %v441 = vpop.trf.xlu0
        %v442 = vpop.trf.xlu0
        %v443 = vpop.trf.xlu0
        %v444 = vpop.trf.xlu0
        %v445 = vpop.trf.xlu0
        %v446 = vpop.trf.xlu0
        %v447 = vpop.trf.xlu0
        %v448 = vpop.trf.xlu0
        %v449 = vpop.trf.xlu0
        %v450 = vpop.trf.xlu0
        %v451 = vpop.trf.xlu0
        %v452 = vpop.trf.xlu0
        %v453 = vpop.trf.xlu0
        %v454 = vpop.trf.xlu0
        %v455 = vpop.trf.xlu0
        %s456 = vtos %v440
        %s457 = sshrl.u32 %s456, 9
        %p458 = scmp.lt.s32.totalorder %s456, 0
        %s459 = ssub.s32 0, %s456
        %s460 = scalar_select %p458, %s459, %s456
        %s461 = sand.u32 %s460, 511
        %s462 = ssub.s32 0, %s461
        %s463 = scalar_select %p458, %s462, %s461
        %s464 = sshrl.u32 %s463, 7
        %s465 = smul.u32 %s464, 256
        %s466 = sand.u32 %s463, 127
        %s467 = sadd.s32 %s465, %s466
        %v468 = vlaneseq
        %v469 = vstv %s467
        %vm471 = vcmp.eq.s32.totalorder %v468, %v469
        %s472 = smul.addr %s457, 8
        %s473 = scalar_lea.vmem [#allocation16], %s472
        %474 = vst.msk [vmem:[%s473] sm:$0xff] %vm471, 2147483648
        %s475 = smul.addr %s457, 8
        %s476 = scalar_lea.vmem [#allocation17], %s475
        %477 = vst.msk [vmem:[%s476] sm:$0xff] %vm471, 2147483647
        %478 = xla_tuple %474, %477
        %v479 = vrot.slane %v440, 1
        %s480 = vtos %v479
        %s481 = sshrl.u32 %s480, 9
        %p482 = scmp.lt.s32.totalorder %s480, 0
        %s483 = ssub.s32 0, %s480
        %s484 = scalar_select %p482, %s483, %s480
        %s485 = sand.u32 %s484, 511
        %s486 = ssub.s32 0, %s485
        %s487 = scalar_select %p482, %s486, %s485
        %s488 = sshrl.u32 %s487, 7
        %s489 = smul.u32 %s488, 256
        %s490 = sand.u32 %s487, 127
        %s491 = sadd.s32 %s489, %s490
        %v492 = vlaneseq
        %v493 = vstv %s491
        %v494 = vadd.s32 %v493, 128
        %vm495 = vcmp.eq.s32.totalorder %v492, %v494
        %s496 = smul.addr %s481, 8
        %s497 = scalar_lea.vmem [#allocation16], %s496
        %498 = vst.msk [vmem:[%s497] sm:$0xff] %vm495, 2147483648
        %s499 = smul.addr %s481, 8
        %s500 = scalar_lea.vmem [#allocation17], %s499
        %501 = vst.msk [vmem:[%s500] sm:$0xff] %vm495, 2147483647
        %502 = xla_tuple %498, %501
        %v503 = vrot.slane %v479, 1
      $region37: #{custom-call} parent=2 // loop_footer
        %s92 = sadd.s32 1, %s88
      $region38: #{custom-call} parent=2 // loop_footer_branch
        %87 = sbr.rel target = $region34
      $region39: #{custom-call} parent=2 // loop_exit
        _
      %s504 = scalar_lea.vmem [#allocation13], 7
      %v505 = vld [vmem:[%s504] ss:$-1 sm:$0xff]
      %s506 = scalar_lea.vmem [#allocation13], 7
      %v507 = vld [vmem:[%s506] ss:$-1 sm:$0xff]
      %508 = vst [vmem:[#allocation13] sm:$0xff] %v507
      %509 = vst [vmem:[#allocation13] sm:$0xff] %v505
      %s510 = scalar_lea.vmem [#allocation15], 7
      %v511 = vld [vmem:[%s510] ss:$-1 sm:$0xff]
      %s512 = scalar_lea.vmem [#allocation15], 7
      %v513 = vld [vmem:[%s512] ss:$-1 sm:$0xff]
      %514 = vst [vmem:[#allocation15] sm:$0xff] %v513
      %515 = vst [vmem:[#allocation15] sm:$0xff] %v511
      %516 = xla_tuple %509, %515
      %v517 = vld [vmem:[#allocation12] sm:$0xff]
      %v518 = vld [vmem:[#allocation14] sm:$0xff]
      %519 = xla_tuple %v517, %v518
      %v520 = vld [vmem:[#allocation13] sm:$0xff]
      %v521 = vld [vmem:[#allocation15] sm:$0xff]
      %522 = xla_tuple %v520, %v521
      %vm523 = vcmp.gt.s32.totalorder %v517, %v520
      %vm524 = vcmp.eq.s32.totalorder %v517, %v520
      %vm525 = vcmp.lt.s32.totalorder %v518, %v521
      %vm526 = vmand %vm524, %vm525
      %vm527 = vmor %vm523, %vm526
      %v528 = vsel %vm527, %v517, %v520
      %529 = vst [vmem:[#allocation12] sm:$0xff] %v528
      %v530 = vsel %vm527, %v520, %v517
      %531 = vst [vmem:[#allocation13] sm:$0xff] %v530
      %v532 = vsel %vm527, %v518, %v521
      %533 = vst [vmem:[#allocation14] sm:$0xff] %v532
      %v534 = vsel %vm527, %v521, %v518
      %535 = vst [vmem:[#allocation15] sm:$0xff] %v534
      %536 = xla_tuple %531, %535
      %537 = xla_tuple [#allocation12], [#allocation14]
      %v538 = vld [vmem:[#allocation12] sm:$0xff]
      %v539 = vld [vmem:[#allocation14] sm:$0xff]
      %540 = xla_tuple %v538, %v539
      %v542 = vunpack.c.l.s4 839939668
      %v543 = vunpack.c.0.s8 %v542
      %v544 = vlaneseq
      %v545 = vshrl.u32 %v544, 7
      %v546 = vsub.s32 %v543, %v545
      %v547 = vrot.slane %v538, %v546
      %v549 = vunpack.c.l.s4 839939668
      %v550 = vunpack.c.0.s8 %v549
      %v551 = vlaneseq
      %v552 = vshrl.u32 %v551, 7
      %v553 = vsub.s32 %v550, %v552
      %v554 = vrot.slane %v539, %v553
      %555 = xla_tuple %v547, %v554
      %vm556 = vcmp.gt.s32.totalorder %v538, %v547
      %vm557 = vcmp.eq.s32.totalorder %v538, %v547
      %vm558 = vcmp.lt.s32.totalorder %v539, %v554
      %vm559 = vmand %vm557, %vm558
      %vm560 = vmor %vm556, %vm559
      %v561 = vlaneseq
      %v562 = vshrl.u32 %v561, 7
      %v563 = vand.u32 %v562, 4
      %vm564 = vcmp.ne.s32.totalorder %v563, 0
      %vm565 = vmxor %vm560, %vm564
      %v566 = vsel %vm565, %v538, %v547
      %v567 = vsel %vm565, %v539, %v554
      %568 = xla_tuple %v566, %v567
      %v570 = vunpack.c.l.s4 1417023538
      %v571 = vunpack.c.0.s8 %v570
      %v572 = vlaneseq
      %v573 = vshrl.u32 %v572, 7
      %v574 = vsub.s32 %v571, %v573
      %v575 = vrot.slane %v566, %v574
      %v577 = vunpack.c.l.s4 1417023538
      %v578 = vunpack.c.0.s8 %v577
      %v579 = vlaneseq
      %v580 = vshrl.u32 %v579, 7
      %v581 = vsub.s32 %v578, %v580
      %v582 = vrot.slane %v567, %v581
      %583 = xla_tuple %v575, %v582
      %vm584 = vcmp.gt.s32.totalorder %v566, %v575
      %vm585 = vcmp.eq.s32.totalorder %v566, %v575
      %vm586 = vcmp.lt.s32.totalorder %v567, %v582
      %vm587 = vmand %vm585, %vm586
      %vm588 = vmor %vm584, %vm587
      %v589 = vlaneseq
      %v590 = vshrl.u32 %v589, 7
      %v591 = vand.u32 %v590, 2
      %vm592 = vcmp.ne.s32.totalorder %v591, 0
      %vm593 = vmxor %vm588, %vm592
      %v594 = vsel %vm593, %v566, %v575
      %v595 = vsel %vm593, %v567, %v582
      %596 = xla_tuple %v594, %v595
      %v598 = vunpack.c.l.s4 1732584193
      %v599 = vunpack.c.0.s8 %v598
      %v600 = vlaneseq
      %v601 = vshrl.u32 %v600, 7
      %v602 = vsub.s32 %v599, %v601
      %v603 = vrot.slane %v594, %v602
      %v605 = vunpack.c.l.s4 1732584193
      %v606 = vunpack.c.0.s8 %v605
      %v607 = vlaneseq
      %v608 = vshrl.u32 %v607, 7
      %v609 = vsub.s32 %v606, %v608
      %v610 = vrot.slane %v595, %v609
      %611 = xla_tuple %v603, %v610
      %vm612 = vcmp.gt.s32.totalorder %v594, %v603
      %vm613 = vcmp.eq.s32.totalorder %v594, %v603
      %vm614 = vcmp.lt.s32.totalorder %v595, %v610
      %vm615 = vmand %vm613, %vm614
      %vm616 = vmor %vm612, %vm615
      %v617 = vlaneseq
      %v618 = vshrl.u32 %v617, 7
      %v619 = vand.u32 %v618, 1
      %vm620 = vcmp.ne.s32.totalorder %v619, 0
      %vm621 = vmxor %vm616, %vm620
      %v622 = vsel %vm621, %v594, %v603
      %v623 = vsel %vm621, %v595, %v610
      %624 = xla_tuple %v622, %v623
      %625 = vst [vmem:[#allocation12] sm:$0xff] %v622
      %626 = vst [vmem:[#allocation14] sm:$0xff] %v623
      %627 = xla_tuple %625, %626
      %v628 = vld [vmem:[#allocation12] sm:$0xff]
      %v629 = vld [vmem:[#allocation14] sm:$0xff]
      %630 = xla_tuple %v628, %v629
      %v632 = vunpack.c.l.s4 839939668
      %v633 = vunpack.c.0.s8 %v632
      %v634 = vlaneseq
      %v635 = vshrl.u32 %v634, 7
      %v636 = vsub.s32 %v633, %v635
      %v637 = vrot.slane %v628, %v636
      %v639 = vunpack.c.l.s4 839939668
      %v640 = vunpack.c.0.s8 %v639
      %v641 = vlaneseq
      %v642 = vshrl.u32 %v641, 7
      %v643 = vsub.s32 %v640, %v642
      %v644 = vrot.slane %v629, %v643
      %645 = xla_tuple %v637, %v644
      %vm646 = vcmp.gt.s32.totalorder %v628, %v637
      %vm647 = vcmp.eq.s32.totalorder %v628, %v637
      %vm648 = vcmp.lt.s32.totalorder %v629, %v644
      %vm649 = vmand %vm647, %vm648
      %vm650 = vmor %vm646, %vm649
      %v651 = vlaneseq
      %v652 = vshrl.u32 %v651, 7
      %v653 = vand.u32 %v652, 4
      %vm654 = vcmp.ne.s32.totalorder %v653, 0
      %vm655 = vmxor %vm650, %vm654
      %v656 = vsel %vm655, %v628, %v637
      %v657 = vsel %vm655, %v629, %v644
      %658 = xla_tuple %v656, %v657
      %v660 = vunpack.c.l.s4 1417023538
      %v661 = vunpack.c.0.s8 %v660
      %v662 = vlaneseq
      %v663 = vshrl.u32 %v662, 7
      %v664 = vsub.s32 %v661, %v663
      %v665 = vrot.slane %v656, %v664
      %v667 = vunpack.c.l.s4 1417023538
      %v668 = vunpack.c.0.s8 %v667
      %v669 = vlaneseq
      %v670 = vshrl.u32 %v669, 7
      %v671 = vsub.s32 %v668, %v670
      %v672 = vrot.slane %v657, %v671
      %673 = xla_tuple %v665, %v672
      %vm674 = vcmp.gt.s32.totalorder %v656, %v665
      %vm675 = vcmp.eq.s32.totalorder %v656, %v665
      %vm676 = vcmp.lt.s32.totalorder %v657, %v672
      %vm677 = vmand %vm675, %vm676
      %vm678 = vmor %vm674, %vm677
      %v679 = vlaneseq
      %v680 = vshrl.u32 %v679, 7
      %v681 = vand.u32 %v680, 2
      %vm682 = vcmp.ne.s32.totalorder %v681, 0
      %vm683 = vmxor %vm678, %vm682
      %v684 = vsel %vm683, %v656, %v665
      %v685 = vsel %vm683, %v657, %v672
      %686 = xla_tuple %v684, %v685
      %v688 = vunpack.c.l.s4 1732584193
      %v689 = vunpack.c.0.s8 %v688
      %v690 = vlaneseq
      %v691 = vshrl.u32 %v690, 7
      %v692 = vsub.s32 %v689, %v691
      %v693 = vrot.slane %v684, %v692
      %v695 = vunpack.c.l.s4 1732584193
      %v696 = vunpack.c.0.s8 %v695
      %v697 = vlaneseq
      %v698 = vshrl.u32 %v697, 7
      %v699 = vsub.s32 %v696, %v698
      %v700 = vrot.slane %v685, %v699
      %701 = xla_tuple %v693, %v700
      %vm702 = vcmp.gt.s32.totalorder %v684, %v693
      %vm703 = vcmp.eq.s32.totalorder %v684, %v693
      %vm704 = vcmp.lt.s32.totalorder %v685, %v700
      %vm705 = vmand %vm703, %vm704
      %vm706 = vmor %vm702, %vm705
      %v707 = vlaneseq
      %v708 = vshrl.u32 %v707, 7
      %v709 = vand.u32 %v708, 1
      %vm710 = vcmp.ne.s32.totalorder %v709, 0
      %vm711 = vmxor %vm706, %vm710
      %v712 = vsel %vm711, %v684, %v693
      %v713 = vsel %vm711, %v685, %v700
      %714 = xla_tuple %v712, %v713
      %715 = vst [vmem:[#allocation12] sm:$0xff] %v712
      %716 = vst [vmem:[#allocation14] sm:$0xff] %v713
      %717 = xla_tuple %715, %716
      %718 = xla_tuple [#allocation13], [#allocation15]
      %v719 = vld [vmem:[#allocation13] sm:$0xff]
      %v720 = vld [vmem:[#allocation15] sm:$0xff]
      %721 = xla_tuple %v719, %v720
      %v723 = vunpack.c.l.s4 839939668
      %v724 = vunpack.c.0.s8 %v723
      %v725 = vlaneseq
      %v726 = vshrl.u32 %v725, 7
      %v727 = vsub.s32 %v724, %v726
      %v728 = vrot.slane %v719, %v727
      %v730 = vunpack.c.l.s4 839939668
      %v731 = vunpack.c.0.s8 %v730
      %v732 = vlaneseq
      %v733 = vshrl.u32 %v732, 7
      %v734 = vsub.s32 %v731, %v733
      %v735 = vrot.slane %v720, %v734
      %736 = xla_tuple %v728, %v735
      %vm737 = vcmp.gt.s32.totalorder %v719, %v728
      %vm738 = vcmp.eq.s32.totalorder %v719, %v728
      %vm739 = vcmp.lt.s32.totalorder %v720, %v735
      %vm740 = vmand %vm738, %vm739
      %vm741 = vmor %vm737, %vm740
      %v742 = vlaneseq
      %v743 = vshrl.u32 %v742, 7
      %v744 = vand.u32 %v743, 4
      %vm745 = vcmp.ne.s32.totalorder %v744, 0
      %vm746 = vmxor %vm741, %vm745
      %v747 = vsel %vm746, %v719, %v728
      %v748 = vsel %vm746, %v720, %v735
      %749 = xla_tuple %v747, %v748
      %v751 = vunpack.c.l.s4 1417023538
      %v752 = vunpack.c.0.s8 %v751
      %v753 = vlaneseq
      %v754 = vshrl.u32 %v753, 7
      %v755 = vsub.s32 %v752, %v754
      %v756 = vrot.slane %v747, %v755
      %v758 = vunpack.c.l.s4 1417023538
      %v759 = vunpack.c.0.s8 %v758
      %v760 = vlaneseq
      %v761 = vshrl.u32 %v760, 7
      %v762 = vsub.s32 %v759, %v761
      %v763 = vrot.slane %v748, %v762
      %764 = xla_tuple %v756, %v763
      %vm765 = vcmp.gt.s32.totalorder %v747, %v756
      %vm766 = vcmp.eq.s32.totalorder %v747, %v756
      %vm767 = vcmp.lt.s32.totalorder %v748, %v763
      %vm768 = vmand %vm766, %vm767
      %vm769 = vmor %vm765, %vm768
      %v770 = vlaneseq
      %v771 = vshrl.u32 %v770, 7
      %v772 = vand.u32 %v771, 2
      %vm773 = vcmp.ne.s32.totalorder %v772, 0
      %vm774 = vmxor %vm769, %vm773
      %v775 = vsel %vm774, %v747, %v756
      %v776 = vsel %vm774, %v748, %v763
      %777 = xla_tuple %v775, %v776
      %v779 = vunpack.c.l.s4 1732584193
      %v780 = vunpack.c.0.s8 %v779
      %v781 = vlaneseq
      %v782 = vshrl.u32 %v781, 7
      %v783 = vsub.s32 %v780, %v782
      %v784 = vrot.slane %v775, %v783
      %v786 = vunpack.c.l.s4 1732584193
      %v787 = vunpack.c.0.s8 %v786
      %v788 = vlaneseq
      %v789 = vshrl.u32 %v788, 7
      %v790 = vsub.s32 %v787, %v789
      %v791 = vrot.slane %v776, %v790
      %792 = xla_tuple %v784, %v791
      %vm793 = vcmp.gt.s32.totalorder %v775, %v784
      %vm794 = vcmp.eq.s32.totalorder %v775, %v784
      %vm795 = vcmp.lt.s32.totalorder %v776, %v791
      %vm796 = vmand %vm794, %vm795
      %vm797 = vmor %vm793, %vm796
      %v798 = vlaneseq
      %v799 = vshrl.u32 %v798, 7
      %v800 = vand.u32 %v799, 1
      %vm801 = vcmp.ne.s32.totalorder %v800, 0
      %vm802 = vmxor %vm797, %vm801
      %v803 = vsel %vm802, %v775, %v784
      %v804 = vsel %vm802, %v776, %v791
      %805 = xla_tuple %v803, %v804
      %806 = vst [vmem:[#allocation13] sm:$0xff] %v803
      %807 = vst [vmem:[#allocation15] sm:$0xff] %v804
      %808 = xla_tuple %806, %807
      %v809 = vld [vmem:[#allocation13] sm:$0xff]
      %v810 = vld [vmem:[#allocation15] sm:$0xff]
      %811 = xla_tuple %v809, %v810
      %v813 = vunpack.c.l.s4 839939668
      %v814 = vunpack.c.0.s8 %v813
      %v815 = vlaneseq
      %v816 = vshrl.u32 %v815, 7
      %v817 = vsub.s32 %v814, %v816
      %v818 = vrot.slane %v809, %v817
      %v820 = vunpack.c.l.s4 839939668
      %v821 = vunpack.c.0.s8 %v820
      %v822 = vlaneseq
      %v823 = vshrl.u32 %v822, 7
      %v824 = vsub.s32 %v821, %v823
      %v825 = vrot.slane %v810, %v824
      %826 = xla_tuple %v818, %v825
      %vm827 = vcmp.gt.s32.totalorder %v809, %v818
      %vm828 = vcmp.eq.s32.totalorder %v809, %v818
      %vm829 = vcmp.lt.s32.totalorder %v810, %v825
      %vm830 = vmand %vm828, %vm829
      %vm831 = vmor %vm827, %vm830
      %v832 = vlaneseq
      %v833 = vshrl.u32 %v832, 7
      %v834 = vand.u32 %v833, 4
      %vm835 = vcmp.ne.s32.totalorder %v834, 0
      %vm836 = vmxor %vm831, %vm835
      %v837 = vsel %vm836, %v809, %v818
      %v838 = vsel %vm836, %v810, %v825
      %839 = xla_tuple %v837, %v838
      %v841 = vunpack.c.l.s4 1417023538
      %v842 = vunpack.c.0.s8 %v841
      %v843 = vlaneseq
      %v844 = vshrl.u32 %v843, 7
      %v845 = vsub.s32 %v842, %v844
      %v846 = vrot.slane %v837, %v845
      %v848 = vunpack.c.l.s4 1417023538
      %v849 = vunpack.c.0.s8 %v848
      %v850 = vlaneseq
      %v851 = vshrl.u32 %v850, 7
      %v852 = vsub.s32 %v849, %v851
      %v853 = vrot.slane %v838, %v852
      %854 = xla_tuple %v846, %v853
      %vm855 = vcmp.gt.s32.totalorder %v837, %v846
      %vm856 = vcmp.eq.s32.totalorder %v837, %v846
      %vm857 = vcmp.lt.s32.totalorder %v838, %v853
      %vm858 = vmand %vm856, %vm857
      %vm859 = vmor %vm855, %vm858
      %v860 = vlaneseq
      %v861 = vshrl.u32 %v860, 7
      %v862 = vand.u32 %v861, 2
      %vm863 = vcmp.ne.s32.totalorder %v862, 0
      %vm864 = vmxor %vm859, %vm863
      %v865 = vsel %vm864, %v837, %v846
      %v866 = vsel %vm864, %v838, %v853
      %867 = xla_tuple %v865, %v866
      %v869 = vunpack.c.l.s4 1732584193
      %v870 = vunpack.c.0.s8 %v869
      %v871 = vlaneseq
      %v872 = vshrl.u32 %v871, 7
      %v873 = vsub.s32 %v870, %v872
      %v874 = vrot.slane %v865, %v873
      %v876 = vunpack.c.l.s4 1732584193
      %v877 = vunpack.c.0.s8 %v876
      %v878 = vlaneseq
      %v879 = vshrl.u32 %v878, 7
      %v880 = vsub.s32 %v877, %v879
      %v881 = vrot.slane %v866, %v880
      %882 = xla_tuple %v874, %v881
      %vm883 = vcmp.gt.s32.totalorder %v865, %v874
      %vm884 = vcmp.eq.s32.totalorder %v865, %v874
      %vm885 = vcmp.lt.s32.totalorder %v866, %v881
      %vm886 = vmand %vm884, %vm885
      %vm887 = vmor %vm883, %vm886
      %v888 = vlaneseq
      %v889 = vshrl.u32 %v888, 7
      %v890 = vand.u32 %v889, 1
      %vm891 = vcmp.ne.s32.totalorder %v890, 0
      %vm892 = vmxor %vm887, %vm891
      %v893 = vsel %vm892, %v865, %v874
      %v894 = vsel %vm892, %v866, %v881
      %895 = xla_tuple %v893, %v894
      %896 = vst [vmem:[#allocation13] sm:$0xff] %v893
      %897 = vst [vmem:[#allocation15] sm:$0xff] %v894
      %898 = xla_tuple %896, %897
    %v899 = vld [vmem:[#allocation12] sm:$0xff]
    %vm900 = vcmp.lt.s32.totalorder %v899, 0
    %v901 = vsub.s32 2147483647, %v899
    %v902 = vsel %vm900, %v901, %v899
    %903 = vst [vmem:[#allocation12] sm:$0xff] %v902
    %v904 = vld [vmem:[#allocation12] sm:$0xff]
    %905 = vxpose.xlu0.b32.start.end [1/1] (short) %v904, 128
    %v906 = vpop.trf.xlu0
    %v907 = vpop.trf.xlu0
    %v908 = vpop.trf.xlu0
    %v909 = vpop.trf.xlu0
    %v910 = vpop.trf.xlu0
    %v911 = vpop.trf.xlu0
    %v912 = vpop.trf.xlu0
    %v913 = vpop.trf.xlu0
    %v914 = vpop.trf.xlu0
    %v915 = vpop.trf.xlu0
    %v916 = vpop.trf.xlu0
    %v917 = vpop.trf.xlu0
    %v918 = vpop.trf.xlu0
    %v919 = vpop.trf.xlu0
    %v920 = vpop.trf.xlu0
    %v921 = vpop.trf.xlu0
    %922 = vst [vmem:[#allocation7] sm:$0xff] %v906
    %v923 = vld [vmem:[#allocation14] sm:$0xff]
    %924 = vxpose.xlu0.b32.start.end [1/1] (short) %v923, 128
    %v925 = vpop.trf.xlu0
    %v926 = vpop.trf.xlu0
    %v927 = vpop.trf.xlu0
    %v928 = vpop.trf.xlu0
    %v929 = vpop.trf.xlu0
    %v930 = vpop.trf.xlu0
    %v931 = vpop.trf.xlu0
    %v932 = vpop.trf.xlu0
    %v933 = vpop.trf.xlu0
    %v934 = vpop.trf.xlu0
    %v935 = vpop.trf.xlu0
    %v936 = vpop.trf.xlu0
    %v937 = vpop.trf.xlu0
    %v938 = vpop.trf.xlu0
    %v939 = vpop.trf.xlu0
    %v940 = vpop.trf.xlu0
    %941 = vst [vmem:[#allocation10] sm:$0xff] %v925
    %s943 = sshllo.u32 0, 2
    %v945 = vld [vmem:[#allocation7] sm:%s943]
    %s946 = sshllo.u32 0, 2
    %947 = vst [vmem:[#allocation8] sm:%s946] %v945
    %s949 = sshllo.u32 0, 2
    %v951 = vld [vmem:[#allocation10] sm:%s949]
    %s952 = sshllo.u32 0, 2
    %953 = vst [vmem:[#allocation11] sm:%s952] %v951
    %s955 = ssub.s32 32, 32
    %956 = vsyncadd [#allocation9], %s955
    %s958 = sshll.u32 [#allocation8], 4
    %s959 = int_to_ptr.vmem [resolvable:$true] %s958
    %961 = dma.vmem_to_hbm [thread:$0]  %s959, 32, %s1, [#allocation9]
    // Predicated region
    $region40: #{custom-call} parent=1 // pred_check
      _
    $region41: #{custom-call} parent=1 // pred_check_branch
      %963 = sbr.rel (0) target = $region43
    $region42: #{custom-call} parent=1 // pred_region
      // Predicated region
      $region44: #{custom-call} parent=42 // pred_check
        _
      $region45: #{custom-call} parent=42 // pred_check_branch
        %965 = sbr.rel target = $region47
      $region46: #{custom-call} parent=42 // pred_region
        // Predicated region
        $region59: #{custom-call} parent=46 // pred_check
          _
        $region60: #{custom-call} parent=46 // pred_check_branch
          %980 = sbr.rel (0) target = $region62
        $region61: #{custom-call} parent=46 // pred_region
          loop: start=0, step=1, limit=1
          $region63: #{custom-call} parent=61 // loop_pre_header
            _
          $region64: #{custom-call} parent=61 // loop_header
            %s983 = sphi 0, %s987
            %p984 = scmp.ge.s32.totalorder %s983, 1
            %s988 = sphi [#allocation11], [#allocation11]
            %s989 = sphi %s2, %s2
          $region65: #{custom-call} parent=61 // loop_header_branch
            %986 = sbr.rel (%p984) target = $region69
          $region66: #{custom-call} parent=61 // loop_body
            %v990 = vld [vmem:[%s988] sm:$0x3]
            %991 = vst [vmem:[%s989] sm:$0x3] %v990
          $region67: #{custom-call} parent=61 // loop_footer
            %s987 = sadd.s32 1, %s983
          $region68: #{custom-call} parent=61 // loop_footer_branch
            %982 = sbr.rel target = $region64
          $region69: #{custom-call} parent=61 // loop_exit
            _
        $region62: #{custom-call} parent=46 // pred_fallthru
          _
      $region47: #{custom-call} parent=42 // pred_fallthru
        _
      // Predicated region
      $region48: #{custom-call} parent=42 // pred_check
        _
      $region49: #{custom-call} parent=42 // pred_check_branch
        %967 = sbr.rel (0) target = $region51
      $region50: #{custom-call} parent=42 // pred_region
        loop: start=0, step=1, limit=1
        $region52: #{custom-call} parent=50 // loop_pre_header
          _
        $region53: #{custom-call} parent=50 // loop_header
          %s970 = sphi 0, %s974
          %p971 = scmp.ge.s32.totalorder %s970, 1
          %s975 = sphi [#allocation11], [#allocation11]
          %s976 = sphi %s2, %s2
        $region54: #{custom-call} parent=50 // loop_header_branch
          %973 = sbr.rel (%p971) target = $region58
        $region55: #{custom-call} parent=50 // loop_body
          %v977 = vld [vmem:[%s975] sm:$0x3]
          %978 = vst [vmem:[%s976] sm:$0x3] %v977
        $region56: #{custom-call} parent=50 // loop_footer
          %s974 = sadd.s32 1, %s970
        $region57: #{custom-call} parent=50 // loop_footer_branch
          %969 = sbr.rel target = $region53
        $region58: #{custom-call} parent=50 // loop_exit
          _
      $region51: #{custom-call} parent=42 // pred_fallthru
        _
    $region43: #{custom-call} parent=1 // pred_fallthru
      _
    %992 = vnop
    %993 = dma.done [#allocation9], 32
    %994 = vsyncpa [#allocation9], 1

// kernel: generalized_rcnn_forward.9
$region0: #{generalized_rcnn_forward.9}
  #allocation0 [shape = 'u32[]', space=smem, size = 0x4, offset = 0x4, fixed_abs, tag = 'smem constant byte address 0x4 - core index']
  #allocation1 [shape = 'u32[144,128]{1,0:T(1,128)}', space=vmem, size = 0x12000, scoped, tag = 'internal scratch']
  %s0 = inlined_call_operand.vmem [shape: f32[8,128], index: 0, kind: input, shape index: {}]
  %s1 = inlined_call_operand.vmem [shape: f32[8,128], index: 1, kind: output, shape index: {}]
  %s2 = sld [smem:[#allocation0]]
  $region14: #{generalized_rcnn_forward.9} parent=0
    _
  %s4 = ssub.s32 1, %s2
  %s5 = scalar_select 0, %s4, %s2
  // Predicated region
  $region2: #{generalized_rcnn_forward.9} parent=0 // pred_check
    _
  $region3: #{generalized_rcnn_forward.9} parent=0 // pred_check_branch
    %7 = sbr.rel (0) target = $region5
  $region4: #{generalized_rcnn_forward.9} parent=0 // pred_region
    _
  $region5: #{generalized_rcnn_forward.9} parent=0 // pred_fallthru
    _
  %v8 = vld [vmem:[%s0] sm:$0x1]
  %v9 = vld [vmem:[%s0 + $0x1] sm:$0x1]
  %v10 = vld [vmem:[%s0 + $0x2] sm:$0x1]
  %v11 = vld [vmem:[%s0 + $0x3] sm:$0x1]
  %v12 = vld [vmem:[%s0 + $0x4] sm:$0x1]
  %v13 = vld [vmem:[%s0 + $0x5] sm:$0x1]
  %v14 = vld [vmem:[%s0 + $0x6] sm:$0x1]
  %v15 = vmin.f32 %v14, 4.1351666
  %v16 = vld [vmem:[%s0 + $0x7] sm:$0x1]
  %v17 = vmin.f32 %v16, 4.1351666
  %v18 = vmul.f32 %v12, %v10
  %v19 = vadd.f32 %v8, %v18
  %v20 = vmul.f32 %v13, %v11
  %v21 = vadd.f32 %v9, %v20
  %v22 = vmul.f32 %v15, 1.442695
  %v23 = vpow.pop %v22
  %v24 = vmul.f32 %v10, %v23
  %v25 = vmul.f32 %v17, 1.442695
  %v26 = vpow.pop %v25
  %v27 = vmul.f32 %v11, %v26
  %v28 = vmul.f32 %v24, 0.5
  %v29 = vsub.f32 %v19, %v28
  %v30 = vmax.f32 %v29, 0.0
  %v31 = vmin.f32 %v30, 15.0
  %v32 = vmul.f32 %v27, 0.5
  %v33 = vsub.f32 %v21, %v32
  %v34 = vmax.f32 %v33, 0.0
  %v35 = vmin.f32 %v34, 15.0
  %v36 = vadd.f32 %v19, %v28
  %v37 = vmax.f32 %v36, 0.0
  %v38 = vmin.f32 %v37, 15.0
  %v39 = vadd.f32 %v21, %v32
  %v40 = vmax.f32 %v39, 0.0
  %v41 = vmin.f32 %v40, 15.0
  %v43 = vrot.slane %v35, 7
  %v46 = vrot.slane %v38, 6
  %v49 = vrot.slane %v41, 5
  %vm51 = vcmask 1040384
  %v52 = vsel %vm51, %v31, %v43
  %vm53 = vcmask 1041408
  %v54 = vsel %vm53, %v52, %v46
  %vm55 = vcmask 1042432
  %v56 = vsel %vm55, %v54, %v49
  %vm57 = vcmask 1043456
  %v58 = vsel %vm57, %v56, 0.0
  %vm59 = vcmask 1044480
  %v60 = vsel %vm59, %v58, 0.0
  %vm61 = vcmask 1045504
  %v62 = vsel %vm61, %v60, 0.0
  %vm63 = vcmask 1046528
  %v64 = vsel %vm63, %v62, 0.0
  %65 = vst [vmem:[%s1] sm:$0xff] %v64
  // Predicated region
  $region6: #{generalized_rcnn_forward.9} parent=0 // pred_check
    _
  $region7: #{generalized_rcnn_forward.9} parent=0 // pred_check_branch
    %67 = sbr.rel (0) target = $region9
  $region8: #{generalized_rcnn_forward.9} parent=0 // pred_region
    _
  $region9: #{generalized_rcnn_forward.9} parent=0 // pred_fallthru
    _
  // Predicated region
  $region10: #{generalized_rcnn_forward.9} parent=0 // pred_check
    _
  $region11: #{generalized_rcnn_forward.9} parent=0 // pred_check_branch
    %69 = sbr.rel (0) target = $region13
  $region12: #{generalized_rcnn_forward.9} parent=0 // pred_region
    _
  $region13: #{generalized_rcnn_forward.9} parent=0 // pred_fallthru
    _

// kernel: generalized_rcnn_forward.10
$region0: #{generalized_rcnn_forward.10}
  #allocation0 [shape = 'u32[]', space=smem, size = 0x4, offset = 0x4, fixed_abs, tag = 'smem constant byte address 0x4 - core index']
  #allocation1 [shape = 'u32[144,128]{1,0:T(1,128)}', space=vmem, size = 0x12000, scoped, tag = 'internal scratch']
  %s0 = inlined_call_operand.vmem [shape: bf16[16,32], index: 0, kind: input, shape index: {}]
  %s1 = inlined_call_operand.vmem [shape: bf16[32,64], index: 1, kind: input, shape index: {}]
  %s2 = inlined_call_operand.vmem [shape: f32[1,64], index: 2, kind: input, shape index: {}]
  %s3 = inlined_call_operand.vmem [shape: bf16[64,64], index: 3, kind: input, shape index: {}]
  %s4 = inlined_call_operand.vmem [shape: f32[1,64], index: 4, kind: input, shape index: {}]
  %s5 = inlined_call_operand.vmem [shape: bf16[64,128], index: 5, kind: input, shape index: {}]
  %s6 = inlined_call_operand.vmem [shape: f32[1,128], index: 6, kind: input, shape index: {}]
  %s7 = inlined_call_operand.vmem [shape: f32[16,128], index: 7, kind: output, shape index: {}]
  %s8 = sld [smem:[#allocation0]]
  $region38: #{generalized_rcnn_forward.10} parent=0
    _
  %s10 = ssub.s32 1, %s8
  %s11 = scalar_select 0, %s10, %s8
  // Predicated region
  $region2: #{generalized_rcnn_forward.10} parent=0 // pred_check
    _
  $region3: #{generalized_rcnn_forward.10} parent=0 // pred_check_branch
    %13 = sbr.rel (0) target = $region5
  $region4: #{generalized_rcnn_forward.10} parent=0 // pred_region
    _
  $region5: #{generalized_rcnn_forward.10} parent=0 // pred_fallthru
    _
  // Predicated region
  $region6: #{generalized_rcnn_forward.10} parent=0 // pred_check
    _
  $region7: #{generalized_rcnn_forward.10} parent=0 // pred_check_branch
    %15 = sbr.rel (0) target = $region9
  $region8: #{generalized_rcnn_forward.10} parent=0 // pred_region
    _
  $region9: #{generalized_rcnn_forward.10} parent=0 // pred_fallthru
    _
  // Predicated region
  $region10: #{generalized_rcnn_forward.10} parent=0 // pred_check
    _
  $region11: #{generalized_rcnn_forward.10} parent=0 // pred_check_branch
    %17 = sbr.rel (0) target = $region13
  $region12: #{generalized_rcnn_forward.10} parent=0 // pred_region
    _
  $region13: #{generalized_rcnn_forward.10} parent=0 // pred_fallthru
    _
  // Predicated region
  $region14: #{generalized_rcnn_forward.10} parent=0 // pred_check
    _
  $region15: #{generalized_rcnn_forward.10} parent=0 // pred_check_branch
    %19 = sbr.rel (0) target = $region17
  $region16: #{generalized_rcnn_forward.10} parent=0 // pred_region
    _
  $region17: #{generalized_rcnn_forward.10} parent=0 // pred_fallthru
    _
  // Predicated region
  $region18: #{generalized_rcnn_forward.10} parent=0 // pred_check
    _
  $region19: #{generalized_rcnn_forward.10} parent=0 // pred_check_branch
    %21 = sbr.rel (0) target = $region21
  $region20: #{generalized_rcnn_forward.10} parent=0 // pred_region
    _
  $region21: #{generalized_rcnn_forward.10} parent=0 // pred_fallthru
    _
  // Predicated region
  $region22: #{generalized_rcnn_forward.10} parent=0 // pred_check
    _
  $region23: #{generalized_rcnn_forward.10} parent=0 // pred_check_branch
    %23 = sbr.rel (0) target = $region25
  $region24: #{generalized_rcnn_forward.10} parent=0 // pred_region
    _
  $region25: #{generalized_rcnn_forward.10} parent=0 // pred_fallthru
    _
  // Predicated region
  $region26: #{generalized_rcnn_forward.10} parent=0 // pred_check
    _
  $region27: #{generalized_rcnn_forward.10} parent=0 // pred_check_branch
    %25 = sbr.rel (0) target = $region29
  $region28: #{generalized_rcnn_forward.10} parent=0 // pred_region
    _
  $region29: #{generalized_rcnn_forward.10} parent=0 // pred_fallthru
    _
  %v27 = vld [vmem:[%s0] sm:$0xf]
  %v28 = vld [vmem:[%s0 + $0x4] sm:$0xf]
  %v29 = vld [vmem:[%s1] sm:$0xf]
  %v30 = vld [vmem:[%s1 + $0x4] sm:$0xf]
  %v31 = vld [vmem:[%s1 + $0x8] sm:$0xf]
  %v32 = vld [vmem:[%s1 + $0xc] sm:$0xf]
  %v33 = vld [vmem:[%s2] sm:$0x1]
  %v35 = vlaneseq
  %v36 = vshrl.u32 %v35, 7
  %v37 = vsub.s32 0, %v36
  %v38 = vrot.slane %v33, %v37
  %v42 = vunpack.c.l.b16 %v27
  %v43 = vunpack.c.l.b16 %v28
  %v44 = vpack.c.b16 %v43, %v42
  %v49 = vunpack.c.l.b16 %v29
  %v50 = vunpack.c.l.b16 %v30
  %v51 = vunpack.c.l.b16 %v31
  %v52 = vunpack.c.l.b16 %v32
  %v53 = vpack.c.b16 %v50, %v49
  %v54 = vpack.c.b16 %v52, %v51
  %vm57 = vcmask 261120
  %v59 = vsel %vm57, %v44, 0
  %61 = vmatprep.subr.bf16.mxu0 0
  %62 = vmatpush1.bf16.msra.mxu0 %v53
  %63 = vmatprep.subr.bf16.mxu0 0
  %64 = vmatpush1.bf16.msra.mxu0 %v54
  %65 = vmatprep.subr.bf16.mxu0 0
  %66 = vmatpush1.bf16.msra.mxu0 0
  %67 = vmatprep.subr.bf16.mxu0 0
  %68 = vmatpush1.bf16.msra.mxu0 0
  %69 = vmatprep.subr.bf16.mxu0 0
  %70 = vmatpush1.bf16.msra.mxu0 0
  %71 = vmatprep.subr.bf16.mxu0 0
  %72 = vmatpush1.bf16.msra.mxu0 0
  %73 = vmatprep.subr.bf16.mxu0 0
  %74 = vmatpush1.bf16.msra.mxu0 0
  %75 = vmatprep.subr.bf16.mxu0 0
  %76 = vmatpush1.bf16.msra.mxu0 0
  %77 = vmatprep.subr.bf16.mxu0 0
  %78 = vmatpush1.bf16.msra.mxu0 0
  %79 = vmatprep.subr.bf16.mxu0 0
  %80 = vmatpush1.bf16.msra.mxu0 0
  %81 = vmatprep.subr.bf16.mxu0 0
  %82 = vmatpush1.bf16.msra.mxu0 0
  %83 = vmatprep.subr.bf16.mxu0 0
  %84 = vmatpush1.bf16.msra.mxu0 0
  %85 = vmatprep.subr.bf16.mxu0 0
  %86 = vmatpush1.bf16.msra.mxu0 0
  %87 = vmatprep.subr.bf16.mxu0 0
  %88 = vmatpush1.bf16.msra.mxu0 0
  %89 = vmatprep.subr.bf16.mxu0 0
  %90 = vmatpush1.bf16.msra.mxu0 0
  %91 = vmatprep.subr.bf16.mxu0 0
  %92 = vmatpush1.bf16.msra.mxu0 0
  %93 = vmatprep.mubr.bf16.mxu0 0
  %94 = vmatmul.mubr.bf16.gmra.mrb[0].mxu0 %v59
  %v95 = vpop.f32.mrb[0].mxu0
  %v96 = vadd.f32 %v38, %v95
  %v97 = vpop.f32.mrb[0].mxu0
  %v98 = vpop.f32.mrb[0].mxu0
  %v99 = vadd.f32 %v38, %v98
  %v100 = vpop.f32.mrb[0].mxu0
  %101 = vdwg.mxu0
  %v102 = vmax.f32 %v96, 0.0
  %v103 = vmax.f32 %v99, 0.0
  %v104 = vpack.c.bf16 %v103, %v102
  %v105 = vld [vmem:[%s3] sm:$0xf]
  %v106 = vld [vmem:[%s3 + $0x4] sm:$0xf]
  %v107 = vld [vmem:[%s3 + $0x8] sm:$0xf]
  %v108 = vld [vmem:[%s3 + $0xc] sm:$0xf]
  %v109 = vld [vmem:[%s3 + $0x10] sm:$0xf]
  %v110 = vld [vmem:[%s3 + $0x14] sm:$0xf]
  %v111 = vld [vmem:[%s3 + $0x18] sm:$0xf]
  %v112 = vld [vmem:[%s3 + $0x1c] sm:$0xf]
  %v113 = vld [vmem:[%s4] sm:$0x1]
  %v115 = vlaneseq
  %v116 = vshrl.u32 %v115, 7
  %v117 = vsub.s32 0, %v116
  %v118 = vrot.slane %v113, %v117
  %v128 = vunpack.c.l.b16 %v105
  %v129 = vunpack.c.l.b16 %v106
  %v130 = vunpack.c.l.b16 %v107
  %v131 = vunpack.c.l.b16 %v108
  %v132 = vunpack.c.l.b16 %v109
  %v133 = vunpack.c.l.b16 %v110
  %v134 = vunpack.c.l.b16 %v111
  %v135 = vunpack.c.l.b16 %v112
  %v136 = vpack.c.b16 %v129, %v128
  %v137 = vpack.c.b16 %v131, %v130
  %v138 = vpack.c.b16 %v133, %v132
  %v139 = vpack.c.b16 %v135, %v134
  %vm144 = vcmask 523264
  %v146 = vsel %vm144, %v104, 0
  %148 = vmatprep.subr.bf16.mxu0 0
  %149 = vmatpush1.bf16.msra.mxu0 %v136
  %150 = vmatprep.subr.bf16.mxu0 0
  %151 = vmatpush1.bf16.msra.mxu0 %v137
  %152 = vmatprep.subr.bf16.mxu0 0
  %153 = vmatpush1.bf16.msra.mxu0 %v138
  %154 = vmatprep.subr.bf16.mxu0 0
  %155 = vmatpush1.bf16.msra.mxu0 %v139
  %156 = vmatprep.subr.bf16.mxu0 0
  %157 = vmatpush1.bf16.msra.mxu0 0
  %158 = vmatprep.subr.bf16.mxu0 0
  %159 = vmatpush1.bf16.msra.mxu0 0
  %160 = vmatprep.subr.bf16.mxu0 0
  %161 = vmatpush1.bf16.msra.mxu0 0
  %162 = vmatprep.subr.bf16.mxu0 0
  %163 = vmatpush1.bf16.msra.mxu0 0
  %164 = vmatprep.subr.bf16.mxu0 0
  %165 = vmatpush1.bf16.msra.mxu0 0
  %166 = vmatprep.subr.bf16.mxu0 0
  %167 = vmatpush1.bf16.msra.mxu0 0
  %168 = vmatprep.subr.bf16.mxu0 0
  %169 = vmatpush1.bf16.msra.mxu0 0
  %170 = vmatprep.subr.bf16.mxu0 0
  %171 = vmatpush1.bf16.msra.mxu0 0
  %172 = vmatprep.subr.bf16.mxu0 0
  %173 = vmatpush1.bf16.msra.mxu0 0
  %174 = vmatprep.subr.bf16.mxu0 0
  %175 = vmatpush1.bf16.msra.mxu0 0
  %176 = vmatprep.subr.bf16.mxu0 0
  %177 = vmatpush1.bf16.msra.mxu0 0
  %178 = vmatprep.subr.bf16.mxu0 0
  %179 = vmatpush1.bf16.msra.mxu0 0
  %180 = vmatprep.mubr.bf16.mxu0 0
  %181 = vmatmul.mubr.bf16.gmra.mrb[0].mxu0 %v146
  %v182 = vpop.f32.mrb[0].mxu0
  %v183 = vadd.f32 %v118, %v182
  %v184 = vpop.f32.mrb[0].mxu0
  %v185 = vpop.f32.mrb[0].mxu0
  %v186 = vadd.f32 %v118, %v185
  %v187 = vpop.f32.mrb[0].mxu0
  %188 = vdwg.mxu0
  %v189 = vmax.f32 %v183, 0.0
  %v190 = vmax.f32 %v186, 0.0
  %v191 = vpack.c.bf16 %v190, %v189
  %v192 = vld [vmem:[%s5] sm:$0xf]
  %v193 = vld [vmem:[%s5 + $0x4] sm:$0xf]
  %v194 = vld [vmem:[%s5 + $0x8] sm:$0xf]
  %v195 = vld [vmem:[%s5 + $0xc] sm:$0xf]
  %v196 = vld [vmem:[%s5 + $0x10] sm:$0xf]
  %v197 = vld [vmem:[%s5 + $0x14] sm:$0xf]
  %v198 = vld [vmem:[%s5 + $0x18] sm:$0xf]
  %v199 = vld [vmem:[%s5 + $0x1c] sm:$0xf]
  %v200 = vld [vmem:[%s6] sm:$0x1]
  %v202 = vlaneseq
  %v203 = vshrl.u32 %v202, 7
  %v204 = vsub.s32 0, %v203
  %v205 = vrot.slane %v200, %v204
  %v215 = vunpack.c.l.b16 %v192
  %v216 = vunpack.c.l.b16 %v193
  %v217 = vunpack.c.l.b16 %v194
  %v218 = vunpack.c.l.b16 %v195
  %v219 = vunpack.c.l.b16 %v196
  %v220 = vunpack.c.l.b16 %v197
  %v221 = vunpack.c.l.b16 %v198
  %v222 = vunpack.c.l.b16 %v199
  %v223 = vpack.c.b16 %v216, %v215
  %v224 = vpack.c.b16 %v218, %v217
  %v225 = vpack.c.b16 %v220, %v219
  %v226 = vpack.c.b16 %v222, %v221
  %v232 = vsel %vm144, %v191, 0
  %234 = vmatprep.subr.bf16.mxu0 0
  %235 = vmatpush1.bf16.msra.mxu0 %v223
  %236 = vmatprep.subr.bf16.mxu0 0
  %237 = vmatpush1.bf16.msra.mxu0 %v224
  %238 = vmatprep.subr.bf16.mxu0 0
  %239 = vmatpush1.bf16.msra.mxu0 %v225
  %240 = vmatprep.subr.bf16.mxu0 0
  %241 = vmatpush1.bf16.msra.mxu0 %v226
  %242 = vmatprep.subr.bf16.mxu0 0
  %243 = vmatpush1.bf16.msra.mxu0 0
  %244 = vmatprep.subr.bf16.mxu0 0
  %245 = vmatpush1.bf16.msra.mxu0 0
  %246 = vmatprep.subr.bf16.mxu0 0
  %247 = vmatpush1.bf16.msra.mxu0 0
  %248 = vmatprep.subr.bf16.mxu0 0
  %249 = vmatpush1.bf16.msra.mxu0 0
  %250 = vmatprep.subr.bf16.mxu0 0
  %251 = vmatpush1.bf16.msra.mxu0 0
  %252 = vmatprep.subr.bf16.mxu0 0
  %253 = vmatpush1.bf16.msra.mxu0 0
  %254 = vmatprep.subr.bf16.mxu0 0
  %255 = vmatpush1.bf16.msra.mxu0 0
  %256 = vmatprep.subr.bf16.mxu0 0
  %257 = vmatpush1.bf16.msra.mxu0 0
  %258 = vmatprep.subr.bf16.mxu0 0
  %259 = vmatpush1.bf16.msra.mxu0 0
  %260 = vmatprep.subr.bf16.mxu0 0
  %261 = vmatpush1.bf16.msra.mxu0 0
  %262 = vmatprep.subr.bf16.mxu0 0
  %263 = vmatpush1.bf16.msra.mxu0 0
  %264 = vmatprep.subr.bf16.mxu0 0
  %265 = vmatpush1.bf16.msra.mxu0 0
  %266 = vmatprep.mubr.bf16.mxu0 0
  %267 = vmatmul.mubr.bf16.gmra.mrb[0].mxu0 %v232
  %v268 = vpop.f32.mrb[0].mxu0
  %v269 = vadd.f32 %v205, %v268
  %v270 = vpop.f32.mrb[0].mxu0
  %v271 = vpop.f32.mrb[0].mxu0
  %v272 = vadd.f32 %v205, %v271
  %v273 = vpop.f32.mrb[0].mxu0
  %274 = vdwg.mxu0
  %275 = vst [vmem:[%s7] sm:$0xff] %v269
  %276 = vst [vmem:[%s7 + $0x8] sm:$0xff] %v272
  // Predicated region
  $region30: #{generalized_rcnn_forward.10} parent=0 // pred_check
    _
  $region31: #{generalized_rcnn_forward.10} parent=0 // pred_check_branch
    %278 = sbr.rel (0) target = $region33
  $region32: #{generalized_rcnn_forward.10} parent=0 // pred_region
    _
  $region33: #{generalized_rcnn_forward.10} parent=0 // pred_fallthru
    _
  // Predicated region
  $region34: #{generalized_rcnn_forward.10} parent=0 // pred_check
    _
  $region35: #{generalized_rcnn_forward.10} parent=0 // pred_check_branch
    %280 = sbr.rel (0) target = $region37
  $region36: #{generalized_rcnn_forward.10} parent=0 // pred_region
    _
  $region37: #{generalized_rcnn_forward.10} parent=0 // pred_fallthru
    _

</llo_original>
